<compile_context>
chip_gen: v7x
topology: tpu7x:2x2x1
jax: 0.10.0
libtpu: 0.0.40
codegen_flags: <defaults>
</compile_context>

<pallas_src>
import functools
import math

import jax
import jax.numpy as jnp
from jax.experimental import pallas as pl
from jax.experimental.pallas import tpu as pltpu

LRELU_SLOPE = 0.01     # nn.LeakyReLU() default
BN_EPS = 1e-5          # nn.BatchNorm2d default
CPAD = 128             # lane-dense channel width carried through the network


def _half(n):
    """Output spatial extent of a k=3, stride=2, pad=1 conv/pool."""
    return (n + 2 - 3) // 2 + 1


# --------------------------- in-kernel building blocks --------------------------- #

def _lrelu(x, slope):
    return jnp.where(x >= 0.0, x, slope * x)


def _bn_train(x, eps):
    """Training-mode BatchNorm (biased variance, gamma=1, beta=0) over rows of (M, C)."""
    mean = jnp.mean(x, axis=0, keepdims=True)
    var = jnp.mean(jnp.square(x - mean), axis=0, keepdims=True)
    return (x - mean) * jax.lax.rsqrt(var + eps)


def _store_zero_padded(dst_ref, act, B, H, W):
    """Write act (B*H*W, C) into the interior of a zero-padded (B,(H+2),(W+2),C)-flattened
    VMEM scratch (pad=1 on each spatial side).  Multi-row block stores only."""
    Hp, Wp = H + 2, W + 2
    dst_ref[...] = jnp.zeros(dst_ref.shape, dst_ref.dtype)
    for b in range(B):
        for h in range(H):
            src0 = b * H * W + h * W
            dst0 = b * Hp * Wp + (h + 1) * Wp + 1
            dst_ref[pl.ds(dst0, W), :] = act[src0:src0 + W, :]


def _gather_im2col(src_ref, B, Hp, Wp, Ho, Wo, stride):
    """Build the (B*Ho*Wo, 9*C) im2col of a 3x3 conv from a zero-padded activation scratch
    laid out as flattened (B*Hp*Wp, C) rows.  Row order (b, ho, wo); lane order
    (offset-major, channel-minor).  Pure VMEM ref loads (strided over wo for stride 2)
    plus concatenations — no HBM traffic."""
    chunks = []
    for i in range(3):
        for j in range(3):
            parts = []
            for b in range(B):
                for ho in range(Ho):
                    r0 = b * Hp * Wp + (stride * ho + i) * Wp + j
                    if stride == 1:
                        parts.append(src_ref[pl.ds(r0, Wo), :])
                    else:
                        parts.append(src_ref[pl.ds(r0, Wo, stride=stride), :])
            chunks.append(jnp.concatenate(parts, axis=0))        # (B*Ho*Wo, C)
    return jnp.concatenate(chunks, axis=1)                        # (B*Ho*Wo, 9*C)


def _avgpool_3x3_s2_p1(act, B, H, W):
    """AvgPool2d(3,2,1), count_include_pad=True, on a row-major (B*H*W, C) value.
    Pure VPU: static unit-stride slices + sums, scaled by 1/9.  Returns a single
    (B*Ho*Wo, C) value (one concatenation, one downstream store)."""
    Ho, Wo = _half(H), _half(W)
    rows = []
    for b in range(B):
        for ph in range(Ho):
            h_lo, h_hi = max(0, 2 * ph - 1), min(H, 2 * ph + 2)
            for pw in range(Wo):
                w_lo, w_hi = max(0, 2 * pw - 1), min(W, 2 * pw + 2)
                s = None
                for h in range(h_lo, h_hi):
                    r0 = b * H * W + h * W + w_lo
                    seg = jnp.sum(act[r0:r0 + (w_hi - w_lo), :], axis=0, keepdims=True)
                    s = seg if s is None else s + seg
                rows.append(s)
    return jnp.concatenate(rows, axis=0) * (1.0 / 9.0)


# --------------------------------- fused kernel ---------------------------------- #

def _disc_kernel(cols1_ref, w1_ref, b1_ref, w2_ref, b2_ref, w3_ref, b3_ref,
                 w4_ref, b4_ref, w5_ref, b5_ref, o_ref, pad1_ref, pad3_ref,
                 *, slope, eps, B, H1, W1):
    f32 = jnp.float32
    H2, W2 = _half(H1), _half(W1)        # conv2 output spatial
    Hq1, Wq1 = _half(H2), _half(W2)      # avgpool1 output spatial (== conv3/conv4 spatial)

    # ---- stage 1: conv1 (single dense-K MXU dot) + bias + LeakyReLU + BN1 ----
    act1 = jnp.dot(cols1_ref[...], w1_ref[...], preferred_element_type=f32)
    act1 = _bn_train(_lrelu(act1 + b1_ref[...], slope), eps)              # (B*H1*W1, 128) f32

    # ---- stage 2: conv2 (stride 2, in-kernel strided gather, one K=1152 dot)
    #               + LeakyReLU + BN2 + AvgPool(3,2,1) ----
    _store_zero_padded(pad1_ref, act1, B, H1, W1)
    cols2 = _gather_im2col(pad1_ref, B, H1 + 2, W1 + 2, H2, W2, stride=2)
    act2 = jnp.dot(cols2.astype(w2_ref.dtype), w2_ref[...], preferred_element_type=f32)
    act2 = _bn_train(_lrelu(act2 + b2_ref[...], slope), eps)              # (B*H2*W2, 128)
    pooled1 = _avgpool_3x3_s2_p1(act2, B, H2, W2)                         # (B*Hq1*Wq1, 128)

    # ---- stage 3: conv3(3,s1,p1)+BN3 -> conv4(1x1)+BN4 -> AvgPool(3,2,1) -> conv5(1x1)+LReLU ----
    _store_zero_padded(pad3_ref, pooled1, B, Hq1, Wq1)
    cols3 = _gather_im2col(pad3_ref, B, Hq1 + 2, Wq1 + 2, Hq1, Wq1, stride=1)
    act3 = jnp.dot(cols3.astype(w3_ref.dtype), w3_ref[...], preferred_element_type=f32)
    act3 = _bn_train(_lrelu(act3 + b3_ref[...], slope), eps)              # (B*Hq1*Wq1, 128)

    act4 = jnp.dot(act3.astype(w4_ref.dtype), w4_ref[...], preferred_element_type=f32)
    act4 = _bn_train(_lrelu(act4 + b4_ref[...], slope), eps)              # (B*Hq1*Wq1, 128)

    pooled2 = _avgpool_3x3_s2_p1(act4, B, Hq1, Wq1)                       # (B*Hq2*Wq2, 128)

    out = jnp.dot(pooled2.astype(w5_ref.dtype), w5_ref[...], preferred_element_type=f32)
    o_ref[...] = _lrelu(out + b5_ref[...], slope).astype(o_ref.dtype)     # single full-tile store


# ------------------------------- pallas_call wrapper ------------------------------ #

def _discriminator_pallas(cols1, w1, b1, w2, b2, w3, b3, w4, b4, w5, b5, *, B, H1, W1):
    H2, W2 = _half(H1), _half(W1)
    Hq1, Wq1 = _half(H2), _half(W2)
    Hq2, Wq2 = _half(Hq1), _half(Wq1)
    Mout = B * Hq2 * Wq2

    kern = functools.partial(_disc_kernel, slope=LRELU_SLOPE, eps=BN_EPS, B=B, H1=H1, W1=W1)
    args = (cols1, w1, b1, w2, b2, w3, b3, w4, b4, w5, b5)
    return pl.pallas_call(
        kern,
        out_shape=jax.ShapeDtypeStruct((Mout, CPAD), jnp.float32),
        grid=(1,),
        in_specs=[pl.BlockSpec(a.shape, lambda i: (0, 0)) for a in args],
        out_specs=pl.BlockSpec((Mout, CPAD), lambda i: (0, 0)),
        scratch_shapes=[
            pltpu.VMEM((B * (H1 + 2) * (W1 + 2), CPAD), jnp.float32),    # zero-padded act1
            pltpu.VMEM((B * (Hq1 + 2) * (Wq1 + 2), CPAD), jnp.float32),  # zero-padded pooled1
        ],
        compiler_params=pltpu.CompilerParams(dimension_semantics=("arbitrary",)),
    )(*args)


# ------------------------------------ JAX glue ------------------------------------ #

def _init_conv_params(key, cin_real, cout_real, k, row_block, pad_rows_to=None):
    """PyTorch-default-style init (uniform +/- 1/sqrt(fan_in)).  Weight stored as a
    lane-dense concat-K matrix: per-offset row blocks of `row_block` rows, real channels
    in the first `cin_real` rows / `cout_real` cols of each block; bias (1, 128) f32."""
    kw_, kb_ = jax.random.split(key)
    fan_in = cin_real * k * k
    bound = 1.0 / math.sqrt(float(fan_in))
    w = jax.random.uniform(kw_, (k * k, cin_real, cout_real), jnp.float32, -bound, bound)
    b = jax.random.uniform(kb_, (cout_real,), jnp.float32, -bound, bound)
    w_p = jnp.zeros((k * k, row_block, CPAD), jnp.float32)
    w_p = w_p.at[:, :cin_real, :cout_real].set(w)
    w_p = w_p.reshape(k * k * row_block, CPAD)
    if pad_rows_to is not None and pad_rows_to > w_p.shape[0]:
        w_p = jnp.pad(w_p, ((0, pad_rows_to - w_p.shape[0]), (0, 0)))
    b_p = jnp.zeros((1, CPAD), jnp.float32).at[0, :cout_real].set(b)
    return w_p.astype(jnp.bfloat16), b_p


def init_discriminator_params(input_features, key):
    assert 9 * input_features <= CPAD, "stage-1 concat-K im2col must fit in 128 lanes"
    keys = jax.random.split(key, 5)
    p = {}
    p["w1"], p["b1"] = _init_conv_params(keys[0], input_features, 96, 3,
                                         row_block=input_features, pad_rows_to=CPAD)
    p["w2"], p["b2"] = _init_conv_params(keys[1], 96, 64, 3, row_block=CPAD)
    p["w3"], p["b3"] = _init_conv_params(keys[2], 64, 32, 3, row_block=CPAD)
    p["w4"], p["b4"] = _init_conv_params(keys[3], 32, 32, 1, row_block=CPAD)
    p["w5"], p["b5"] = _init_conv_params(keys[4], 32, 2, 1, row_block=CPAD)
    return p


def discriminator_forward(x_nchw, params):
    B, Cin, H, W = x_nchw.shape
    H1, W1 = _half(H), _half(W)
    M1 = B * H1 * W1
    # Single-block fused kernel assumes a small working set.
    # TODO(synk): M-tiled variant (grid over M, "parallel" for v7x megacore, 2-pass BN).
    assert M1 <= 1024, "single-block fused kernel assumes small B*H*W"
    assert 9 * Cin <= CPAD

    x = jnp.transpose(x_nchw.astype(jnp.float32), (0, 2, 3, 1))            # NCHW -> NHWC

    # Lane-dense im2col of the raw network input for conv1 (k=3, s=2, p=1):
    # one (M1, 9*Cin) matrix, zero-padded to 128 lanes (offset-major, channel-minor K order).
    xp = jnp.pad(x, ((0, 0), (1, 1), (1, 1), (0, 0)))
    slices = []
    for i in range(3):
        for j in range(3):
            s = xp[:, i:i + 2 * (H1 - 1) + 1:2, j:j + 2 * (W1 - 1) + 1:2, :]
            slices.append(s.reshape(M1, Cin))
    cols1 = jnp.concatenate(slices, axis=-1)                               # (M1, 9*Cin)
    cols1 = jnp.pad(cols1, ((0, 0), (0, CPAD - 9 * Cin))).astype(jnp.bfloat16)

    # One fused Pallas kernel for the whole network; intermediates stay in VMEM.
    head = _discriminator_pallas(cols1, params["w1"], params["b1"], params["w2"], params["b2"],
                                 params["w3"], params["b3"], params["w4"], params["b4"],
                                 params["w5"], params["b5"], B=B, H1=H1, W1=W1)

    Hq2 = _half(_half(_half(H1)))
    Wq2 = _half(_half(_half(W1)))
    convs = jnp.transpose(head[:, :2].reshape(B, Hq2, Wq2, 2), (0, 3, 1, 2))  # NCHW (B,2,Hq2,Wq2)
    output = convs.reshape(B, -1, 2)                                          # .view(B, -1, 2)
    return convs, output


if __name__ == "__main__":
    key = jax.random.PRNGKey(0)
    k_in, k_params = jax.random.split(key)

    B, C_in, H, W = 2, 4, 16, 16
    x = jax.random.normal(k_in, (B, C_in, H, W), dtype=jnp.float32)        # NCHW like PyTorch
    params = init_discriminator_params(C_in, k_params)

    convs, output = jax.jit(discriminator_forward)(x, params)
    convs = jax.block_until_ready(convs)
    output = jax.block_until_ready(output)

    assert convs.shape == (B, 2, 1, 1), convs.shape
    assert output.shape == (B, 1, 2), output.shape
    assert bool(jnp.all(jnp.isfinite(convs))) and bool(jnp.all(jnp.isfinite(output)))
    print("KERNEL_OK")
</pallas_src>

<mosaic_0001>
module attributes {stable_mosaic.version = 11 : i64} {
  func.func @_disc_kernel(%arg0: i32, %arg1: memref<128x128xbf16, #tpu.memory_space<vmem>>, %arg2: memref<128x128xbf16, #tpu.memory_space<vmem>>, %arg3: memref<1x128xf32, #tpu.memory_space<vmem>>, %arg4: memref<1152x128xbf16, #tpu.memory_space<vmem>>, %arg5: memref<1x128xf32, #tpu.memory_space<vmem>>, %arg6: memref<1152x128xbf16, #tpu.memory_space<vmem>>, %arg7: memref<1x128xf32, #tpu.memory_space<vmem>>, %arg8: memref<128x128xbf16, #tpu.memory_space<vmem>>, %arg9: memref<1x128xf32, #tpu.memory_space<vmem>>, %arg10: memref<128x128xbf16, #tpu.memory_space<vmem>>, %arg11: memref<1x128xf32, #tpu.memory_space<vmem>>, %arg12: memref<2x128xf32, #tpu.memory_space<vmem>>, %arg13: memref<200x128xf32, #tpu.memory_space<vmem>>, %arg14: memref<32x128xf32, #tpu.memory_space<vmem>>) attributes {dimension_semantics = [#tpu.dimension_semantics<arbitrary>], iteration_bounds = array<i64: 1>, scalar_prefetch = 0 : i64, scratch_operands = 2 : i64, tpu.core_type = #tpu.core_type<tc>, window_params = [{pipeline_mode = #tpu.pipeline_mode<synchronous>, transform_indices = @transform_0, window_bounds = array<i64: 128, 128>}, {pipeline_mode = #tpu.pipeline_mode<synchronous>, transform_indices = @transform_1, window_bounds = array<i64: 128, 128>}, {pipeline_mode = #tpu.pipeline_mode<synchronous>, transform_indices = @transform_2, window_bounds = array<i64: 1, 128>}, {pipeline_mode = #tpu.pipeline_mode<synchronous>, transform_indices = @transform_3, window_bounds = array<i64: 1152, 128>}, {pipeline_mode = #tpu.pipeline_mode<synchronous>, transform_indices = @transform_4, window_bounds = array<i64: 1, 128>}, {pipeline_mode = #tpu.pipeline_mode<synchronous>, transform_indices = @transform_5, window_bounds = array<i64: 1152, 128>}, {pipeline_mode = #tpu.pipeline_mode<synchronous>, transform_indices = @transform_6, window_bounds = array<i64: 1, 128>}, {pipeline_mode = #tpu.pipeline_mode<synchronous>, transform_indices = @transform_7, window_bounds = array<i64: 128, 128>}, {pipeline_mode = #tpu.pipeline_mode<synchronous>, transform_indices = @transform_8, window_bounds = array<i64: 1, 128>}, {pipeline_mode = #tpu.pipeline_mode<synchronous>, transform_indices = @transform_9, window_bounds = array<i64: 128, 128>}, {pipeline_mode = #tpu.pipeline_mode<synchronous>, transform_indices = @transform_10, window_bounds = array<i64: 1, 128>}, {pipeline_mode = #tpu.pipeline_mode<synchronous>, transform_indices = @transform_11, window_bounds = array<i64: 2, 128>}]} {
    %c0 = arith.constant 0 : index
    %c0_0 = arith.constant 0 : index
    %0 = vector.load %arg1[%c0, %c0_0] : memref<128x128xbf16, #tpu.memory_space<vmem>>, vector<128x128xbf16>
    %c0_1 = arith.constant 0 : index
    %c0_2 = arith.constant 0 : index
    %1 = vector.load %arg2[%c0_1, %c0_2] : memref<128x128xbf16, #tpu.memory_space<vmem>>, vector<128x128xbf16>
    %cst = arith.constant dense<0.000000e+00> : vector<128x128xf32>
    %2 = tpu.matmul %0, %1, %cst {dimension_numbers = #tpu.dot_dimension_numbers<[1], [0], [0], [1], [0, 0, 1, 1], [], []>} : vector<128x128xbf16>, vector<128x128xbf16>, vector<128x128xf32> -> vector<128x128xf32>
    %c0_3 = arith.constant 0 : index
    %c0_4 = arith.constant 0 : index
    %3 = vector.load %arg3[%c0_3, %c0_4] : memref<1x128xf32, #tpu.memory_space<vmem>>, vector<1x128xf32>
    %4 = vector.broadcast %3 : vector<1x128xf32> to vector<128x128xf32>
    %5 = arith.addf %2, %4 : vector<128x128xf32>
    %cst_5 = arith.constant 0.000000e+00 : f32
    %6 = vector.broadcast %cst_5 : f32 to vector<128x128xf32>
    %7 = arith.cmpf oge, %5, %6 : vector<128x128xf32>
    %cst_6 = arith.constant 0.00999999977 : f32
    %8 = vector.broadcast %cst_6 : f32 to vector<128x128xf32>
    %9 = arith.mulf %8, %5 : vector<128x128xf32>
    %10 = arith.select %7, %5, %9 : vector<128x128xi1>, vector<128x128xf32>
    %cst_7 = arith.constant dense<0.000000e+00> : vector<128xf32>
    %11 = vector.multi_reduction <add>, %10, %cst_7 [0] : vector<128x128xf32> to vector<128xf32>
    %12 = vector.shape_cast %11 : vector<128xf32> to vector<1x128xf32>
    %cst_8 = arith.constant 1.280000e+02 : f32
    %13 = vector.broadcast %cst_8 : f32 to vector<1x128xf32>
    %14 = arith.divf %12, %13 : vector<1x128xf32>
    %15 = vector.broadcast %14 : vector<1x128xf32> to vector<128x128xf32>
    %16 = arith.subf %10, %15 : vector<128x128xf32>
    %17 = arith.mulf %16, %16 : vector<128x128xf32>
    %cst_9 = arith.constant dense<0.000000e+00> : vector<128xf32>
    %18 = vector.multi_reduction <add>, %17, %cst_9 [0] : vector<128x128xf32> to vector<128xf32>
    %19 = vector.shape_cast %18 : vector<128xf32> to vector<1x128xf32>
    %cst_10 = arith.constant 1.280000e+02 : f32
    %20 = vector.broadcast %cst_10 : f32 to vector<1x128xf32>
    %21 = arith.divf %19, %20 : vector<1x128xf32>
    %22 = vector.broadcast %14 : vector<1x128xf32> to vector<128x128xf32>
    %23 = arith.subf %10, %22 : vector<128x128xf32>
    %cst_11 = arith.constant 9.99999974E-6 : f32
    %24 = vector.broadcast %cst_11 : f32 to vector<1x128xf32>
    %25 = arith.addf %21, %24 : vector<1x128xf32>
    %26 = math.rsqrt %25 : vector<1x128xf32>
    %27 = vector.broadcast %26 : vector<1x128xf32> to vector<128x128xf32>
    %28 = arith.mulf %23, %27 : vector<128x128xf32>
    %cst_12 = arith.constant 0.000000e+00 : f32
    %29 = vector.broadcast %cst_12 : f32 to vector<200x128xf32>
    %c0_13 = arith.constant 0 : index
    %c0_14 = arith.constant 0 : index
    %30 = vector.load %arg13[%c0_13, %c0_14] : memref<200x128xf32, #tpu.memory_space<vmem>>, vector<200x128xf32>
    tpu.vector_store %arg13[%c0_13, %c0_14], %29 {strides = array<i32>} : memref<200x128xf32, #tpu.memory_space<vmem>>, vector<200x128xf32>,
    %31 = vector.extract_strided_slice %28 {offsets = [0, 0], sizes = [8, 128], strides = [1, 1]} : vector<128x128xf32> to vector<8x128xf32>
    %c11 = arith.constant 11 : index
    %c0_15 = arith.constant 0 : index
    %32 = vector.load %arg13[%c11, %c0_15] : memref<200x128xf32, #tpu.memory_space<vmem>>, vector<8x128xf32>
    tpu.vector_store %arg13[%c11, %c0_15], %31 {strides = array<i32>} : memref<200x128xf32, #tpu.memory_space<vmem>>, vector<8x128xf32>,
    %33 = vector.extract_strided_slice %28 {offsets = [8, 0], sizes = [8, 128], strides = [1, 1]} : vector<128x128xf32> to vector<8x128xf32>
    %c21 = arith.constant 21 : index
    %c0_16 = arith.constant 0 : index
    %34 = vector.load %arg13[%c21, %c0_16] : memref<200x128xf32, #tpu.memory_space<vmem>>, vector<8x128xf32>
    tpu.vector_store %arg13[%c21, %c0_16], %33 {strides = array<i32>} : memref<200x128xf32, #tpu.memory_space<vmem>>, vector<8x128xf32>,
    %35 = vector.extract_strided_slice %28 {offsets = [16, 0], sizes = [8, 128], strides = [1, 1]} : vector<128x128xf32> to vector<8x128xf32>
    %c31 = arith.constant 31 : index
    %c0_17 = arith.constant 0 : index
    %36 = vector.load %arg13[%c31, %c0_17] : memref<200x128xf32, #tpu.memory_space<vmem>>, vector<8x128xf32>
    tpu.vector_store %arg13[%c31, %c0_17], %35 {strides = array<i32>} : memref<200x128xf32, #tpu.memory_space<vmem>>, vector<8x128xf32>,
    %37 = vector.extract_strided_slice %28 {offsets = [24, 0], sizes = [8, 128], strides = [1, 1]} : vector<128x128xf32> to vector<8x128xf32>
    %c41 = arith.constant 41 : index
    %c0_18 = arith.constant 0 : index
    %38 = vector.load %arg13[%c41, %c0_18] : memref<200x128xf32, #tpu.memory_space<vmem>>, vector<8x128xf32>
    tpu.vector_store %arg13[%c41, %c0_18], %37 {strides = array<i32>} : memref<200x128xf32, #tpu.memory_space<vmem>>, vector<8x128xf32>,
    %39 = vector.extract_strided_slice %28 {offsets = [32, 0], sizes = [8, 128], strides = [1, 1]} : vector<128x128xf32> to vector<8x128xf32>
    %c51 = arith.constant 51 : index
    %c0_19 = arith.constant 0 : index
    %40 = vector.load %arg13[%c51, %c0_19] : memref<200x128xf32, #tpu.memory_space<vmem>>, vector<8x128xf32>
    tpu.vector_store %arg13[%c51, %c0_19], %39 {strides = array<i32>} : memref<200x128xf32, #tpu.memory_space<vmem>>, vector<8x128xf32>,
    %41 = vector.extract_strided_slice %28 {offsets = [40, 0], sizes = [8, 128], strides = [1, 1]} : vector<128x128xf32> to vector<8x128xf32>
    %c61 = arith.constant 61 : index
    %c0_20 = arith.constant 0 : index
    %42 = vector.load %arg13[%c61, %c0_20] : memref<200x128xf32, #tpu.memory_space<vmem>>, vector<8x128xf32>
    tpu.vector_store %arg13[%c61, %c0_20], %41 {strides = array<i32>} : memref<200x128xf32, #tpu.memory_space<vmem>>, vector<8x128xf32>,
    %43 = vector.extract_strided_slice %28 {offsets = [48, 0], sizes = [8, 128], strides = [1, 1]} : vector<128x128xf32> to vector<8x128xf32>
    %c71 = arith.constant 71 : index
    %c0_21 = arith.constant 0 : index
    %44 = vector.load %arg13[%c71, %c0_21] : memref<200x128xf32, #tpu.memory_space<vmem>>, vector<8x128xf32>
    tpu.vector_store %arg13[%c71, %c0_21], %43 {strides = array<i32>} : memref<200x128xf32, #tpu.memory_space<vmem>>, vector<8x128xf32>,
    %45 = vector.extract_strided_slice %28 {offsets = [56, 0], sizes = [8, 128], strides = [1, 1]} : vector<128x128xf32> to vector<8x128xf32>
    %c81 = arith.constant 81 : index
    %c0_22 = arith.constant 0 : index
    %46 = vector.load %arg13[%c81, %c0_22] : memref<200x128xf32, #tpu.memory_space<vmem>>, vector<8x128xf32>
    tpu.vector_store %arg13[%c81, %c0_22], %45 {strides = array<i32>} : memref<200x128xf32, #tpu.memory_space<vmem>>, vector<8x128xf32>,
    %47 = vector.extract_strided_slice %28 {offsets = [64, 0], sizes = [8, 128], strides = [1, 1]} : vector<128x128xf32> to vector<8x128xf32>
    %c111 = arith.constant 111 : index
    %c0_23 = arith.constant 0 : index
    %48 = vector.load %arg13[%c111, %c0_23] : memref<200x128xf32, #tpu.memory_space<vmem>>, vector<8x128xf32>
    tpu.vector_store %arg13[%c111, %c0_23], %47 {strides = array<i32>} : memref<200x128xf32, #tpu.memory_space<vmem>>, vector<8x128xf32>,
    %49 = vector.extract_strided_slice %28 {offsets = [72, 0], sizes = [8, 128], strides = [1, 1]} : vector<128x128xf32> to vector<8x128xf32>
    %c121 = arith.constant 121 : index
    %c0_24 = arith.constant 0 : index
    %50 = vector.load %arg13[%c121, %c0_24] : memref<200x128xf32, #tpu.memory_space<vmem>>, vector<8x128xf32>
    tpu.vector_store %arg13[%c121, %c0_24], %49 {strides = array<i32>} : memref<200x128xf32, #tpu.memory_space<vmem>>, vector<8x128xf32>,
    %51 = vector.extract_strided_slice %28 {offsets = [80, 0], sizes = [8, 128], strides = [1, 1]} : vector<128x128xf32> to vector<8x128xf32>
    %c131 = arith.constant 131 : index
    %c0_25 = arith.constant 0 : index
    %52 = vector.load %arg13[%c131, %c0_25] : memref<200x128xf32, #tpu.memory_space<vmem>>, vector<8x128xf32>
    tpu.vector_store %arg13[%c131, %c0_25], %51 {strides = array<i32>} : memref<200x128xf32, #tpu.memory_space<vmem>>, vector<8x128xf32>,
    %53 = vector.extract_strided_slice %28 {offsets = [88, 0], sizes = [8, 128], strides = [1, 1]} : vector<128x128xf32> to vector<8x128xf32>
    %c141 = arith.constant 141 : index
    %c0_26 = arith.constant 0 : index
    %54 = vector.load %arg13[%c141, %c0_26] : memref<200x128xf32, #tpu.memory_space<vmem>>, vector<8x128xf32>
    tpu.vector_store %arg13[%c141, %c0_26], %53 {strides = array<i32>} : memref<200x128xf32, #tpu.memory_space<vmem>>, vector<8x128xf32>,
    %55 = vector.extract_strided_slice %28 {offsets = [96, 0], sizes = [8, 128], strides = [1, 1]} : vector<128x128xf32> to vector<8x128xf32>
    %c151 = arith.constant 151 : index
    %c0_27 = arith.constant 0 : index
    %56 = vector.load %arg13[%c151, %c0_27] : memref<200x128xf32, #tpu.memory_space<vmem>>, vector<8x128xf32>
    tpu.vector_store %arg13[%c151, %c0_27], %55 {strides = array<i32>} : memref<200x128xf32, #tpu.memory_space<vmem>>, vector<8x128xf32>,
    %57 = vector.extract_strided_slice %28 {offsets = [104, 0], sizes = [8, 128], strides = [1, 1]} : vector<128x128xf32> to vector<8x128xf32>
    %c161 = arith.constant 161 : index
    %c0_28 = arith.constant 0 : index
    %58 = vector.load %arg13[%c161, %c0_28] : memref<200x128xf32, #tpu.memory_space<vmem>>, vector<8x128xf32>
    tpu.vector_store %arg13[%c161, %c0_28], %57 {strides = array<i32>} : memref<200x128xf32, #tpu.memory_space<vmem>>, vector<8x128xf32>,
    %59 = vector.extract_strided_slice %28 {offsets = [112, 0], sizes = [8, 128], strides = [1, 1]} : vector<128x128xf32> to vector<8x128xf32>
    %c171 = arith.constant 171 : index
    %c0_29 = arith.constant 0 : index
    %60 = vector.load %arg13[%c171, %c0_29] : memref<200x128xf32, #tpu.memory_space<vmem>>, vector<8x128xf32>
    tpu.vector_store %arg13[%c171, %c0_29], %59 {strides = array<i32>} : memref<200x128xf32, #tpu.memory_space<vmem>>, vector<8x128xf32>,
    %61 = vector.extract_strided_slice %28 {offsets = [120, 0], sizes = [8, 128], strides = [1, 1]} : vector<128x128xf32> to vector<8x128xf32>
    %c181 = arith.constant 181 : index
    %c0_30 = arith.constant 0 : index
    %62 = vector.load %arg13[%c181, %c0_30] : memref<200x128xf32, #tpu.memory_space<vmem>>, vector<8x128xf32>
    tpu.vector_store %arg13[%c181, %c0_30], %61 {strides = array<i32>} : memref<200x128xf32, #tpu.memory_space<vmem>>, vector<8x128xf32>,
    %c0_31 = arith.constant 0 : index
    %c0_32 = arith.constant 0 : index
    %63 = tpu.strided_load %arg13[%c0_31, %c0_32] {strides = array<i32: 2, 1>} : memref<200x128xf32, #tpu.memory_space<vmem>>, vector<4x128xf32>
    %c20 = arith.constant 20 : index
    %c0_33 = arith.constant 0 : index
    %64 = tpu.strided_load %arg13[%c20, %c0_33] {strides = array<i32: 2, 1>} : memref<200x128xf32, #tpu.memory_space<vmem>>, vector<4x128xf32>
    %c40 = arith.constant 40 : index
    %c0_34 = arith.constant 0 : index
    %65 = tpu.strided_load %arg13[%c40, %c0_34] {strides = array<i32: 2, 1>} : memref<200x128xf32, #tpu.memory_space<vmem>>, vector<4x128xf32>
    %c60 = arith.constant 60 : index
    %c0_35 = arith.constant 0 : index
    %66 = tpu.strided_load %arg13[%c60, %c0_35] {strides = array<i32: 2, 1>} : memref<200x128xf32, #tpu.memory_space<vmem>>, vector<4x128xf32>
    %c100 = arith.constant 100 : index
    %c0_36 = arith.constant 0 : index
    %67 = tpu.strided_load %arg13[%c100, %c0_36] {strides = array<i32: 2, 1>} : memref<200x128xf32, #tpu.memory_space<vmem>>, vector<4x128xf32>
    %c120 = arith.constant 120 : index
    %c0_37 = arith.constant 0 : index
    %68 = tpu.strided_load %arg13[%c120, %c0_37] {strides = array<i32: 2, 1>} : memref<200x128xf32, #tpu.memory_space<vmem>>, vector<4x128xf32>
    %c140 = arith.constant 140 : index
    %c0_38 = arith.constant 0 : index
    %69 = tpu.strided_load %arg13[%c140, %c0_38] {strides = array<i32: 2, 1>} : memref<200x128xf32, #tpu.memory_space<vmem>>, vector<4x128xf32>
    %c160 = arith.constant 160 : index
    %c0_39 = arith.constant 0 : index
    %70 = tpu.strided_load %arg13[%c160, %c0_39] {strides = array<i32: 2, 1>} : memref<200x128xf32, #tpu.memory_space<vmem>>, vector<4x128xf32>
    %71 = tpu.concatenate %63, %64, %65, %66, %67, %68, %69, %70 in 0 : vector<4x128xf32>, vector<4x128xf32>, vector<4x128xf32>, vector<4x128xf32>, vector<4x128xf32>, vector<4x128xf32>, vector<4x128xf32>, vector<4x128xf32> -> vector<32x128xf32>
    %c1 = arith.constant 1 : index
    %c0_40 = arith.constant 0 : index
    %72 = tpu.strided_load %arg13[%c1, %c0_40] {strides = array<i32: 2, 1>} : memref<200x128xf32, #tpu.memory_space<vmem>>, vector<4x128xf32>
    %c21_41 = arith.constant 21 : index
    %c0_42 = arith.constant 0 : index
    %73 = tpu.strided_load %arg13[%c21_41, %c0_42] {strides = array<i32: 2, 1>} : memref<200x128xf32, #tpu.memory_space<vmem>>, vector<4x128xf32>
    %c41_43 = arith.constant 41 : index
    %c0_44 = arith.constant 0 : index
    %74 = tpu.strided_load %arg13[%c41_43, %c0_44] {strides = array<i32: 2, 1>} : memref<200x128xf32, #tpu.memory_space<vmem>>, vector<4x128xf32>
    %c61_45 = arith.constant 61 : index
    %c0_46 = arith.constant 0 : index
    %75 = tpu.strided_load %arg13[%c61_45, %c0_46] {strides = array<i32: 2, 1>} : memref<200x128xf32, #tpu.memory_space<vmem>>, vector<4x128xf32>
    %c101 = arith.constant 101 : index
    %c0_47 = arith.constant 0 : index
    %76 = tpu.strided_load %arg13[%c101, %c0_47] {strides = array<i32: 2, 1>} : memref<200x128xf32, #tpu.memory_space<vmem>>, vector<4x128xf32>
    %c121_48 = arith.constant 121 : index
    %c0_49 = arith.constant 0 : index
    %77 = tpu.strided_load %arg13[%c121_48, %c0_49] {strides = array<i32: 2, 1>} : memref<200x128xf32, #tpu.memory_space<vmem>>, vector<4x128xf32>
    %c141_50 = arith.constant 141 : index
    %c0_51 = arith.constant 0 : index
    %78 = tpu.strided_load %arg13[%c141_50, %c0_51] {strides = array<i32: 2, 1>} : memref<200x128xf32, #tpu.memory_space<vmem>>, vector<4x128xf32>
    %c161_52 = arith.constant 161 : index
    %c0_53 = arith.constant 0 : index
    %79 = tpu.strided_load %arg13[%c161_52, %c0_53] {strides = array<i32: 2, 1>} : memref<200x128xf32, #tpu.memory_space<vmem>>, vector<4x128xf32>
    %80 = tpu.concatenate %72, %73, %74, %75, %76, %77, %78, %79 in 0 : vector<4x128xf32>, vector<4x128xf32>, vector<4x128xf32>, vector<4x128xf32>, vector<4x128xf32>, vector<4x128xf32>, vector<4x128xf32>, vector<4x128xf32> -> vector<32x128xf32>
    %c2 = arith.constant 2 : index
    %c0_54 = arith.constant 0 : index
    %81 = tpu.strided_load %arg13[%c2, %c0_54] {strides = array<i32: 2, 1>} : memref<200x128xf32, #tpu.memory_space<vmem>>, vector<4x128xf32>
    %c22 = arith.constant 22 : index
    %c0_55 = arith.constant 0 : index
    %82 = tpu.strided_load %arg13[%c22, %c0_55] {strides = array<i32: 2, 1>} : memref<200x128xf32, #tpu.memory_space<vmem>>, vector<4x128xf32>
    %c42 = arith.constant 42 : index
    %c0_56 = arith.constant 0 : index
    %83 = tpu.strided_load %arg13[%c42, %c0_56] {strides = array<i32: 2, 1>} : memref<200x128xf32, #tpu.memory_space<vmem>>, vector<4x128xf32>
    %c62 = arith.constant 62 : index
    %c0_57 = arith.constant 0 : index
    %84 = tpu.strided_load %arg13[%c62, %c0_57] {strides = array<i32: 2, 1>} : memref<200x128xf32, #tpu.memory_space<vmem>>, vector<4x128xf32>
    %c102 = arith.constant 102 : index
    %c0_58 = arith.constant 0 : index
    %85 = tpu.strided_load %arg13[%c102, %c0_58] {strides = array<i32: 2, 1>} : memref<200x128xf32, #tpu.memory_space<vmem>>, vector<4x128xf32>
    %c122 = arith.constant 122 : index
    %c0_59 = arith.constant 0 : index
    %86 = tpu.strided_load %arg13[%c122, %c0_59] {strides = array<i32: 2, 1>} : memref<200x128xf32, #tpu.memory_space<vmem>>, vector<4x128xf32>
    %c142 = arith.constant 142 : index
    %c0_60 = arith.constant 0 : index
    %87 = tpu.strided_load %arg13[%c142, %c0_60] {strides = array<i32: 2, 1>} : memref<200x128xf32, #tpu.memory_space<vmem>>, vector<4x128xf32>
    %c162 = arith.constant 162 : index
    %c0_61 = arith.constant 0 : index
    %88 = tpu.strided_load %arg13[%c162, %c0_61] {strides = array<i32: 2, 1>} : memref<200x128xf32, #tpu.memory_space<vmem>>, vector<4x128xf32>
    %89 = tpu.concatenate %81, %82, %83, %84, %85, %86, %87, %88 in 0 : vector<4x128xf32>, vector<4x128xf32>, vector<4x128xf32>, vector<4x128xf32>, vector<4x128xf32>, vector<4x128xf32>, vector<4x128xf32>, vector<4x128xf32> -> vector<32x128xf32>
    %c10 = arith.constant 10 : index
    %c0_62 = arith.constant 0 : index
    %90 = tpu.strided_load %arg13[%c10, %c0_62] {strides = array<i32: 2, 1>} : memref<200x128xf32, #tpu.memory_space<vmem>>, vector<4x128xf32>
    %c30 = arith.constant 30 : index
    %c0_63 = arith.constant 0 : index
    %91 = tpu.strided_load %arg13[%c30, %c0_63] {strides = array<i32: 2, 1>} : memref<200x128xf32, #tpu.memory_space<vmem>>, vector<4x128xf32>
    %c50 = arith.constant 50 : index
    %c0_64 = arith.constant 0 : index
    %92 = tpu.strided_load %arg13[%c50, %c0_64] {strides = array<i32: 2, 1>} : memref<200x128xf32, #tpu.memory_space<vmem>>, vector<4x128xf32>
    %c70 = arith.constant 70 : index
    %c0_65 = arith.constant 0 : index
    %93 = tpu.strided_load %arg13[%c70, %c0_65] {strides = array<i32: 2, 1>} : memref<200x128xf32, #tpu.memory_space<vmem>>, vector<4x128xf32>
    %c110 = arith.constant 110 : index
    %c0_66 = arith.constant 0 : index
    %94 = tpu.strided_load %arg13[%c110, %c0_66] {strides = array<i32: 2, 1>} : memref<200x128xf32, #tpu.memory_space<vmem>>, vector<4x128xf32>
    %c130 = arith.constant 130 : index
    %c0_67 = arith.constant 0 : index
    %95 = tpu.strided_load %arg13[%c130, %c0_67] {strides = array<i32: 2, 1>} : memref<200x128xf32, #tpu.memory_space<vmem>>, vector<4x128xf32>
    %c150 = arith.constant 150 : index
    %c0_68 = arith.constant 0 : index
    %96 = tpu.strided_load %arg13[%c150, %c0_68] {strides = array<i32: 2, 1>} : memref<200x128xf32, #tpu.memory_space<vmem>>, vector<4x128xf32>
    %c170 = arith.constant 170 : index
    %c0_69 = arith.constant 0 : index
    %97 = tpu.strided_load %arg13[%c170, %c0_69] {strides = array<i32: 2, 1>} : memref<200x128xf32, #tpu.memory_space<vmem>>, vector<4x128xf32>
    %98 = tpu.concatenate %90, %91, %92, %93, %94, %95, %96, %97 in 0 : vector<4x128xf32>, vector<4x128xf32>, vector<4x128xf32>, vector<4x128xf32>, vector<4x128xf32>, vector<4x128xf32>, vector<4x128xf32>, vector<4x128xf32> -> vector<32x128xf32>
    %c11_70 = arith.constant 11 : index
    %c0_71 = arith.constant 0 : index
    %99 = tpu.strided_load %arg13[%c11_70, %c0_71] {strides = array<i32: 2, 1>} : memref<200x128xf32, #tpu.memory_space<vmem>>, vector<4x128xf32>
    %c31_72 = arith.constant 31 : index
    %c0_73 = arith.constant 0 : index
    %100 = tpu.strided_load %arg13[%c31_72, %c0_73] {strides = array<i32: 2, 1>} : memref<200x128xf32, #tpu.memory_space<vmem>>, vector<4x128xf32>
    %c51_74 = arith.constant 51 : index
    %c0_75 = arith.constant 0 : index
    %101 = tpu.strided_load %arg13[%c51_74, %c0_75] {strides = array<i32: 2, 1>} : memref<200x128xf32, #tpu.memory_space<vmem>>, vector<4x128xf32>
    %c71_76 = arith.constant 71 : index
    %c0_77 = arith.constant 0 : index
    %102 = tpu.strided_load %arg13[%c71_76, %c0_77] {strides = array<i32: 2, 1>} : memref<200x128xf32, #tpu.memory_space<vmem>>, vector<4x128xf32>
    %c111_78 = arith.constant 111 : index
    %c0_79 = arith.constant 0 : index
    %103 = tpu.strided_load %arg13[%c111_78, %c0_79] {strides = array<i32: 2, 1>} : memref<200x128xf32, #tpu.memory_space<vmem>>, vector<4x128xf32>
    %c131_80 = arith.constant 131 : index
    %c0_81 = arith.constant 0 : index
    %104 = tpu.strided_load %arg13[%c131_80, %c0_81] {strides = array<i32: 2, 1>} : memref<200x128xf32, #tpu.memory_space<vmem>>, vector<4x128xf32>
    %c151_82 = arith.constant 151 : index
    %c0_83 = arith.constant 0 : index
    %105 = tpu.strided_load %arg13[%c151_82, %c0_83] {strides = array<i32: 2, 1>} : memref<200x128xf32, #tpu.memory_space<vmem>>, vector<4x128xf32>
    %c171_84 = arith.constant 171 : index
    %c0_85 = arith.constant 0 : index
    %106 = tpu.strided_load %arg13[%c171_84, %c0_85] {strides = array<i32: 2, 1>} : memref<200x128xf32, #tpu.memory_space<vmem>>, vector<4x128xf32>
    %107 = tpu.concatenate %99, %100, %101, %102, %103, %104, %105, %106 in 0 : vector<4x128xf32>, vector<4x128xf32>, vector<4x128xf32>, vector<4x128xf32>, vector<4x128xf32>, vector<4x128xf32>, vector<4x128xf32>, vector<4x128xf32> -> vector<32x128xf32>
    %c12 = arith.constant 12 : index
    %c0_86 = arith.constant 0 : index
    %108 = tpu.strided_load %arg13[%c12, %c0_86] {strides = array<i32: 2, 1>} : memref<200x128xf32, #tpu.memory_space<vmem>>, vector<4x128xf32>
    %c32 = arith.constant 32 : index
    %c0_87 = arith.constant 0 : index
    %109 = tpu.strided_load %arg13[%c32, %c0_87] {strides = array<i32: 2, 1>} : memref<200x128xf32, #tpu.memory_space<vmem>>, vector<4x128xf32>
    %c52 = arith.constant 52 : index
    %c0_88 = arith.constant 0 : index
    %110 = tpu.strided_load %arg13[%c52, %c0_88] {strides = array<i32: 2, 1>} : memref<200x128xf32, #tpu.memory_space<vmem>>, vector<4x128xf32>
    %c72 = arith.constant 72 : index
    %c0_89 = arith.constant 0 : index
    %111 = tpu.strided_load %arg13[%c72, %c0_89] {strides = array<i32: 2, 1>} : memref<200x128xf32, #tpu.memory_space<vmem>>, vector<4x128xf32>
    %c112 = arith.constant 112 : index
    %c0_90 = arith.constant 0 : index
    %112 = tpu.strided_load %arg13[%c112, %c0_90] {strides = array<i32: 2, 1>} : memref<200x128xf32, #tpu.memory_space<vmem>>, vector<4x128xf32>
    %c132 = arith.constant 132 : index
    %c0_91 = arith.constant 0 : index
    %113 = tpu.strided_load %arg13[%c132, %c0_91] {strides = array<i32: 2, 1>} : memref<200x128xf32, #tpu.memory_space<vmem>>, vector<4x128xf32>
    %c152 = arith.constant 152 : index
    %c0_92 = arith.constant 0 : index
    %114 = tpu.strided_load %arg13[%c152, %c0_92] {strides = array<i32: 2, 1>} : memref<200x128xf32, #tpu.memory_space<vmem>>, vector<4x128xf32>
    %c172 = arith.constant 172 : index
    %c0_93 = arith.constant 0 : index
    %115 = tpu.strided_load %arg13[%c172, %c0_93] {strides = array<i32: 2, 1>} : memref<200x128xf32, #tpu.memory_space<vmem>>, vector<4x128xf32>
    %116 = tpu.concatenate %108, %109, %110, %111, %112, %113, %114, %115 in 0 : vector<4x128xf32>, vector<4x128xf32>, vector<4x128xf32>, vector<4x128xf32>, vector<4x128xf32>, vector<4x128xf32>, vector<4x128xf32>, vector<4x128xf32> -> vector<32x128xf32>
    %c20_94 = arith.constant 20 : index
    %c0_95 = arith.constant 0 : index
    %117 = tpu.strided_load %arg13[%c20_94, %c0_95] {strides = array<i32: 2, 1>} : memref<200x128xf32, #tpu.memory_space<vmem>>, vector<4x128xf32>
    %c40_96 = arith.constant 40 : index
    %c0_97 = arith.constant 0 : index
    %118 = tpu.strided_load %arg13[%c40_96, %c0_97] {strides = array<i32: 2, 1>} : memref<200x128xf32, #tpu.memory_space<vmem>>, vector<4x128xf32>
    %c60_98 = arith.constant 60 : index
    %c0_99 = arith.constant 0 : index
    %119 = tpu.strided_load %arg13[%c60_98, %c0_99] {strides = array<i32: 2, 1>} : memref<200x128xf32, #tpu.memory_space<vmem>>, vector<4x128xf32>
    %c80 = arith.constant 80 : index
    %c0_100 = arith.constant 0 : index
    %120 = tpu.strided_load %arg13[%c80, %c0_100] {strides = array<i32: 2, 1>} : memref<200x128xf32, #tpu.memory_space<vmem>>, vector<4x128xf32>
    %c120_101 = arith.constant 120 : index
    %c0_102 = arith.constant 0 : index
    %121 = tpu.strided_load %arg13[%c120_101, %c0_102] {strides = array<i32: 2, 1>} : memref<200x128xf32, #tpu.memory_space<vmem>>, vector<4x128xf32>
    %c140_103 = arith.constant 140 : index
    %c0_104 = arith.constant 0 : index
    %122 = tpu.strided_load %arg13[%c140_103, %c0_104] {strides = array<i32: 2, 1>} : memref<200x128xf32, #tpu.memory_space<vmem>>, vector<4x128xf32>
    %c160_105 = arith.constant 160 : index
    %c0_106 = arith.constant 0 : index
    %123 = tpu.strided_load %arg13[%c160_105, %c0_106] {strides = array<i32: 2, 1>} : memref<200x128xf32, #tpu.memory_space<vmem>>, vector<4x128xf32>
    %c180 = arith.constant 180 : index
    %c0_107 = arith.constant 0 : index
    %124 = tpu.strided_load %arg13[%c180, %c0_107] {strides = array<i32: 2, 1>} : memref<200x128xf32, #tpu.memory_space<vmem>>, vector<4x128xf32>
    %125 = tpu.concatenate %117, %118, %119, %120, %121, %122, %123, %124 in 0 : vector<4x128xf32>, vector<4x128xf32>, vector<4x128xf32>, vector<4x128xf32>, vector<4x128xf32>, vector<4x128xf32>, vector<4x128xf32>, vector<4x128xf32> -> vector<32x128xf32>
    %c21_108 = arith.constant 21 : index
    %c0_109 = arith.constant 0 : index
    %126 = tpu.strided_load %arg13[%c21_108, %c0_109] {strides = array<i32: 2, 1>} : memref<200x128xf32, #tpu.memory_space<vmem>>, vector<4x128xf32>
    %c41_110 = arith.constant 41 : index
    %c0_111 = arith.constant 0 : index
    %127 = tpu.strided_load %arg13[%c41_110, %c0_111] {strides = array<i32: 2, 1>} : memref<200x128xf32, #tpu.memory_space<vmem>>, vector<4x128xf32>
    %c61_112 = arith.constant 61 : index
    %c0_113 = arith.constant 0 : index
    %128 = tpu.strided_load %arg13[%c61_112, %c0_113] {strides = array<i32: 2, 1>} : memref<200x128xf32, #tpu.memory_space<vmem>>, vector<4x128xf32>
    %c81_114 = arith.constant 81 : index
    %c0_115 = arith.constant 0 : index
    %129 = tpu.strided_load %arg13[%c81_114, %c0_115] {strides = array<i32: 2, 1>} : memref<200x128xf32, #tpu.memory_space<vmem>>, vector<4x128xf32>
    %c121_116 = arith.constant 121 : index
    %c0_117 = arith.constant 0 : index
    %130 = tpu.strided_load %arg13[%c121_116, %c0_117] {strides = array<i32: 2, 1>} : memref<200x128xf32, #tpu.memory_space<vmem>>, vector<4x128xf32>
    %c141_118 = arith.constant 141 : index
    %c0_119 = arith.constant 0 : index
    %131 = tpu.strided_load %arg13[%c141_118, %c0_119] {strides = array<i32: 2, 1>} : memref<200x128xf32, #tpu.memory_space<vmem>>, vector<4x128xf32>
    %c161_120 = arith.constant 161 : index
    %c0_121 = arith.constant 0 : index
    %132 = tpu.strided_load %arg13[%c161_120, %c0_121] {strides = array<i32: 2, 1>} : memref<200x128xf32, #tpu.memory_space<vmem>>, vector<4x128xf32>
    %c181_122 = arith.constant 181 : index
    %c0_123 = arith.constant 0 : index
    %133 = tpu.strided_load %arg13[%c181_122, %c0_123] {strides = array<i32: 2, 1>} : memref<200x128xf32, #tpu.memory_space<vmem>>, vector<4x128xf32>
    %134 = tpu.concatenate %126, %127, %128, %129, %130, %131, %132, %133 in 0 : vector<4x128xf32>, vector<4x128xf32>, vector<4x128xf32>, vector<4x128xf32>, vector<4x128xf32>, vector<4x128xf32>, vector<4x128xf32>, vector<4x128xf32> -> vector<32x128xf32>
    %c22_124 = arith.constant 22 : index
    %c0_125 = arith.constant 0 : index
    %135 = tpu.strided_load %arg13[%c22_124, %c0_125] {strides = array<i32: 2, 1>} : memref<200x128xf32, #tpu.memory_space<vmem>>, vector<4x128xf32>
    %c42_126 = arith.constant 42 : index
    %c0_127 = arith.constant 0 : index
    %136 = tpu.strided_load %arg13[%c42_126, %c0_127] {strides = array<i32: 2, 1>} : memref<200x128xf32, #tpu.memory_space<vmem>>, vector<4x128xf32>
    %c62_128 = arith.constant 62 : index
    %c0_129 = arith.constant 0 : index
    %137 = tpu.strided_load %arg13[%c62_128, %c0_129] {strides = array<i32: 2, 1>} : memref<200x128xf32, #tpu.memory_space<vmem>>, vector<4x128xf32>
    %c82 = arith.constant 82 : index
    %c0_130 = arith.constant 0 : index
    %138 = tpu.strided_load %arg13[%c82, %c0_130] {strides = array<i32: 2, 1>} : memref<200x128xf32, #tpu.memory_space<vmem>>, vector<4x128xf32>
    %c122_131 = arith.constant 122 : index
    %c0_132 = arith.constant 0 : index
    %139 = tpu.strided_load %arg13[%c122_131, %c0_132] {strides = array<i32: 2, 1>} : memref<200x128xf32, #tpu.memory_space<vmem>>, vector<4x128xf32>
    %c142_133 = arith.constant 142 : index
    %c0_134 = arith.constant 0 : index
    %140 = tpu.strided_load %arg13[%c142_133, %c0_134] {strides = array<i32: 2, 1>} : memref<200x128xf32, #tpu.memory_space<vmem>>, vector<4x128xf32>
    %c162_135 = arith.constant 162 : index
    %c0_136 = arith.constant 0 : index
    %141 = tpu.strided_load %arg13[%c162_135, %c0_136] {strides = array<i32: 2, 1>} : memref<200x128xf32, #tpu.memory_space<vmem>>, vector<4x128xf32>
    %c182 = arith.constant 182 : index
    %c0_137 = arith.constant 0 : index
    %142 = tpu.strided_load %arg13[%c182, %c0_137] {strides = array<i32: 2, 1>} : memref<200x128xf32, #tpu.memory_space<vmem>>, vector<4x128xf32>
    %143 = tpu.concatenate %135, %136, %137, %138, %139, %140, %141, %142 in 0 : vector<4x128xf32>, vector<4x128xf32>, vector<4x128xf32>, vector<4x128xf32>, vector<4x128xf32>, vector<4x128xf32>, vector<4x128xf32>, vector<4x128xf32> -> vector<32x128xf32>
    %144 = tpu.concatenate %71, %80, %89, %98, %107, %116, %125, %134, %143 in 1 : vector<32x128xf32>, vector<32x128xf32>, vector<32x128xf32>, vector<32x128xf32>, vector<32x128xf32>, vector<32x128xf32>, vector<32x128xf32>, vector<32x128xf32>, vector<32x128xf32> -> vector<32x1152xf32>
    %145 = arith.truncf %144 : vector<32x1152xf32> to vector<32x1152xbf16>
    %c0_138 = arith.constant 0 : index
    %c0_139 = arith.constant 0 : index
    %146 = vector.load %arg4[%c0_138, %c0_139] : memref<1152x128xbf16, #tpu.memory_space<vmem>>, vector<1152x128xbf16>
    %cst_140 = arith.constant dense<0.000000e+00> : vector<32x128xf32>
    %147 = tpu.matmul %145, %146, %cst_140 {dimension_numbers = #tpu.dot_dimension_numbers<[1], [0], [0], [1], [0, 0, 1, 1], [], []>} : vector<32x1152xbf16>, vector<1152x128xbf16>, vector<32x128xf32> -> vector<32x128xf32>
    %c0_141 = arith.constant 0 : index
    %c0_142 = arith.constant 0 : index
    %148 = vector.load %arg5[%c0_141, %c0_142] : memref<1x128xf32, #tpu.memory_space<vmem>>, vector<1x128xf32>
    %149 = vector.broadcast %148 : vector<1x128xf32> to vector<32x128xf32>
    %150 = arith.addf %147, %149 : vector<32x128xf32>
    %cst_143 = arith.constant 0.000000e+00 : f32
    %151 = vector.broadcast %cst_143 : f32 to vector<32x128xf32>
    %152 = arith.cmpf oge, %150, %151 : vector<32x128xf32>
    %cst_144 = arith.constant 0.00999999977 : f32
    %153 = vector.broadcast %cst_144 : f32 to vector<32x128xf32>
    %154 = arith.mulf %153, %150 : vector<32x128xf32>
    %155 = arith.select %152, %150, %154 : vector<32x128xi1>, vector<32x128xf32>
    %cst_145 = arith.constant dense<0.000000e+00> : vector<128xf32>
    %156 = vector.multi_reduction <add>, %155, %cst_145 [0] : vector<32x128xf32> to vector<128xf32>
    %157 = vector.shape_cast %156 : vector<128xf32> to vector<1x128xf32>
    %cst_146 = arith.constant 3.200000e+01 : f32
    %158 = vector.broadcast %cst_146 : f32 to vector<1x128xf32>
    %159 = arith.divf %157, %158 : vector<1x128xf32>
    %160 = vector.broadcast %159 : vector<1x128xf32> to vector<32x128xf32>
    %161 = arith.subf %155, %160 : vector<32x128xf32>
    %162 = arith.mulf %161, %161 : vector<32x128xf32>
    %cst_147 = arith.constant dense<0.000000e+00> : vector<128xf32>
    %163 = vector.multi_reduction <add>, %162, %cst_147 [0] : vector<32x128xf32> to vector<128xf32>
    %164 = vector.shape_cast %163 : vector<128xf32> to vector<1x128xf32>
    %cst_148 = arith.constant 3.200000e+01 : f32
    %165 = vector.broadcast %cst_148 : f32 to vector<1x128xf32>
    %166 = arith.divf %164, %165 : vector<1x128xf32>
    %167 = vector.broadcast %159 : vector<1x128xf32> to vector<32x128xf32>
    %168 = arith.subf %155, %167 : vector<32x128xf32>
    %cst_149 = arith.constant 9.99999974E-6 : f32
    %169 = vector.broadcast %cst_149 : f32 to vector<1x128xf32>
    %170 = arith.addf %166, %169 : vector<1x128xf32>
    %171 = math.rsqrt %170 : vector<1x128xf32>
    %172 = vector.broadcast %171 : vector<1x128xf32> to vector<32x128xf32>
    %173 = arith.mulf %168, %172 : vector<32x128xf32>
    %174 = vector.extract_strided_slice %173 {offsets = [0, 0], sizes = [2, 128], strides = [1, 1]} : vector<32x128xf32> to vector<2x128xf32>
    %cst_150 = arith.constant dense<0.000000e+00> : vector<128xf32>
    %175 = vector.multi_reduction <add>, %174, %cst_150 [0] : vector<2x128xf32> to vector<128xf32>
    %176 = vector.shape_cast %175 : vector<128xf32> to vector<1x128xf32>
    %177 = vector.extract_strided_slice %173 {offsets = [4, 0], sizes = [2, 128], strides = [1, 1]} : vector<32x128xf32> to vector<2x128xf32>
    %cst_151 = arith.constant dense<0.000000e+00> : vector<128xf32>
    %178 = vector.multi_reduction <add>, %177, %cst_151 [0] : vector<2x128xf32> to vector<128xf32>
    %179 = vector.shape_cast %178 : vector<128xf32> to vector<1x128xf32>
    %180 = arith.addf %176, %179 : vector<1x128xf32>
    %181 = vector.extract_strided_slice %173 {offsets = [1, 0], sizes = [3, 128], strides = [1, 1]} : vector<32x128xf32> to vector<3x128xf32>
    %cst_152 = arith.constant dense<0.000000e+00> : vector<128xf32>
    %182 = vector.multi_reduction <add>, %181, %cst_152 [0] : vector<3x128xf32> to vector<128xf32>
    %183 = vector.shape_cast %182 : vector<128xf32> to vector<1x128xf32>
    %184 = vector.extract_strided_slice %173 {offsets = [5, 0], sizes = [3, 128], strides = [1, 1]} : vector<32x128xf32> to vector<3x128xf32>
    %cst_153 = arith.constant dense<0.000000e+00> : vector<128xf32>
    %185 = vector.multi_reduction <add>, %184, %cst_153 [0] : vector<3x128xf32> to vector<128xf32>
    %186 = vector.shape_cast %185 : vector<128xf32> to vector<1x128xf32>
    %187 = arith.addf %183, %186 : vector<1x128xf32>
    %188 = vector.extract_strided_slice %173 {offsets = [4, 0], sizes = [2, 128], strides = [1, 1]} : vector<32x128xf32> to vector<2x128xf32>
    %cst_154 = arith.constant dense<0.000000e+00> : vector<128xf32>
    %189 = vector.multi_reduction <add>, %188, %cst_154 [0] : vector<2x128xf32> to vector<128xf32>
    %190 = vector.shape_cast %189 : vector<128xf32> to vector<1x128xf32>
    %191 = vector.extract_strided_slice %173 {offsets = [8, 0], sizes = [2, 128], strides = [1, 1]} : vector<32x128xf32> to vector<2x128xf32>
    %cst_155 = arith.constant dense<0.000000e+00> : vector<128xf32>
    %192 = vector.multi_reduction <add>, %191, %cst_155 [0] : vector<2x128xf32> to vector<128xf32>
    %193 = vector.shape_cast %192 : vector<128xf32> to vector<1x128xf32>
    %194 = arith.addf %190, %193 : vector<1x128xf32>
    %195 = vector.extract_strided_slice %173 {offsets = [12, 0], sizes = [2, 128], strides = [1, 1]} : vector<32x128xf32> to vector<2x128xf32>
    %cst_156 = arith.constant dense<0.000000e+00> : vector<128xf32>
    %196 = vector.multi_reduction <add>, %195, %cst_156 [0] : vector<2x128xf32> to vector<128xf32>
    %197 = vector.shape_cast %196 : vector<128xf32> to vector<1x128xf32>
    %198 = arith.addf %194, %197 : vector<1x128xf32>
    %199 = vector.extract_strided_slice %173 {offsets = [5, 0], sizes = [3, 128], strides = [1, 1]} : vector<32x128xf32> to vector<3x128xf32>
    %cst_157 = arith.constant dense<0.000000e+00> : vector<128xf32>
    %200 = vector.multi_reduction <add>, %199, %cst_157 [0] : vector<3x128xf32> to vector<128xf32>
    %201 = vector.shape_cast %200 : vector<128xf32> to vector<1x128xf32>
    %202 = vector.extract_strided_slice %173 {offsets = [9, 0], sizes = [3, 128], strides = [1, 1]} : vector<32x128xf32> to vector<3x128xf32>
    %cst_158 = arith.constant dense<0.000000e+00> : vector<128xf32>
    %203 = vector.multi_reduction <add>, %202, %cst_158 [0] : vector<3x128xf32> to vector<128xf32>
    %204 = vector.shape_cast %203 : vector<128xf32> to vector<1x128xf32>
    %205 = arith.addf %201, %204 : vector<1x128xf32>
    %206 = vector.extract_strided_slice %173 {offsets = [13, 0], sizes = [3, 128], strides = [1, 1]} : vector<32x128xf32> to vector<3x128xf32>
    %cst_159 = arith.constant dense<0.000000e+00> : vector<128xf32>
    %207 = vector.multi_reduction <add>, %206, %cst_159 [0] : vector<3x128xf32> to vector<128xf32>
    %208 = vector.shape_cast %207 : vector<128xf32> to vector<1x128xf32>
    %209 = arith.addf %205, %208 : vector<1x128xf32>
    %210 = vector.extract_strided_slice %173 {offsets = [16, 0], sizes = [2, 128], strides = [1, 1]} : vector<32x128xf32> to vector<2x128xf32>
    %cst_160 = arith.constant dense<0.000000e+00> : vector<128xf32>
    %211 = vector.multi_reduction <add>, %210, %cst_160 [0] : vector<2x128xf32> to vector<128xf32>
    %212 = vector.shape_cast %211 : vector<128xf32> to vector<1x128xf32>
    %213 = vector.extract_strided_slice %173 {offsets = [20, 0], sizes = [2, 128], strides = [1, 1]} : vector<32x128xf32> to vector<2x128xf32>
    %cst_161 = arith.constant dense<0.000000e+00> : vector<128xf32>
    %214 = vector.multi_reduction <add>, %213, %cst_161 [0] : vector<2x128xf32> to vector<128xf32>
    %215 = vector.shape_cast %214 : vector<128xf32> to vector<1x128xf32>
    %216 = arith.addf %212, %215 : vector<1x128xf32>
    %217 = vector.extract_strided_slice %173 {offsets = [17, 0], sizes = [3, 128], strides = [1, 1]} : vector<32x128xf32> to vector<3x128xf32>
    %cst_162 = arith.constant dense<0.000000e+00> : vector<128xf32>
    %218 = vector.multi_reduction <add>, %217, %cst_162 [0] : vector<3x128xf32> to vector<128xf32>
    %219 = vector.shape_cast %218 : vector<128xf32> to vector<1x128xf32>
    %220 = vector.extract_strided_slice %173 {offsets = [21, 0], sizes = [3, 128], strides = [1, 1]} : vector<32x128xf32> to vector<3x128xf32>
    %cst_163 = arith.constant dense<0.000000e+00> : vector<128xf32>
    %221 = vector.multi_reduction <add>, %220, %cst_163 [0] : vector<3x128xf32> to vector<128xf32>
    %222 = vector.shape_cast %221 : vector<128xf32> to vector<1x128xf32>
    %223 = arith.addf %219, %222 : vector<1x128xf32>
    %224 = vector.extract_strided_slice %173 {offsets = [20, 0], sizes = [2, 128], strides = [1, 1]} : vector<32x128xf32> to vector<2x128xf32>
    %cst_164 = arith.constant dense<0.000000e+00> : vector<128xf32>
    %225 = vector.multi_reduction <add>, %224, %cst_164 [0] : vector<2x128xf32> to vector<128xf32>
    %226 = vector.shape_cast %225 : vector<128xf32> to vector<1x128xf32>
    %227 = vector.extract_strided_slice %173 {offsets = [24, 0], sizes = [2, 128], strides = [1, 1]} : vector<32x128xf32> to vector<2x128xf32>
    %cst_165 = arith.constant dense<0.000000e+00> : vector<128xf32>
    %228 = vector.multi_reduction <add>, %227, %cst_165 [0] : vector<2x128xf32> to vector<128xf32>
    %229 = vector.shape_cast %228 : vector<128xf32> to vector<1x128xf32>
    %230 = arith.addf %226, %229 : vector<1x128xf32>
    %231 = vector.extract_strided_slice %173 {offsets = [28, 0], sizes = [2, 128], strides = [1, 1]} : vector<32x128xf32> to vector<2x128xf32>
    %cst_166 = arith.constant dense<0.000000e+00> : vector<128xf32>
    %232 = vector.multi_reduction <add>, %231, %cst_166 [0] : vector<2x128xf32> to vector<128xf32>
    %233 = vector.shape_cast %232 : vector<128xf32> to vector<1x128xf32>
    %234 = arith.addf %230, %233 : vector<1x128xf32>
    %235 = vector.extract_strided_slice %173 {offsets = [21, 0], sizes = [3, 128], strides = [1, 1]} : vector<32x128xf32> to vector<3x128xf32>
    %cst_167 = arith.constant dense<0.000000e+00> : vector<128xf32>
    %236 = vector.multi_reduction <add>, %235, %cst_167 [0] : vector<3x128xf32> to vector<128xf32>
    %237 = vector.shape_cast %236 : vector<128xf32> to vector<1x128xf32>
    %238 = vector.extract_strided_slice %173 {offsets = [25, 0], sizes = [3, 128], strides = [1, 1]} : vector<32x128xf32> to vector<3x128xf32>
    %cst_168 = arith.constant dense<0.000000e+00> : vector<128xf32>
    %239 = vector.multi_reduction <add>, %238, %cst_168 [0] : vector<3x128xf32> to vector<128xf32>
    %240 = vector.shape_cast %239 : vector<128xf32> to vector<1x128xf32>
    %241 = arith.addf %237, %240 : vector<1x128xf32>
    %242 = vector.extract_strided_slice %173 {offsets = [29, 0], sizes = [3, 128], strides = [1, 1]} : vector<32x128xf32> to vector<3x128xf32>
    %cst_169 = arith.constant dense<0.000000e+00> : vector<128xf32>
    %243 = vector.multi_reduction <add>, %242, %cst_169 [0] : vector<3x128xf32> to vector<128xf32>
    %244 = vector.shape_cast %243 : vector<128xf32> to vector<1x128xf32>
    %245 = arith.addf %241, %244 : vector<1x128xf32>
    %246 = tpu.concatenate %180, %187, %198, %209, %216, %223, %234, %245 in 0 : vector<1x128xf32>, vector<1x128xf32>, vector<1x128xf32>, vector<1x128xf32>, vector<1x128xf32>, vector<1x128xf32>, vector<1x128xf32>, vector<1x128xf32> -> vector<8x128xf32>
    %cst_170 = arith.constant 0.111111112 : f32
    %247 = vector.broadcast %cst_170 : f32 to vector<8x128xf32>
    %248 = arith.mulf %246, %247 : vector<8x128xf32>
    %cst_171 = arith.constant 0.000000e+00 : f32
    %249 = vector.broadcast %cst_171 : f32 to vector<32x128xf32>
    %c0_172 = arith.constant 0 : index
    %c0_173 = arith.constant 0 : index
    %250 = vector.load %arg14[%c0_172, %c0_173] : memref<32x128xf32, #tpu.memory_space<vmem>>, vector<32x128xf32>
    tpu.vector_store %arg14[%c0_172, %c0_173], %249 {strides = array<i32>} : memref<32x128xf32, #tpu.memory_space<vmem>>, vector<32x128xf32>,
    %251 = vector.extract_strided_slice %248 {offsets = [0, 0], sizes = [2, 128], strides = [1, 1]} : vector<8x128xf32> to vector<2x128xf32>
    %c5 = arith.constant 5 : index
    %c0_174 = arith.constant 0 : index
    %252 = vector.load %arg14[%c5, %c0_174] : memref<32x128xf32, #tpu.memory_space<vmem>>, vector<2x128xf32>
    tpu.vector_store %arg14[%c5, %c0_174], %251 {strides = array<i32>} : memref<32x128xf32, #tpu.memory_space<vmem>>, vector<2x128xf32>,
    %253 = vector.extract_strided_slice %248 {offsets = [2, 0], sizes = [2, 128], strides = [1, 1]} : vector<8x128xf32> to vector<2x128xf32>
    %c9 = arith.constant 9 : index
    %c0_175 = arith.constant 0 : index
    %254 = vector.load %arg14[%c9, %c0_175] : memref<32x128xf32, #tpu.memory_space<vmem>>, vector<2x128xf32>
    tpu.vector_store %arg14[%c9, %c0_175], %253 {strides = array<i32>} : memref<32x128xf32, #tpu.memory_space<vmem>>, vector<2x128xf32>,
    %255 = vector.extract_strided_slice %248 {offsets = [4, 0], sizes = [2, 128], strides = [1, 1]} : vector<8x128xf32> to vector<2x128xf32>
    %c21_176 = arith.constant 21 : index
    %c0_177 = arith.constant 0 : index
    %256 = vector.load %arg14[%c21_176, %c0_177] : memref<32x128xf32, #tpu.memory_space<vmem>>, vector<2x128xf32>
    tpu.vector_store %arg14[%c21_176, %c0_177], %255 {strides = array<i32>} : memref<32x128xf32, #tpu.memory_space<vmem>>, vector<2x128xf32>,
    %257 = vector.extract_strided_slice %248 {offsets = [6, 0], sizes = [2, 128], strides = [1, 1]} : vector<8x128xf32> to vector<2x128xf32>
    %c25 = arith.constant 25 : index
    %c0_178 = arith.constant 0 : index
    %258 = vector.load %arg14[%c25, %c0_178] : memref<32x128xf32, #tpu.memory_space<vmem>>, vector<2x128xf32>
    tpu.vector_store %arg14[%c25, %c0_178], %257 {strides = array<i32>} : memref<32x128xf32, #tpu.memory_space<vmem>>, vector<2x128xf32>,
    %c0_179 = arith.constant 0 : index
    %c0_180 = arith.constant 0 : index
    %259 = vector.load %arg14[%c0_179, %c0_180] : memref<32x128xf32, #tpu.memory_space<vmem>>, vector<2x128xf32>
    %c4 = arith.constant 4 : index
    %c0_181 = arith.constant 0 : index
    %260 = vector.load %arg14[%c4, %c0_181] : memref<32x128xf32, #tpu.memory_space<vmem>>, vector<2x128xf32>
    %c16 = arith.constant 16 : index
    %c0_182 = arith.constant 0 : index
    %261 = vector.load %arg14[%c16, %c0_182] : memref<32x128xf32, #tpu.memory_space<vmem>>, vector<2x128xf32>
    %c20_183 = arith.constant 20 : index
    %c0_184 = arith.constant 0 : index
    %262 = vector.load %arg14[%c20_183, %c0_184] : memref<32x128xf32, #tpu.memory_space<vmem>>, vector<2x128xf32>
    %263 = tpu.concatenate %259, %260, %261, %262 in 0 : vector<2x128xf32>, vector<2x128xf32>, vector<2x128xf32>, vector<2x128xf32> -> vector<8x128xf32>
    %c1_185 = arith.constant 1 : index
    %c0_186 = arith.constant 0 : index
    %264 = vector.load %arg14[%c1_185, %c0_186] : memref<32x128xf32, #tpu.memory_space<vmem>>, vector<2x128xf32>
    %c5_187 = arith.constant 5 : index
    %c0_188 = arith.constant 0 : index
    %265 = vector.load %arg14[%c5_187, %c0_188] : memref<32x128xf32, #tpu.memory_space<vmem>>, vector<2x128xf32>
    %c17 = arith.constant 17 : index
    %c0_189 = arith.constant 0 : index
    %266 = vector.load %arg14[%c17, %c0_189] : memref<32x128xf32, #tpu.memory_space<vmem>>, vector<2x128xf32>
    %c21_190 = arith.constant 21 : index
    %c0_191 = arith.constant 0 : index
    %267 = vector.load %arg14[%c21_190, %c0_191] : memref<32x128xf32, #tpu.memory_space<vmem>>, vector<2x128xf32>
    %268 = tpu.concatenate %264, %265, %266, %267 in 0 : vector<2x128xf32>, vector<2x128xf32>, vector<2x128xf32>, vector<2x128xf32> -> vector<8x128xf32>
    %c2_192 = arith.constant 2 : index
    %c0_193 = arith.constant 0 : index
    %269 = vector.load %arg14[%c2_192, %c0_193] : memref<32x128xf32, #tpu.memory_space<vmem>>, vector<2x128xf32>
    %c6 = arith.constant 6 : index
    %c0_194 = arith.constant 0 : index
    %270 = vector.load %arg14[%c6, %c0_194] : memref<32x128xf32, #tpu.memory_space<vmem>>, vector<2x128xf32>
    %c18 = arith.constant 18 : index
    %c0_195 = arith.constant 0 : index
    %271 = vector.load %arg14[%c18, %c0_195] : memref<32x128xf32, #tpu.memory_space<vmem>>, vector<2x128xf32>
    %c22_196 = arith.constant 22 : index
    %c0_197 = arith.constant 0 : index
    %272 = vector.load %arg14[%c22_196, %c0_197] : memref<32x128xf32, #tpu.memory_space<vmem>>, vector<2x128xf32>
    %273 = tpu.concatenate %269, %270, %271, %272 in 0 : vector<2x128xf32>, vector<2x128xf32>, vector<2x128xf32>, vector<2x128xf32> -> vector<8x128xf32>
    %c4_198 = arith.constant 4 : index
    %c0_199 = arith.constant 0 : index
    %274 = vector.load %arg14[%c4_198, %c0_199] : memref<32x128xf32, #tpu.memory_space<vmem>>, vector<2x128xf32>
    %c8 = arith.constant 8 : index
    %c0_200 = arith.constant 0 : index
    %275 = vector.load %arg14[%c8, %c0_200] : memref<32x128xf32, #tpu.memory_space<vmem>>, vector<2x128xf32>
    %c20_201 = arith.constant 20 : index
    %c0_202 = arith.constant 0 : index
    %276 = vector.load %arg14[%c20_201, %c0_202] : memref<32x128xf32, #tpu.memory_space<vmem>>, vector<2x128xf32>
    %c24 = arith.constant 24 : index
    %c0_203 = arith.constant 0 : index
    %277 = vector.load %arg14[%c24, %c0_203] : memref<32x128xf32, #tpu.memory_space<vmem>>, vector<2x128xf32>
    %278 = tpu.concatenate %274, %275, %276, %277 in 0 : vector<2x128xf32>, vector<2x128xf32>, vector<2x128xf32>, vector<2x128xf32> -> vector<8x128xf32>
    %c5_204 = arith.constant 5 : index
    %c0_205 = arith.constant 0 : index
    %279 = vector.load %arg14[%c5_204, %c0_205] : memref<32x128xf32, #tpu.memory_space<vmem>>, vector<2x128xf32>
    %c9_206 = arith.constant 9 : index
    %c0_207 = arith.constant 0 : index
    %280 = vector.load %arg14[%c9_206, %c0_207] : memref<32x128xf32, #tpu.memory_space<vmem>>, vector<2x128xf32>
    %c21_208 = arith.constant 21 : index
    %c0_209 = arith.constant 0 : index
    %281 = vector.load %arg14[%c21_208, %c0_209] : memref<32x128xf32, #tpu.memory_space<vmem>>, vector<2x128xf32>
    %c25_210 = arith.constant 25 : index
    %c0_211 = arith.constant 0 : index
    %282 = vector.load %arg14[%c25_210, %c0_211] : memref<32x128xf32, #tpu.memory_space<vmem>>, vector<2x128xf32>
    %283 = tpu.concatenate %279, %280, %281, %282 in 0 : vector<2x128xf32>, vector<2x128xf32>, vector<2x128xf32>, vector<2x128xf32> -> vector<8x128xf32>
    %c6_212 = arith.constant 6 : index
    %c0_213 = arith.constant 0 : index
    %284 = vector.load %arg14[%c6_212, %c0_213] : memref<32x128xf32, #tpu.memory_space<vmem>>, vector<2x128xf32>
    %c10_214 = arith.constant 10 : index
    %c0_215 = arith.constant 0 : index
    %285 = vector.load %arg14[%c10_214, %c0_215] : memref<32x128xf32, #tpu.memory_space<vmem>>, vector<2x128xf32>
    %c22_216 = arith.constant 22 : index
    %c0_217 = arith.constant 0 : index
    %286 = vector.load %arg14[%c22_216, %c0_217] : memref<32x128xf32, #tpu.memory_space<vmem>>, vector<2x128xf32>
    %c26 = arith.constant 26 : index
    %c0_218 = arith.constant 0 : index
    %287 = vector.load %arg14[%c26, %c0_218] : memref<32x128xf32, #tpu.memory_space<vmem>>, vector<2x128xf32>
    %288 = tpu.concatenate %284, %285, %286, %287 in 0 : vector<2x128xf32>, vector<2x128xf32>, vector<2x128xf32>, vector<2x128xf32> -> vector<8x128xf32>
    %c8_219 = arith.constant 8 : index
    %c0_220 = arith.constant 0 : index
    %289 = vector.load %arg14[%c8_219, %c0_220] : memref<32x128xf32, #tpu.memory_space<vmem>>, vector<2x128xf32>
    %c12_221 = arith.constant 12 : index
    %c0_222 = arith.constant 0 : index
    %290 = vector.load %arg14[%c12_221, %c0_222] : memref<32x128xf32, #tpu.memory_space<vmem>>, vector<2x128xf32>
    %c24_223 = arith.constant 24 : index
    %c0_224 = arith.constant 0 : index
    %291 = vector.load %arg14[%c24_223, %c0_224] : memref<32x128xf32, #tpu.memory_space<vmem>>, vector<2x128xf32>
    %c28 = arith.constant 28 : index
    %c0_225 = arith.constant 0 : index
    %292 = vector.load %arg14[%c28, %c0_225] : memref<32x128xf32, #tpu.memory_space<vmem>>, vector<2x128xf32>
    %293 = tpu.concatenate %289, %290, %291, %292 in 0 : vector<2x128xf32>, vector<2x128xf32>, vector<2x128xf32>, vector<2x128xf32> -> vector<8x128xf32>
    %c9_226 = arith.constant 9 : index
    %c0_227 = arith.constant 0 : index
    %294 = vector.load %arg14[%c9_226, %c0_227] : memref<32x128xf32, #tpu.memory_space<vmem>>, vector<2x128xf32>
    %c13 = arith.constant 13 : index
    %c0_228 = arith.constant 0 : index
    %295 = vector.load %arg14[%c13, %c0_228] : memref<32x128xf32, #tpu.memory_space<vmem>>, vector<2x128xf32>
    %c25_229 = arith.constant 25 : index
    %c0_230 = arith.constant 0 : index
    %296 = vector.load %arg14[%c25_229, %c0_230] : memref<32x128xf32, #tpu.memory_space<vmem>>, vector<2x128xf32>
    %c29 = arith.constant 29 : index
    %c0_231 = arith.constant 0 : index
    %297 = vector.load %arg14[%c29, %c0_231] : memref<32x128xf32, #tpu.memory_space<vmem>>, vector<2x128xf32>
    %298 = tpu.concatenate %294, %295, %296, %297 in 0 : vector<2x128xf32>, vector<2x128xf32>, vector<2x128xf32>, vector<2x128xf32> -> vector<8x128xf32>
    %c10_232 = arith.constant 10 : index
    %c0_233 = arith.constant 0 : index
    %299 = vector.load %arg14[%c10_232, %c0_233] : memref<32x128xf32, #tpu.memory_space<vmem>>, vector<2x128xf32>
    %c14 = arith.constant 14 : index
    %c0_234 = arith.constant 0 : index
    %300 = vector.load %arg14[%c14, %c0_234] : memref<32x128xf32, #tpu.memory_space<vmem>>, vector<2x128xf32>
    %c26_235 = arith.constant 26 : index
    %c0_236 = arith.constant 0 : index
    %301 = vector.load %arg14[%c26_235, %c0_236] : memref<32x128xf32, #tpu.memory_space<vmem>>, vector<2x128xf32>
    %c30_237 = arith.constant 30 : index
    %c0_238 = arith.constant 0 : index
    %302 = vector.load %arg14[%c30_237, %c0_238] : memref<32x128xf32, #tpu.memory_space<vmem>>, vector<2x128xf32>
    %303 = tpu.concatenate %299, %300, %301, %302 in 0 : vector<2x128xf32>, vector<2x128xf32>, vector<2x128xf32>, vector<2x128xf32> -> vector<8x128xf32>
    %304 = tpu.concatenate %263, %268, %273, %278, %283, %288, %293, %298, %303 in 1 : vector<8x128xf32>, vector<8x128xf32>, vector<8x128xf32>, vector<8x128xf32>, vector<8x128xf32>, vector<8x128xf32>, vector<8x128xf32>, vector<8x128xf32>, vector<8x128xf32> -> vector<8x1152xf32>
    %305 = arith.truncf %304 : vector<8x1152xf32> to vector<8x1152xbf16>
    %c0_239 = arith.constant 0 : index
    %c0_240 = arith.constant 0 : index
    %306 = vector.load %arg6[%c0_239, %c0_240] : memref<1152x128xbf16, #tpu.memory_space<vmem>>, vector<1152x128xbf16>
    %cst_241 = arith.constant dense<0.000000e+00> : vector<8x128xf32>
    %307 = tpu.matmul %305, %306, %cst_241 {dimension_numbers = #tpu.dot_dimension_numbers<[1], [0], [0], [1], [0, 0, 1, 1], [], []>} : vector<8x1152xbf16>, vector<1152x128xbf16>, vector<8x128xf32> -> vector<8x128xf32>
    %c0_242 = arith.constant 0 : index
    %c0_243 = arith.constant 0 : index
    %308 = vector.load %arg7[%c0_242, %c0_243] : memref<1x128xf32, #tpu.memory_space<vmem>>, vector<1x128xf32>
    %309 = vector.broadcast %308 : vector<1x128xf32> to vector<8x128xf32>
    %310 = arith.addf %307, %309 : vector<8x128xf32>
    %cst_244 = arith.constant 0.000000e+00 : f32
    %311 = vector.broadcast %cst_244 : f32 to vector<8x128xf32>
    %312 = arith.cmpf oge, %310, %311 : vector<8x128xf32>
    %cst_245 = arith.constant 0.00999999977 : f32
    %313 = vector.broadcast %cst_245 : f32 to vector<8x128xf32>
    %314 = arith.mulf %313, %310 : vector<8x128xf32>
    %315 = arith.select %312, %310, %314 : vector<8x128xi1>, vector<8x128xf32>
    %cst_246 = arith.constant dense<0.000000e+00> : vector<128xf32>
    %316 = vector.multi_reduction <add>, %315, %cst_246 [0] : vector<8x128xf32> to vector<128xf32>
    %317 = vector.shape_cast %316 : vector<128xf32> to vector<1x128xf32>
    %cst_247 = arith.constant 8.000000e+00 : f32
    %318 = vector.broadcast %cst_247 : f32 to vector<1x128xf32>
    %319 = arith.divf %317, %318 : vector<1x128xf32>
    %320 = vector.broadcast %319 : vector<1x128xf32> to vector<8x128xf32>
    %321 = arith.subf %315, %320 : vector<8x128xf32>
    %322 = arith.mulf %321, %321 : vector<8x128xf32>
    %cst_248 = arith.constant dense<0.000000e+00> : vector<128xf32>
    %323 = vector.multi_reduction <add>, %322, %cst_248 [0] : vector<8x128xf32> to vector<128xf32>
    %324 = vector.shape_cast %323 : vector<128xf32> to vector<1x128xf32>
    %cst_249 = arith.constant 8.000000e+00 : f32
    %325 = vector.broadcast %cst_249 : f32 to vector<1x128xf32>
    %326 = arith.divf %324, %325 : vector<1x128xf32>
    %327 = vector.broadcast %319 : vector<1x128xf32> to vector<8x128xf32>
    %328 = arith.subf %315, %327 : vector<8x128xf32>
    %cst_250 = arith.constant 9.99999974E-6 : f32
    %329 = vector.broadcast %cst_250 : f32 to vector<1x128xf32>
    %330 = arith.addf %326, %329 : vector<1x128xf32>
    %331 = math.rsqrt %330 : vector<1x128xf32>
    %332 = vector.broadcast %331 : vector<1x128xf32> to vector<8x128xf32>
    %333 = arith.mulf %328, %332 : vector<8x128xf32>
    %334 = arith.truncf %333 : vector<8x128xf32> to vector<8x128xbf16>
    %c0_251 = arith.constant 0 : index
    %c0_252 = arith.constant 0 : index
    %335 = vector.load %arg8[%c0_251, %c0_252] : memref<128x128xbf16, #tpu.memory_space<vmem>>, vector<128x128xbf16>
    %cst_253 = arith.constant dense<0.000000e+00> : vector<8x128xf32>
    %336 = tpu.matmul %334, %335, %cst_253 {dimension_numbers = #tpu.dot_dimension_numbers<[1], [0], [0], [1], [0, 0, 1, 1], [], []>} : vector<8x128xbf16>, vector<128x128xbf16>, vector<8x128xf32> -> vector<8x128xf32>
    %c0_254 = arith.constant 0 : index
    %c0_255 = arith.constant 0 : index
    %337 = vector.load %arg9[%c0_254, %c0_255] : memref<1x128xf32, #tpu.memory_space<vmem>>, vector<1x128xf32>
    %338 = vector.broadcast %337 : vector<1x128xf32> to vector<8x128xf32>
    %339 = arith.addf %336, %338 : vector<8x128xf32>
    %cst_256 = arith.constant 0.000000e+00 : f32
    %340 = vector.broadcast %cst_256 : f32 to vector<8x128xf32>
    %341 = arith.cmpf oge, %339, %340 : vector<8x128xf32>
    %cst_257 = arith.constant 0.00999999977 : f32
    %342 = vector.broadcast %cst_257 : f32 to vector<8x128xf32>
    %343 = arith.mulf %342, %339 : vector<8x128xf32>
    %344 = arith.select %341, %339, %343 : vector<8x128xi1>, vector<8x128xf32>
    %cst_258 = arith.constant dense<0.000000e+00> : vector<128xf32>
    %345 = vector.multi_reduction <add>, %344, %cst_258 [0] : vector<8x128xf32> to vector<128xf32>
    %346 = vector.shape_cast %345 : vector<128xf32> to vector<1x128xf32>
    %cst_259 = arith.constant 8.000000e+00 : f32
    %347 = vector.broadcast %cst_259 : f32 to vector<1x128xf32>
    %348 = arith.divf %346, %347 : vector<1x128xf32>
    %349 = vector.broadcast %348 : vector<1x128xf32> to vector<8x128xf32>
    %350 = arith.subf %344, %349 : vector<8x128xf32>
    %351 = arith.mulf %350, %350 : vector<8x128xf32>
    %cst_260 = arith.constant dense<0.000000e+00> : vector<128xf32>
    %352 = vector.multi_reduction <add>, %351, %cst_260 [0] : vector<8x128xf32> to vector<128xf32>
    %353 = vector.shape_cast %352 : vector<128xf32> to vector<1x128xf32>
    %cst_261 = arith.constant 8.000000e+00 : f32
    %354 = vector.broadcast %cst_261 : f32 to vector<1x128xf32>
    %355 = arith.divf %353, %354 : vector<1x128xf32>
    %356 = vector.broadcast %348 : vector<1x128xf32> to vector<8x128xf32>
    %357 = arith.subf %344, %356 : vector<8x128xf32>
    %cst_262 = arith.constant 9.99999974E-6 : f32
    %358 = vector.broadcast %cst_262 : f32 to vector<1x128xf32>
    %359 = arith.addf %355, %358 : vector<1x128xf32>
    %360 = math.rsqrt %359 : vector<1x128xf32>
    %361 = vector.broadcast %360 : vector<1x128xf32> to vector<8x128xf32>
    %362 = arith.mulf %357, %361 : vector<8x128xf32>
    %363 = vector.extract_strided_slice %362 {offsets = [0, 0], sizes = [2, 128], strides = [1, 1]} : vector<8x128xf32> to vector<2x128xf32>
    %cst_263 = arith.constant dense<0.000000e+00> : vector<128xf32>
    %364 = vector.multi_reduction <add>, %363, %cst_263 [0] : vector<2x128xf32> to vector<128xf32>
    %365 = vector.shape_cast %364 : vector<128xf32> to vector<1x128xf32>
    %366 = vector.extract_strided_slice %362 {offsets = [2, 0], sizes = [2, 128], strides = [1, 1]} : vector<8x128xf32> to vector<2x128xf32>
    %cst_264 = arith.constant dense<0.000000e+00> : vector<128xf32>
    %367 = vector.multi_reduction <add>, %366, %cst_264 [0] : vector<2x128xf32> to vector<128xf32>
    %368 = vector.shape_cast %367 : vector<128xf32> to vector<1x128xf32>
    %369 = arith.addf %365, %368 : vector<1x128xf32>
    %370 = vector.extract_strided_slice %362 {offsets = [4, 0], sizes = [2, 128], strides = [1, 1]} : vector<8x128xf32> to vector<2x128xf32>
    %cst_265 = arith.constant dense<0.000000e+00> : vector<128xf32>
    %371 = vector.multi_reduction <add>, %370, %cst_265 [0] : vector<2x128xf32> to vector<128xf32>
    %372 = vector.shape_cast %371 : vector<128xf32> to vector<1x128xf32>
    %373 = vector.extract_strided_slice %362 {offsets = [6, 0], sizes = [2, 128], strides = [1, 1]} : vector<8x128xf32> to vector<2x128xf32>
    %cst_266 = arith.constant dense<0.000000e+00> : vector<128xf32>
    %374 = vector.multi_reduction <add>, %373, %cst_266 [0] : vector<2x128xf32> to vector<128xf32>
    %375 = vector.shape_cast %374 : vector<128xf32> to vector<1x128xf32>
    %376 = arith.addf %372, %375 : vector<1x128xf32>
    %377 = tpu.concatenate %369, %376 in 0 : vector<1x128xf32>, vector<1x128xf32> -> vector<2x128xf32>
    %cst_267 = arith.constant 0.111111112 : f32
    %378 = vector.broadcast %cst_267 : f32 to vector<2x128xf32>
    %379 = arith.mulf %377, %378 : vector<2x128xf32>
    %380 = arith.truncf %379 : vector<2x128xf32> to vector<2x128xbf16>
    %c0_268 = arith.constant 0 : index
    %c0_269 = arith.constant 0 : index
    %381 = vector.load %arg10[%c0_268, %c0_269] : memref<128x128xbf16, #tpu.memory_space<vmem>>, vector<128x128xbf16>
    %cst_270 = arith.constant dense<0.000000e+00> : vector<2x128xf32>
    %382 = tpu.matmul %380, %381, %cst_270 {dimension_numbers = #tpu.dot_dimension_numbers<[1], [0], [0], [1], [0, 0, 1, 1], [], []>} : vector<2x128xbf16>, vector<128x128xbf16>, vector<2x128xf32> -> vector<2x128xf32>
    %c0_271 = arith.constant 0 : index
    %c0_272 = arith.constant 0 : index
    %383 = vector.load %arg11[%c0_271, %c0_272] : memref<1x128xf32, #tpu.memory_space<vmem>>, vector<1x128xf32>
    %384 = vector.broadcast %383 : vector<1x128xf32> to vector<2x128xf32>
    %385 = arith.addf %382, %384 : vector<2x128xf32>
    %cst_273 = arith.constant 0.000000e+00 : f32
    %386 = vector.broadcast %cst_273 : f32 to vector<2x128xf32>
    %387 = arith.cmpf oge, %385, %386 : vector<2x128xf32>
    %cst_274 = arith.constant 0.00999999977 : f32
    %388 = vector.broadcast %cst_274 : f32 to vector<2x128xf32>
    %389 = arith.mulf %388, %385 : vector<2x128xf32>
    %390 = arith.select %387, %385, %389 : vector<2x128xi1>, vector<2x128xf32>
    %c0_275 = arith.constant 0 : index
    %c0_276 = arith.constant 0 : index
    %391 = vector.load %arg12[%c0_275, %c0_276] : memref<2x128xf32, #tpu.memory_space<vmem>>, vector<2x128xf32>
    tpu.vector_store %arg12[%c0_275, %c0_276], %390 {strides = array<i32>} : memref<2x128xf32, #tpu.memory_space<vmem>>, vector<2x128xf32>,
    return
  }
  func.func @transform_0(%arg0: i32) -> (i32, i32) {
    %c0_i32 = arith.constant 0 : i32
    %c0_i32_0 = arith.constant 0 : i32
    %c0_i32_1 = arith.constant 0 : i32
    return %c0_i32, %c0_i32_0 : i32, i32
  }
  func.func @transform_1(%arg0: i32) -> (i32, i32) {
    %c0_i32 = arith.constant 0 : i32
    %c0_i32_0 = arith.constant 0 : i32
    %c0_i32_1 = arith.constant 0 : i32
    return %c0_i32, %c0_i32_0 : i32, i32
  }
  func.func @transform_2(%arg0: i32) -> (i32, i32) {
    %c0_i32 = arith.constant 0 : i32
    %c0_i32_0 = arith.constant 0 : i32
    %c0_i32_1 = arith.constant 0 : i32
    return %c0_i32, %c0_i32_0 : i32, i32
  }
  func.func @transform_3(%arg0: i32) -> (i32, i32) {
    %c0_i32 = arith.constant 0 : i32
    %c0_i32_0 = arith.constant 0 : i32
    %c0_i32_1 = arith.constant 0 : i32
    return %c0_i32, %c0_i32_0 : i32, i32
  }
  func.func @transform_4(%arg0: i32) -> (i32, i32) {
    %c0_i32 = arith.constant 0 : i32
    %c0_i32_0 = arith.constant 0 : i32
    %c0_i32_1 = arith.constant 0 : i32
    return %c0_i32, %c0_i32_0 : i32, i32
  }
  func.func @transform_5(%arg0: i32) -> (i32, i32) {
    %c0_i32 = arith.constant 0 : i32
    %c0_i32_0 = arith.constant 0 : i32
    %c0_i32_1 = arith.constant 0 : i32
    return %c0_i32, %c0_i32_0 : i32, i32
  }
  func.func @transform_6(%arg0: i32) -> (i32, i32) {
    %c0_i32 = arith.constant 0 : i32
    %c0_i32_0 = arith.constant 0 : i32
    %c0_i32_1 = arith.constant 0 : i32
    return %c0_i32, %c0_i32_0 : i32, i32
  }
  func.func @transform_7(%arg0: i32) -> (i32, i32) {
    %c0_i32 = arith.constant 0 : i32
    %c0_i32_0 = arith.constant 0 : i32
    %c0_i32_1 = arith.constant 0 : i32
    return %c0_i32, %c0_i32_0 : i32, i32
  }
  func.func @transform_8(%arg0: i32) -> (i32, i32) {
    %c0_i32 = arith.constant 0 : i32
    %c0_i32_0 = arith.constant 0 : i32
    %c0_i32_1 = arith.constant 0 : i32
    return %c0_i32, %c0_i32_0 : i32, i32
  }
  func.func @transform_9(%arg0: i32) -> (i32, i32) {
    %c0_i32 = arith.constant 0 : i32
    %c0_i32_0 = arith.constant 0 : i32
    %c0_i32_1 = arith.constant 0 : i32
    return %c0_i32, %c0_i32_0 : i32, i32
  }
  func.func @transform_10(%arg0: i32) -> (i32, i32) {
    %c0_i32 = arith.constant 0 : i32
    %c0_i32_0 = arith.constant 0 : i32
    %c0_i32_1 = arith.constant 0 : i32
    return %c0_i32, %c0_i32_0 : i32, i32
  }
  func.func @transform_11(%arg0: i32) -> (i32, i32) {
    %c0_i32 = arith.constant 0 : i32
    %c0_i32_0 = arith.constant 0 : i32
    %c0_i32_1 = arith.constant 0 : i32
    return %c0_i32, %c0_i32_0 : i32, i32
  }
}

</mosaic_0001>

<llo_original>
// kernel: discriminator_forward.1
$region0: #{discriminator_forward.1}
  #allocation0 [shape = 'u32[]', space=smem, size = 0x4, offset = 0x4, fixed_abs, tag = 'smem constant byte address 0x4 - core index']
  #allocation1 [shape = 'u32[144,128]{1,0:T(1,128)}', space=vmem, size = 0x12000, scoped, tag = 'internal scratch']
  #allocation2 [shape = 'f32[200,128]{1,0:T(8,128)}', space=vmem, size = 0x19000, scoped, tag = 'scratch operand']
  #allocation3 [shape = 'f32[32,128]{1,0:T(8,128)}', space=vmem, size = 0x4000, scoped, tag = 'scratch operand']
  %s0 = inlined_call_operand.vmem [shape: bf16[128,128], index: 0, kind: input, shape index: {}]
  %s1 = inlined_call_operand.vmem [shape: bf16[128,128], index: 1, kind: input, shape index: {}]
  %s2 = inlined_call_operand.vmem [shape: f32[1,128], index: 2, kind: input, shape index: {}]
  %s3 = inlined_call_operand.vmem [shape: bf16[1152,128], index: 3, kind: input, shape index: {}]
  %s4 = inlined_call_operand.vmem [shape: f32[1,128], index: 4, kind: input, shape index: {}]
  %s5 = inlined_call_operand.vmem [shape: bf16[1152,128], index: 5, kind: input, shape index: {}]
  %s6 = inlined_call_operand.vmem [shape: f32[1,128], index: 6, kind: input, shape index: {}]
  %s7 = inlined_call_operand.vmem [shape: bf16[128,128], index: 7, kind: input, shape index: {}]
  %s8 = inlined_call_operand.vmem [shape: f32[1,128], index: 8, kind: input, shape index: {}]
  %s9 = inlined_call_operand.vmem [shape: bf16[128,128], index: 9, kind: input, shape index: {}]
  %s10 = inlined_call_operand.vmem [shape: f32[1,128], index: 10, kind: input, shape index: {}]
  %s11 = inlined_call_operand.vmem [shape: f32[2,128], index: 11, kind: output, shape index: {}]
  %s12 = sld [smem:[#allocation0]]
  $region54: #{discriminator_forward.1} parent=0
    _
  %s14 = ssub.s32 1, %s12
  %s15 = scalar_select 0, %s14, %s12
  // Predicated region
  $region2: #{discriminator_forward.1} parent=0 // pred_check
    _
  $region3: #{discriminator_forward.1} parent=0 // pred_check_branch
    %17 = sbr.rel (0) target = $region5
  $region4: #{discriminator_forward.1} parent=0 // pred_region
    _
  $region5: #{discriminator_forward.1} parent=0 // pred_fallthru
    _
  // Predicated region
  $region6: #{discriminator_forward.1} parent=0 // pred_check
    _
  $region7: #{discriminator_forward.1} parent=0 // pred_check_branch
    %19 = sbr.rel (0) target = $region9
  $region8: #{discriminator_forward.1} parent=0 // pred_region
    _
  $region9: #{discriminator_forward.1} parent=0 // pred_fallthru
    _
  // Predicated region
  $region10: #{discriminator_forward.1} parent=0 // pred_check
    _
  $region11: #{discriminator_forward.1} parent=0 // pred_check_branch
    %21 = sbr.rel (0) target = $region13
  $region12: #{discriminator_forward.1} parent=0 // pred_region
    _
  $region13: #{discriminator_forward.1} parent=0 // pred_fallthru
    _
  // Predicated region
  $region14: #{discriminator_forward.1} parent=0 // pred_check
    _
  $region15: #{discriminator_forward.1} parent=0 // pred_check_branch
    %23 = sbr.rel (0) target = $region17
  $region16: #{discriminator_forward.1} parent=0 // pred_region
    _
  $region17: #{discriminator_forward.1} parent=0 // pred_fallthru
    _
  // Predicated region
  $region18: #{discriminator_forward.1} parent=0 // pred_check
    _
  $region19: #{discriminator_forward.1} parent=0 // pred_check_branch
    %25 = sbr.rel (0) target = $region21
  $region20: #{discriminator_forward.1} parent=0 // pred_region
    _
  $region21: #{discriminator_forward.1} parent=0 // pred_fallthru
    _
  // Predicated region
  $region22: #{discriminator_forward.1} parent=0 // pred_check
    _
  $region23: #{discriminator_forward.1} parent=0 // pred_check_branch
    %27 = sbr.rel (0) target = $region25
  $region24: #{discriminator_forward.1} parent=0 // pred_region
    _
  $region25: #{discriminator_forward.1} parent=0 // pred_fallthru
    _
  // Predicated region
  $region26: #{discriminator_forward.1} parent=0 // pred_check
    _
  $region27: #{discriminator_forward.1} parent=0 // pred_check_branch
    %29 = sbr.rel (0) target = $region29
  $region28: #{discriminator_forward.1} parent=0 // pred_region
    _
  $region29: #{discriminator_forward.1} parent=0 // pred_fallthru
    _
  // Predicated region
  $region30: #{discriminator_forward.1} parent=0 // pred_check
    _
  $region31: #{discriminator_forward.1} parent=0 // pred_check_branch
    %31 = sbr.rel (0) target = $region33
  $region32: #{discriminator_forward.1} parent=0 // pred_region
    _
  $region33: #{discriminator_forward.1} parent=0 // pred_fallthru
    _
  // Predicated region
  $region34: #{discriminator_forward.1} parent=0 // pred_check
    _
  $region35: #{discriminator_forward.1} parent=0 // pred_check_branch
    %33 = sbr.rel (0) target = $region37
  $region36: #{discriminator_forward.1} parent=0 // pred_region
    _
  $region37: #{discriminator_forward.1} parent=0 // pred_fallthru
    _
  // Predicated region
  $region38: #{discriminator_forward.1} parent=0 // pred_check
    _
  $region39: #{discriminator_forward.1} parent=0 // pred_check_branch
    %35 = sbr.rel (0) target = $region41
  $region40: #{discriminator_forward.1} parent=0 // pred_region
    _
  $region41: #{discriminator_forward.1} parent=0 // pred_fallthru
    _
  // Predicated region
  $region42: #{discriminator_forward.1} parent=0 // pred_check
    _
  $region43: #{discriminator_forward.1} parent=0 // pred_check_branch
    %37 = sbr.rel (0) target = $region45
  $region44: #{discriminator_forward.1} parent=0 // pred_region
    _
  $region45: #{discriminator_forward.1} parent=0 // pred_fallthru
    _
  %v39 = vld [vmem:[%s0] sm:$0xf]
  %v40 = vld [vmem:[%s0 + $0x4] sm:$0xf]
  %v41 = vld [vmem:[%s0 + $0x8] sm:$0xf]
  %v42 = vld [vmem:[%s0 + $0xc] sm:$0xf]
  %v43 = vld [vmem:[%s0 + $0x10] sm:$0xf]
  %v44 = vld [vmem:[%s0 + $0x14] sm:$0xf]
  %v45 = vld [vmem:[%s0 + $0x18] sm:$0xf]
  %v46 = vld [vmem:[%s0 + $0x1c] sm:$0xf]
  %v47 = vld [vmem:[%s0 + $0x20] sm:$0xf]
  %v48 = vld [vmem:[%s0 + $0x24] sm:$0xf]
  %v49 = vld [vmem:[%s0 + $0x28] sm:$0xf]
  %v50 = vld [vmem:[%s0 + $0x2c] sm:$0xf]
  %v51 = vld [vmem:[%s0 + $0x30] sm:$0xf]
  %v52 = vld [vmem:[%s0 + $0x34] sm:$0xf]
  %v53 = vld [vmem:[%s0 + $0x38] sm:$0xf]
  %v54 = vld [vmem:[%s0 + $0x3c] sm:$0xf]
  %v55 = vld [vmem:[%s1] sm:$0xf]
  %v56 = vld [vmem:[%s1 + $0x4] sm:$0xf]
  %v57 = vld [vmem:[%s1 + $0x8] sm:$0xf]
  %v58 = vld [vmem:[%s1 + $0xc] sm:$0xf]
  %v59 = vld [vmem:[%s1 + $0x10] sm:$0xf]
  %v60 = vld [vmem:[%s1 + $0x14] sm:$0xf]
  %v61 = vld [vmem:[%s1 + $0x18] sm:$0xf]
  %v62 = vld [vmem:[%s1 + $0x1c] sm:$0xf]
  %v63 = vld [vmem:[%s1 + $0x20] sm:$0xf]
  %v64 = vld [vmem:[%s1 + $0x24] sm:$0xf]
  %v65 = vld [vmem:[%s1 + $0x28] sm:$0xf]
  %v66 = vld [vmem:[%s1 + $0x2c] sm:$0xf]
  %v67 = vld [vmem:[%s1 + $0x30] sm:$0xf]
  %v68 = vld [vmem:[%s1 + $0x34] sm:$0xf]
  %v69 = vld [vmem:[%s1 + $0x38] sm:$0xf]
  %v70 = vld [vmem:[%s1 + $0x3c] sm:$0xf]
  %v71 = vld [vmem:[%s2] sm:$0x1]
  %v73 = vlaneseq
  %v74 = vshrl.u32 %v73, 7
  %v75 = vsub.s32 0, %v74
  %v76 = vrot.slane %v71, %v75
  %v94 = vunpack.c.l.b16 %v39
  %v95 = vunpack.c.l.b16 %v40
  %v96 = vunpack.c.l.b16 %v41
  %v97 = vunpack.c.l.b16 %v42
  %v98 = vunpack.c.l.b16 %v43
  %v99 = vunpack.c.l.b16 %v44
  %v100 = vunpack.c.l.b16 %v45
  %v101 = vunpack.c.l.b16 %v46
  %v102 = vunpack.c.l.b16 %v47
  %v103 = vunpack.c.l.b16 %v48
  %v104 = vunpack.c.l.b16 %v49
  %v105 = vunpack.c.l.b16 %v50
  %v106 = vunpack.c.l.b16 %v51
  %v107 = vunpack.c.l.b16 %v52
  %v108 = vunpack.c.l.b16 %v53
  %v109 = vunpack.c.l.b16 %v54
  %v110 = vpack.c.b16 %v95, %v94
  %v111 = vpack.c.b16 %v97, %v96
  %v112 = vpack.c.b16 %v99, %v98
  %v113 = vpack.c.b16 %v101, %v100
  %v114 = vpack.c.b16 %v103, %v102
  %v115 = vpack.c.b16 %v105, %v104
  %v116 = vpack.c.b16 %v107, %v106
  %v117 = vpack.c.b16 %v109, %v108
  %v142 = vunpack.c.l.b16 %v55
  %v143 = vunpack.c.l.b16 %v56
  %v144 = vunpack.c.l.b16 %v57
  %v145 = vunpack.c.l.b16 %v58
  %v146 = vunpack.c.l.b16 %v59
  %v147 = vunpack.c.l.b16 %v60
  %v148 = vunpack.c.l.b16 %v61
  %v149 = vunpack.c.l.b16 %v62
  %v150 = vunpack.c.l.b16 %v63
  %v151 = vunpack.c.l.b16 %v64
  %v152 = vunpack.c.l.b16 %v65
  %v153 = vunpack.c.l.b16 %v66
  %v154 = vunpack.c.l.b16 %v67
  %v155 = vunpack.c.l.b16 %v68
  %v156 = vunpack.c.l.b16 %v69
  %v157 = vunpack.c.l.b16 %v70
  %v158 = vpack.c.b16 %v143, %v142
  %v159 = vpack.c.b16 %v145, %v144
  %v160 = vpack.c.b16 %v147, %v146
  %v161 = vpack.c.b16 %v149, %v148
  %v162 = vpack.c.b16 %v151, %v150
  %v163 = vpack.c.b16 %v153, %v152
  %v164 = vpack.c.b16 %v155, %v154
  %v165 = vpack.c.b16 %v157, %v156
  %174 = vmatprep.subr.bf16.mxu0 0
  %175 = vmatpush1.bf16.msra.mxu0 %v158
  %176 = vmatprep.subr.bf16.mxu0 0
  %177 = vmatpush1.bf16.msra.mxu0 %v159
  %178 = vmatprep.subr.bf16.mxu0 0
  %179 = vmatpush1.bf16.msra.mxu0 %v160
  %180 = vmatprep.subr.bf16.mxu0 0
  %181 = vmatpush1.bf16.msra.mxu0 %v161
  %182 = vmatprep.subr.bf16.mxu0 0
  %183 = vmatpush1.bf16.msra.mxu0 %v162
  %184 = vmatprep.subr.bf16.mxu0 0
  %185 = vmatpush1.bf16.msra.mxu0 %v163
  %186 = vmatprep.subr.bf16.mxu0 0
  %187 = vmatpush1.bf16.msra.mxu0 %v164
  %188 = vmatprep.subr.bf16.mxu0 0
  %189 = vmatpush1.bf16.msra.mxu0 %v165
  %190 = vmatprep.subr.bf16.mxu0 0
  %191 = vmatpush1.bf16.msra.mxu0 0
  %192 = vmatprep.subr.bf16.mxu0 0
  %193 = vmatpush1.bf16.msra.mxu0 0
  %194 = vmatprep.subr.bf16.mxu0 0
  %195 = vmatpush1.bf16.msra.mxu0 0
  %196 = vmatprep.subr.bf16.mxu0 0
  %197 = vmatpush1.bf16.msra.mxu0 0
  %198 = vmatprep.subr.bf16.mxu0 0
  %199 = vmatpush1.bf16.msra.mxu0 0
  %200 = vmatprep.subr.bf16.mxu0 0
  %201 = vmatpush1.bf16.msra.mxu0 0
  %202 = vmatprep.subr.bf16.mxu0 0
  %203 = vmatpush1.bf16.msra.mxu0 0
  %204 = vmatprep.subr.bf16.mxu0 0
  %205 = vmatpush1.bf16.msra.mxu0 0
  %206 = vmatprep.mubr.bf16.mxu0 0
  %207 = vmatmul.mubr.bf16.gmra.mrb[0].mxu0 %v110
  %v208 = vpop.f32.mrb[0].mxu0
  %v209 = vadd.f32 %v76, %v208
  %v210 = vpop.f32.mrb[0].mxu0
  %v211 = vpop.f32.mrb[0].mxu0
  %v212 = vadd.f32 %v76, %v211
  %v213 = vpop.f32.mrb[0].mxu0
  %214 = vmatprep.mubr.bf16.mxu0 0
  %215 = vmatmul.mubr.bf16.gmra.mrb[0].mxu0 %v111
  %v216 = vpop.f32.mrb[0].mxu0
  %v217 = vadd.f32 %v76, %v216
  %v218 = vpop.f32.mrb[0].mxu0
  %v219 = vpop.f32.mrb[0].mxu0
  %v220 = vadd.f32 %v76, %v219
  %v221 = vpop.f32.mrb[0].mxu0
  %222 = vmatprep.mubr.bf16.mxu0 0
  %223 = vmatmul.mubr.bf16.gmra.mrb[0].mxu0 %v112
  %v224 = vpop.f32.mrb[0].mxu0
  %v225 = vadd.f32 %v76, %v224
  %v226 = vpop.f32.mrb[0].mxu0
  %v227 = vpop.f32.mrb[0].mxu0
  %v228 = vadd.f32 %v76, %v227
  %v229 = vpop.f32.mrb[0].mxu0
  %230 = vmatprep.mubr.bf16.mxu0 0
  %231 = vmatmul.mubr.bf16.gmra.mrb[0].mxu0 %v113
  %v232 = vpop.f32.mrb[0].mxu0
  %v233 = vadd.f32 %v76, %v232
  %v234 = vpop.f32.mrb[0].mxu0
  %v235 = vpop.f32.mrb[0].mxu0
  %v236 = vadd.f32 %v76, %v235
  %v237 = vpop.f32.mrb[0].mxu0
  %238 = vmatprep.mubr.bf16.mxu0 0
  %239 = vmatmul.mubr.bf16.gmra.mrb[0].mxu0 %v114
  %v240 = vpop.f32.mrb[0].mxu0
  %v241 = vadd.f32 %v76, %v240
  %v242 = vpop.f32.mrb[0].mxu0
  %v243 = vpop.f32.mrb[0].mxu0
  %v244 = vadd.f32 %v76, %v243
  %v245 = vpop.f32.mrb[0].mxu0
  %246 = vmatprep.mubr.bf16.mxu0 0
  %247 = vmatmul.mubr.bf16.gmra.mrb[0].mxu0 %v115
  %v248 = vpop.f32.mrb[0].mxu0
  %v249 = vadd.f32 %v76, %v248
  %v250 = vpop.f32.mrb[0].mxu0
  %v251 = vpop.f32.mrb[0].mxu0
  %v252 = vadd.f32 %v76, %v251
  %v253 = vpop.f32.mrb[0].mxu0
  %254 = vmatprep.mubr.bf16.mxu0 0
  %255 = vmatmul.mubr.bf16.gmra.mrb[0].mxu0 %v116
  %v256 = vpop.f32.mrb[0].mxu0
  %v257 = vadd.f32 %v76, %v256
  %v258 = vpop.f32.mrb[0].mxu0
  %v259 = vpop.f32.mrb[0].mxu0
  %v260 = vadd.f32 %v76, %v259
  %v261 = vpop.f32.mrb[0].mxu0
  %262 = vmatprep.mubr.bf16.mxu0 0
  %263 = vmatmul.mubr.bf16.gmra.mrb[0].mxu0 %v117
  %v264 = vpop.f32.mrb[0].mxu0
  %v265 = vadd.f32 %v76, %v264
  %v266 = vpop.f32.mrb[0].mxu0
  %v267 = vpop.f32.mrb[0].mxu0
  %v268 = vadd.f32 %v76, %v267
  %v269 = vpop.f32.mrb[0].mxu0
  %270 = vdwg.mxu0
  %vm271 = vcmp.ge.f32.partialorder %v209, 0.0
  %vm272 = vcmp.ge.f32.partialorder %v212, 0.0
  %vm273 = vcmp.ge.f32.partialorder %v217, 0.0
  %vm274 = vcmp.ge.f32.partialorder %v220, 0.0
  %vm275 = vcmp.ge.f32.partialorder %v225, 0.0
  %vm276 = vcmp.ge.f32.partialorder %v228, 0.0
  %vm277 = vcmp.ge.f32.partialorder %v233, 0.0
  %vm278 = vcmp.ge.f32.partialorder %v236, 0.0
  %vm279 = vcmp.ge.f32.partialorder %v241, 0.0
  %vm280 = vcmp.ge.f32.partialorder %v244, 0.0
  %vm281 = vcmp.ge.f32.partialorder %v249, 0.0
  %vm282 = vcmp.ge.f32.partialorder %v252, 0.0
  %vm283 = vcmp.ge.f32.partialorder %v257, 0.0
  %vm284 = vcmp.ge.f32.partialorder %v260, 0.0
  %vm285 = vcmp.ge.f32.partialorder %v265, 0.0
  %vm286 = vcmp.ge.f32.partialorder %v268, 0.0
  %v287 = vmul.f32 %v209, 0.01
  %v288 = vmul.f32 %v212, 0.01
  %v289 = vmul.f32 %v217, 0.01
  %v290 = vmul.f32 %v220, 0.01
  %v291 = vmul.f32 %v225, 0.01
  %v292 = vmul.f32 %v228, 0.01
  %v293 = vmul.f32 %v233, 0.01
  %v294 = vmul.f32 %v236, 0.01
  %v295 = vmul.f32 %v241, 0.01
  %v296 = vmul.f32 %v244, 0.01
  %v297 = vmul.f32 %v249, 0.01
  %v298 = vmul.f32 %v252, 0.01
  %v299 = vmul.f32 %v257, 0.01
  %v300 = vmul.f32 %v260, 0.01
  %v301 = vmul.f32 %v265, 0.01
  %v302 = vmul.f32 %v268, 0.01
  %v303 = vsel %vm271, %v209, %v287
  %v304 = vsel %vm272, %v212, %v288
  %v305 = vsel %vm273, %v217, %v289
  %v306 = vsel %vm274, %v220, %v290
  %v307 = vsel %vm275, %v225, %v291
  %v308 = vsel %vm276, %v228, %v292
  %v309 = vsel %vm277, %v233, %v293
  %v310 = vsel %vm278, %v236, %v294
  %v311 = vsel %vm279, %v241, %v295
  %v312 = vsel %vm280, %v244, %v296
  %v313 = vsel %vm281, %v249, %v297
  %v314 = vsel %vm282, %v252, %v298
  %v315 = vsel %vm283, %v257, %v299
  %v316 = vsel %vm284, %v260, %v300
  %v317 = vsel %vm285, %v265, %v301
  %v318 = vsel %vm286, %v268, %v302
  %v319 = vadd.f32 %v303, %v304
  %v320 = vadd.f32 %v319, %v305
  %v321 = vadd.f32 %v320, %v306
  %v322 = vadd.f32 %v321, %v307
  %v323 = vadd.f32 %v322, %v308
  %v324 = vadd.f32 %v323, %v309
  %v325 = vadd.f32 %v324, %v310
  %v326 = vadd.f32 %v325, %v311
  %v327 = vadd.f32 %v326, %v312
  %v328 = vadd.f32 %v327, %v313
  %v329 = vadd.f32 %v328, %v314
  %v330 = vadd.f32 %v329, %v315
  %v331 = vadd.f32 %v330, %v316
  %v332 = vadd.f32 %v331, %v317
  %v333 = vadd.f32 %v332, %v318
  %v334 = vrot.slane %v333, 4
  %v335 = vadd.f32 %v333, %v334
  %v336 = vrot.slane %v335, 2
  %v337 = vadd.f32 %v335, %v336
  %v338 = vrot.slane %v337, 1
  %v339 = vadd.f32 %v337, %v338
  %v340 = vrcp.pop 128.0
  %v341 = vmul.f32 %v339, %v340
  %v342 = vsub.f32 %v303, %v341
  %v343 = vsub.f32 %v304, %v341
  %v344 = vsub.f32 %v305, %v341
  %v345 = vsub.f32 %v306, %v341
  %v346 = vsub.f32 %v307, %v341
  %v347 = vsub.f32 %v308, %v341
  %v348 = vsub.f32 %v309, %v341
  %v349 = vsub.f32 %v310, %v341
  %v350 = vsub.f32 %v311, %v341
  %v351 = vsub.f32 %v312, %v341
  %v352 = vsub.f32 %v313, %v341
  %v353 = vsub.f32 %v314, %v341
  %v354 = vsub.f32 %v315, %v341
  %v355 = vsub.f32 %v316, %v341
  %v356 = vsub.f32 %v317, %v341
  %v357 = vsub.f32 %v318, %v341
  %v358 = vmul.f32 %v342, %v342
  %v359 = vmul.f32 %v343, %v343
  %v360 = vmul.f32 %v344, %v344
  %v361 = vmul.f32 %v345, %v345
  %v362 = vmul.f32 %v346, %v346
  %v363 = vmul.f32 %v347, %v347
  %v364 = vmul.f32 %v348, %v348
  %v365 = vmul.f32 %v349, %v349
  %v366 = vmul.f32 %v350, %v350
  %v367 = vmul.f32 %v351, %v351
  %v368 = vmul.f32 %v352, %v352
  %v369 = vmul.f32 %v353, %v353
  %v370 = vmul.f32 %v354, %v354
  %v371 = vmul.f32 %v355, %v355
  %v372 = vmul.f32 %v356, %v356
  %v373 = vmul.f32 %v357, %v357
  %v374 = vadd.f32 %v358, %v359
  %v375 = vadd.f32 %v374, %v360
  %v376 = vadd.f32 %v375, %v361
  %v377 = vadd.f32 %v376, %v362
  %v378 = vadd.f32 %v377, %v363
  %v379 = vadd.f32 %v378, %v364
  %v380 = vadd.f32 %v379, %v365
  %v381 = vadd.f32 %v380, %v366
  %v382 = vadd.f32 %v381, %v367
  %v383 = vadd.f32 %v382, %v368
  %v384 = vadd.f32 %v383, %v369
  %v385 = vadd.f32 %v384, %v370
  %v386 = vadd.f32 %v385, %v371
  %v387 = vadd.f32 %v386, %v372
  %v388 = vadd.f32 %v387, %v373
  %v389 = vrot.slane %v388, 4
  %v390 = vadd.f32 %v388, %v389
  %v391 = vrot.slane %v390, 2
  %v392 = vadd.f32 %v390, %v391
  %v393 = vrot.slane %v392, 1
  %v394 = vadd.f32 %v392, %v393
  %v395 = vmul.f32 %v394, %v340
  %v396 = vadd.f32 %v395, 1e-05
  %v397 = vrsqrt.pop %v396
  %v398 = vmul.f32 %v342, %v397
  %v399 = vmul.f32 %v343, %v397
  %v400 = vmul.f32 %v344, %v397
  %v401 = vmul.f32 %v345, %v397
  %v402 = vmul.f32 %v346, %v397
  %v403 = vmul.f32 %v347, %v397
  %v404 = vmul.f32 %v348, %v397
  %v405 = vmul.f32 %v349, %v397
  %v406 = vmul.f32 %v350, %v397
  %v407 = vmul.f32 %v351, %v397
  %v408 = vmul.f32 %v352, %v397
  %v409 = vmul.f32 %v353, %v397
  %v410 = vmul.f32 %v354, %v397
  %v411 = vmul.f32 %v355, %v397
  %v412 = vmul.f32 %v356, %v397
  %v413 = vmul.f32 %v357, %v397
  %414 = vst [vmem:[#allocation2] sm:$0xff] 0.0
  %415 = vst [vmem:[#allocation2 + $0x8] sm:$0xff] 0.0
  %416 = vst [vmem:[#allocation2 + $0x10] sm:$0xff] 0.0
  %417 = vst [vmem:[#allocation2 + $0x18] sm:$0xff] 0.0
  %418 = vst [vmem:[#allocation2 + $0x20] sm:$0xff] 0.0
  %419 = vst [vmem:[#allocation2 + $0x28] sm:$0xff] 0.0
  %420 = vst [vmem:[#allocation2 + $0x30] sm:$0xff] 0.0
  %421 = vst [vmem:[#allocation2 + $0x38] sm:$0xff] 0.0
  %422 = vst [vmem:[#allocation2 + $0x40] sm:$0xff] 0.0
  %423 = vst [vmem:[#allocation2 + $0x48] sm:$0xff] 0.0
  %424 = vst [vmem:[#allocation2 + $0x50] sm:$0xff] 0.0
  %425 = vst [vmem:[#allocation2 + $0x58] sm:$0xff] 0.0
  %426 = vst [vmem:[#allocation2 + $0x60] sm:$0xff] 0.0
  %427 = vst [vmem:[#allocation2 + $0x68] sm:$0xff] 0.0
  %428 = vst [vmem:[#allocation2 + $0x70] sm:$0xff] 0.0
  %429 = vst [vmem:[#allocation2 + $0x78] sm:$0xff] 0.0
  %430 = vst [vmem:[#allocation2 + $0x80] sm:$0xff] 0.0
  %431 = vst [vmem:[#allocation2 + $0x88] sm:$0xff] 0.0
  %432 = vst [vmem:[#allocation2 + $0x90] sm:$0xff] 0.0
  %433 = vst [vmem:[#allocation2 + $0x98] sm:$0xff] 0.0
  %434 = vst [vmem:[#allocation2 + $0xa0] sm:$0xff] 0.0
  %435 = vst [vmem:[#allocation2 + $0xa8] sm:$0xff] 0.0
  %436 = vst [vmem:[#allocation2 + $0xb0] sm:$0xff] 0.0
  %437 = vst [vmem:[#allocation2 + $0xb8] sm:$0xff] 0.0
  %438 = vst [vmem:[#allocation2 + $0xc0] sm:$0xff] 0.0
  %439 = vst [vmem:[#allocation2 + $0xb] sm:$0xff] %v398
  %440 = vst [vmem:[#allocation2 + $0x15] sm:$0xff] %v399
  %441 = vst [vmem:[#allocation2 + $0x1f] sm:$0xff] %v400
  %442 = vst [vmem:[#allocation2 + $0x29] sm:$0xff] %v401
  %443 = vst [vmem:[#allocation2 + $0x33] sm:$0xff] %v402
  %444 = vst [vmem:[#allocation2 + $0x3d] sm:$0xff] %v403
  %445 = vst [vmem:[#allocation2 + $0x47] sm:$0xff] %v404
  %446 = vst [vmem:[#allocation2 + $0x51] sm:$0xff] %v405
  %447 = vst [vmem:[#allocation2 + $0x6f] sm:$0xff] %v406
  %448 = vst [vmem:[#allocation2 + $0x79] sm:$0xff] %v407
  %449 = vst [vmem:[#allocation2 + $0x83] sm:$0xff] %v408
  %450 = vst [vmem:[#allocation2 + $0x8d] sm:$0xff] %v409
  %451 = vst [vmem:[#allocation2 + $0x97] sm:$0xff] %v410
  %452 = vst [vmem:[#allocation2 + $0xa1] sm:$0xff] %v411
  %453 = vst [vmem:[#allocation2 + $0xab] sm:$0xff] %v412
  %454 = vst [vmem:[#allocation2 + $0xb5] sm:$0xff] %v413
  %v455 = vld [vmem:[#allocation2] ss:$2 sm:$0xf]
  %s456 = scalar_lea.vmem [#allocation2], 20
  %v457 = vld [vmem:[%s456] ss:$2 sm:$0xf]
  %s458 = scalar_lea.vmem [#allocation2], 40
  %v459 = vld [vmem:[%s458] ss:$2 sm:$0xf]
  %s460 = scalar_lea.vmem [#allocation2], 60
  %v461 = vld [vmem:[%s460] ss:$2 sm:$0xf]
  %s462 = scalar_lea.vmem [#allocation2], 100
  %v463 = vld [vmem:[%s462] ss:$2 sm:$0xf]
  %s464 = scalar_lea.vmem [#allocation2], 120
  %v465 = vld [vmem:[%s464] ss:$2 sm:$0xf]
  %s466 = scalar_lea.vmem [#allocation2], 140
  %v467 = vld [vmem:[%s466] ss:$2 sm:$0xf]
  %s468 = scalar_lea.vmem [#allocation2], 160
  %v469 = vld [vmem:[%s468] ss:$2 sm:$0xf]
  %v471 = vrot.slane %v457, 4
  %v474 = vrot.slane %v461, 4
  %v477 = vrot.slane %v465, 4
  %v480 = vrot.slane %v469, 4
  %vm482 = vcmask 1043456
  %v483 = vsel %vm482, %v455, %v471
  %v484 = vsel %vm482, %v459, %v474
  %v485 = vsel %vm482, %v463, %v477
  %v486 = vsel %vm482, %v467, %v480
  %s487 = scalar_lea.vmem [#allocation2], 1
  %v488 = vld [vmem:[%s487] ss:$2 sm:$0xf]
  %s489 = scalar_lea.vmem [#allocation2], 21
  %v490 = vld [vmem:[%s489] ss:$2 sm:$0xf]
  %s491 = scalar_lea.vmem [#allocation2], 41
  %v492 = vld [vmem:[%s491] ss:$2 sm:$0xf]
  %s493 = scalar_lea.vmem [#allocation2], 61
  %v494 = vld [vmem:[%s493] ss:$2 sm:$0xf]
  %s495 = scalar_lea.vmem [#allocation2], 101
  %v496 = vld [vmem:[%s495] ss:$2 sm:$0xf]
  %s497 = scalar_lea.vmem [#allocation2], 121
  %v498 = vld [vmem:[%s497] ss:$2 sm:$0xf]
  %s499 = scalar_lea.vmem [#allocation2], 141
  %v500 = vld [vmem:[%s499] ss:$2 sm:$0xf]
  %s501 = scalar_lea.vmem [#allocation2], 161
  %v502 = vld [vmem:[%s501] ss:$2 sm:$0xf]
  %v504 = vrot.slane %v490, 4
  %v507 = vrot.slane %v494, 4
  %v510 = vrot.slane %v498, 4
  %v513 = vrot.slane %v502, 4
  %v515 = vsel %vm482, %v488, %v504
  %v516 = vsel %vm482, %v492, %v507
  %v517 = vsel %vm482, %v496, %v510
  %v518 = vsel %vm482, %v500, %v513
  %s519 = scalar_lea.vmem [#allocation2], 2
  %v520 = vld [vmem:[%s519] ss:$2 sm:$0xf]
  %s521 = scalar_lea.vmem [#allocation2], 22
  %v522 = vld [vmem:[%s521] ss:$2 sm:$0xf]
  %s523 = scalar_lea.vmem [#allocation2], 42
  %v524 = vld [vmem:[%s523] ss:$2 sm:$0xf]
  %s525 = scalar_lea.vmem [#allocation2], 62
  %v526 = vld [vmem:[%s525] ss:$2 sm:$0xf]
  %s527 = scalar_lea.vmem [#allocation2], 102
  %v528 = vld [vmem:[%s527] ss:$2 sm:$0xf]
  %s529 = scalar_lea.vmem [#allocation2], 122
  %v530 = vld [vmem:[%s529] ss:$2 sm:$0xf]
  %s531 = scalar_lea.vmem [#allocation2], 142
  %v532 = vld [vmem:[%s531] ss:$2 sm:$0xf]
  %s533 = scalar_lea.vmem [#allocation2], 162
  %v534 = vld [vmem:[%s533] ss:$2 sm:$0xf]
  %v536 = vrot.slane %v522, 4
  %v539 = vrot.slane %v526, 4
  %v542 = vrot.slane %v530, 4
  %v545 = vrot.slane %v534, 4
  %v547 = vsel %vm482, %v520, %v536
  %v548 = vsel %vm482, %v524, %v539
  %v549 = vsel %vm482, %v528, %v542
  %v550 = vsel %vm482, %v532, %v545
  %s551 = scalar_lea.vmem [#allocation2], 10
  %v552 = vld [vmem:[%s551] ss:$2 sm:$0xf]
  %s553 = scalar_lea.vmem [#allocation2], 30
  %v554 = vld [vmem:[%s553] ss:$2 sm:$0xf]
  %s555 = scalar_lea.vmem [#allocation2], 50
  %v556 = vld [vmem:[%s555] ss:$2 sm:$0xf]
  %s557 = scalar_lea.vmem [#allocation2], 70
  %v558 = vld [vmem:[%s557] ss:$2 sm:$0xf]
  %s559 = scalar_lea.vmem [#allocation2], 110
  %v560 = vld [vmem:[%s559] ss:$2 sm:$0xf]
  %s561 = scalar_lea.vmem [#allocation2], 130
  %v562 = vld [vmem:[%s561] ss:$2 sm:$0xf]
  %s563 = scalar_lea.vmem [#allocation2], 150
  %v564 = vld [vmem:[%s563] ss:$2 sm:$0xf]
  %s565 = scalar_lea.vmem [#allocation2], 170
  %v566 = vld [vmem:[%s565] ss:$2 sm:$0xf]
  %v568 = vrot.slane %v554, 4
  %v571 = vrot.slane %v558, 4
  %v574 = vrot.slane %v562, 4
  %v577 = vrot.slane %v566, 4
  %v579 = vsel %vm482, %v552, %v568
  %v580 = vsel %vm482, %v556, %v571
  %v581 = vsel %vm482, %v560, %v574
  %v582 = vsel %vm482, %v564, %v577
  %s583 = scalar_lea.vmem [#allocation2], 11
  %v584 = vld [vmem:[%s583] ss:$2 sm:$0xf]
  %s585 = scalar_lea.vmem [#allocation2], 31
  %v586 = vld [vmem:[%s585] ss:$2 sm:$0xf]
  %s587 = scalar_lea.vmem [#allocation2], 51
  %v588 = vld [vmem:[%s587] ss:$2 sm:$0xf]
  %s589 = scalar_lea.vmem [#allocation2], 71
  %v590 = vld [vmem:[%s589] ss:$2 sm:$0xf]
  %s591 = scalar_lea.vmem [#allocation2], 111
  %v592 = vld [vmem:[%s591] ss:$2 sm:$0xf]
  %s593 = scalar_lea.vmem [#allocation2], 131
  %v594 = vld [vmem:[%s593] ss:$2 sm:$0xf]
  %s595 = scalar_lea.vmem [#allocation2], 151
  %v596 = vld [vmem:[%s595] ss:$2 sm:$0xf]
  %s597 = scalar_lea.vmem [#allocation2], 171
  %v598 = vld [vmem:[%s597] ss:$2 sm:$0xf]
  %v600 = vrot.slane %v586, 4
  %v603 = vrot.slane %v590, 4
  %v606 = vrot.slane %v594, 4
  %v609 = vrot.slane %v598, 4
  %v611 = vsel %vm482, %v584, %v600
  %v612 = vsel %vm482, %v588, %v603
  %v613 = vsel %vm482, %v592, %v606
  %v614 = vsel %vm482, %v596, %v609
  %s615 = scalar_lea.vmem [#allocation2], 12
  %v616 = vld [vmem:[%s615] ss:$2 sm:$0xf]
  %s617 = scalar_lea.vmem [#allocation2], 32
  %v618 = vld [vmem:[%s617] ss:$2 sm:$0xf]
  %s619 = scalar_lea.vmem [#allocation2], 52
  %v620 = vld [vmem:[%s619] ss:$2 sm:$0xf]
  %s621 = scalar_lea.vmem [#allocation2], 72
  %v622 = vld [vmem:[%s621] ss:$2 sm:$0xf]
  %s623 = scalar_lea.vmem [#allocation2], 112
  %v624 = vld [vmem:[%s623] ss:$2 sm:$0xf]
  %s625 = scalar_lea.vmem [#allocation2], 132
  %v626 = vld [vmem:[%s625] ss:$2 sm:$0xf]
  %s627 = scalar_lea.vmem [#allocation2], 152
  %v628 = vld [vmem:[%s627] ss:$2 sm:$0xf]
  %s629 = scalar_lea.vmem [#allocation2], 172
  %v630 = vld [vmem:[%s629] ss:$2 sm:$0xf]
  %v632 = vrot.slane %v618, 4
  %v635 = vrot.slane %v622, 4
  %v638 = vrot.slane %v626, 4
  %v641 = vrot.slane %v630, 4
  %v643 = vsel %vm482, %v616, %v632
  %v644 = vsel %vm482, %v620, %v635
  %v645 = vsel %vm482, %v624, %v638
  %v646 = vsel %vm482, %v628, %v641
  %s647 = scalar_lea.vmem [#allocation2], 80
  %v648 = vld [vmem:[%s647] ss:$2 sm:$0xf]
  %s649 = scalar_lea.vmem [#allocation2], 180
  %v650 = vld [vmem:[%s649] ss:$2 sm:$0xf]
  %v652 = vrot.slane %v459, 4
  %v655 = vrot.slane %v648, 4
  %v658 = vrot.slane %v467, 4
  %v661 = vrot.slane %v650, 4
  %v663 = vsel %vm482, %v457, %v652
  %v664 = vsel %vm482, %v461, %v655
  %v665 = vsel %vm482, %v465, %v658
  %v666 = vsel %vm482, %v469, %v661
  %s667 = scalar_lea.vmem [#allocation2], 81
  %v668 = vld [vmem:[%s667] ss:$2 sm:$0xf]
  %s669 = scalar_lea.vmem [#allocation2], 181
  %v670 = vld [vmem:[%s669] ss:$2 sm:$0xf]
  %v672 = vrot.slane %v492, 4
  %v675 = vrot.slane %v668, 4
  %v678 = vrot.slane %v500, 4
  %v681 = vrot.slane %v670, 4
  %v683 = vsel %vm482, %v490, %v672
  %v684 = vsel %vm482, %v494, %v675
  %v685 = vsel %vm482, %v498, %v678
  %v686 = vsel %vm482, %v502, %v681
  %s687 = scalar_lea.vmem [#allocation2], 82
  %v688 = vld [vmem:[%s687] ss:$2 sm:$0xf]
  %s689 = scalar_lea.vmem [#allocation2], 182
  %v690 = vld [vmem:[%s689] ss:$2 sm:$0xf]
  %v692 = vrot.slane %v524, 4
  %v695 = vrot.slane %v688, 4
  %v698 = vrot.slane %v532, 4
  %v701 = vrot.slane %v690, 4
  %v703 = vsel %vm482, %v522, %v692
  %v704 = vsel %vm482, %v526, %v695
  %v705 = vsel %vm482, %v530, %v698
  %v706 = vsel %vm482, %v534, %v701
  %v707 = vpack.c.bf16 %v484, %v483
  %v708 = vpack.c.bf16 %v516, %v515
  %v709 = vpack.c.bf16 %v548, %v547
  %v710 = vpack.c.bf16 %v580, %v579
  %v711 = vpack.c.bf16 %v612, %v611
  %v712 = vpack.c.bf16 %v644, %v643
  %v713 = vpack.c.bf16 %v664, %v663
  %v714 = vpack.c.bf16 %v684, %v683
  %v715 = vpack.c.bf16 %v704, %v703
  %v716 = vpack.c.bf16 %v486, %v485
  %v717 = vpack.c.bf16 %v518, %v517
  %v718 = vpack.c.bf16 %v550, %v549
  %v719 = vpack.c.bf16 %v582, %v581
  %v720 = vpack.c.bf16 %v614, %v613
  %v721 = vpack.c.bf16 %v646, %v645
  %v722 = vpack.c.bf16 %v666, %v665
  %v723 = vpack.c.bf16 %v686, %v685
  %v724 = vpack.c.bf16 %v706, %v705
  %v725 = vld [vmem:[%s3] sm:$0xf]
  %v726 = vld [vmem:[%s3 + $0x4] sm:$0xf]
  %v727 = vld [vmem:[%s3 + $0x8] sm:$0xf]
  %v728 = vld [vmem:[%s3 + $0xc] sm:$0xf]
  %v729 = vld [vmem:[%s3 + $0x10] sm:$0xf]
  %v730 = vld [vmem:[%s3 + $0x14] sm:$0xf]
  %v731 = vld [vmem:[%s3 + $0x18] sm:$0xf]
  %v732 = vld [vmem:[%s3 + $0x1c] sm:$0xf]
  %v733 = vld [vmem:[%s3 + $0x20] sm:$0xf]
  %v734 = vld [vmem:[%s3 + $0x24] sm:$0xf]
  %v735 = vld [vmem:[%s3 + $0x28] sm:$0xf]
  %v736 = vld [vmem:[%s3 + $0x2c] sm:$0xf]
  %v737 = vld [vmem:[%s3 + $0x30] sm:$0xf]
  %v738 = vld [vmem:[%s3 + $0x34] sm:$0xf]
  %v739 = vld [vmem:[%s3 + $0x38] sm:$0xf]
  %v740 = vld [vmem:[%s3 + $0x3c] sm:$0xf]
  %v741 = vld [vmem:[%s3 + $0x40] sm:$0xf]
  %v742 = vld [vmem:[%s3 + $0x44] sm:$0xf]
  %v743 = vld [vmem:[%s3 + $0x48] sm:$0xf]
  %v744 = vld [vmem:[%s3 + $0x4c] sm:$0xf]
  %v745 = vld [vmem:[%s3 + $0x50] sm:$0xf]
  %v746 = vld [vmem:[%s3 + $0x54] sm:$0xf]
  %v747 = vld [vmem:[%s3 + $0x58] sm:$0xf]
  %v748 = vld [vmem:[%s3 + $0x5c] sm:$0xf]
  %v749 = vld [vmem:[%s3 + $0x60] sm:$0xf]
  %v750 = vld [vmem:[%s3 + $0x64] sm:$0xf]
  %v751 = vld [vmem:[%s3 + $0x68] sm:$0xf]
  %v752 = vld [vmem:[%s3 + $0x6c] sm:$0xf]
  %v753 = vld [vmem:[%s3 + $0x70] sm:$0xf]
  %v754 = vld [vmem:[%s3 + $0x74] sm:$0xf]
  %v755 = vld [vmem:[%s3 + $0x78] sm:$0xf]
  %v756 = vld [vmem:[%s3 + $0x7c] sm:$0xf]
  %v757 = vld [vmem:[%s3 + $0x80] sm:$0xf]
  %v758 = vld [vmem:[%s3 + $0x84] sm:$0xf]
  %v759 = vld [vmem:[%s3 + $0x88] sm:$0xf]
  %v760 = vld [vmem:[%s3 + $0x8c] sm:$0xf]
  %v761 = vld [vmem:[%s3 + $0x90] sm:$0xf]
  %v762 = vld [vmem:[%s3 + $0x94] sm:$0xf]
  %v763 = vld [vmem:[%s3 + $0x98] sm:$0xf]
  %v764 = vld [vmem:[%s3 + $0x9c] sm:$0xf]
  %v765 = vld [vmem:[%s3 + $0xa0] sm:$0xf]
  %v766 = vld [vmem:[%s3 + $0xa4] sm:$0xf]
  %v767 = vld [vmem:[%s3 + $0xa8] sm:$0xf]
  %v768 = vld [vmem:[%s3 + $0xac] sm:$0xf]
  %v769 = vld [vmem:[%s3 + $0xb0] sm:$0xf]
  %v770 = vld [vmem:[%s3 + $0xb4] sm:$0xf]
  %v771 = vld [vmem:[%s3 + $0xb8] sm:$0xf]
  %v772 = vld [vmem:[%s3 + $0xbc] sm:$0xf]
  %v773 = vld [vmem:[%s3 + $0xc0] sm:$0xf]
  %v774 = vld [vmem:[%s3 + $0xc4] sm:$0xf]
  %v775 = vld [vmem:[%s3 + $0xc8] sm:$0xf]
  %v776 = vld [vmem:[%s3 + $0xcc] sm:$0xf]
  %v777 = vld [vmem:[%s3 + $0xd0] sm:$0xf]
  %v778 = vld [vmem:[%s3 + $0xd4] sm:$0xf]
  %v779 = vld [vmem:[%s3 + $0xd8] sm:$0xf]
  %v780 = vld [vmem:[%s3 + $0xdc] sm:$0xf]
  %v781 = vld [vmem:[%s3 + $0xe0] sm:$0xf]
  %v782 = vld [vmem:[%s3 + $0xe4] sm:$0xf]
  %v783 = vld [vmem:[%s3 + $0xe8] sm:$0xf]
  %v784 = vld [vmem:[%s3 + $0xec] sm:$0xf]
  %v785 = vld [vmem:[%s3 + $0xf0] sm:$0xf]
  %v786 = vld [vmem:[%s3 + $0xf4] sm:$0xf]
  %v787 = vld [vmem:[%s3 + $0xf8] sm:$0xf]
  %v788 = vld [vmem:[%s3 + $0xfc] sm:$0xf]
  %v789 = vld [vmem:[%s3 + $0x100] sm:$0xf]
  %v790 = vld [vmem:[%s3 + $0x104] sm:$0xf]
  %v791 = vld [vmem:[%s3 + $0x108] sm:$0xf]
  %v792 = vld [vmem:[%s3 + $0x10c] sm:$0xf]
  %v793 = vld [vmem:[%s3 + $0x110] sm:$0xf]
  %v794 = vld [vmem:[%s3 + $0x114] sm:$0xf]
  %v795 = vld [vmem:[%s3 + $0x118] sm:$0xf]
  %v796 = vld [vmem:[%s3 + $0x11c] sm:$0xf]
  %v797 = vld [vmem:[%s3 + $0x120] sm:$0xf]
  %v798 = vld [vmem:[%s3 + $0x124] sm:$0xf]
  %v799 = vld [vmem:[%s3 + $0x128] sm:$0xf]
  %v800 = vld [vmem:[%s3 + $0x12c] sm:$0xf]
  %v801 = vld [vmem:[%s3 + $0x130] sm:$0xf]
  %v802 = vld [vmem:[%s3 + $0x134] sm:$0xf]
  %v803 = vld [vmem:[%s3 + $0x138] sm:$0xf]
  %v804 = vld [vmem:[%s3 + $0x13c] sm:$0xf]
  %v805 = vld [vmem:[%s3 + $0x140] sm:$0xf]
  %v806 = vld [vmem:[%s3 + $0x144] sm:$0xf]
  %v807 = vld [vmem:[%s3 + $0x148] sm:$0xf]
  %v808 = vld [vmem:[%s3 + $0x14c] sm:$0xf]
  %v809 = vld [vmem:[%s3 + $0x150] sm:$0xf]
  %v810 = vld [vmem:[%s3 + $0x154] sm:$0xf]
  %v811 = vld [vmem:[%s3 + $0x158] sm:$0xf]
  %v812 = vld [vmem:[%s3 + $0x15c] sm:$0xf]
  %v813 = vld [vmem:[%s3 + $0x160] sm:$0xf]
  %v814 = vld [vmem:[%s3 + $0x164] sm:$0xf]
  %v815 = vld [vmem:[%s3 + $0x168] sm:$0xf]
  %v816 = vld [vmem:[%s3 + $0x16c] sm:$0xf]
  %v817 = vld [vmem:[%s3 + $0x170] sm:$0xf]
  %v818 = vld [vmem:[%s3 + $0x174] sm:$0xf]
  %v819 = vld [vmem:[%s3 + $0x178] sm:$0xf]
  %v820 = vld [vmem:[%s3 + $0x17c] sm:$0xf]
  %v821 = vld [vmem:[%s3 + $0x180] sm:$0xf]
  %v822 = vld [vmem:[%s3 + $0x184] sm:$0xf]
  %v823 = vld [vmem:[%s3 + $0x188] sm:$0xf]
  %v824 = vld [vmem:[%s3 + $0x18c] sm:$0xf]
  %v825 = vld [vmem:[%s3 + $0x190] sm:$0xf]
  %v826 = vld [vmem:[%s3 + $0x194] sm:$0xf]
  %v827 = vld [vmem:[%s3 + $0x198] sm:$0xf]
  %v828 = vld [vmem:[%s3 + $0x19c] sm:$0xf]
  %v829 = vld [vmem:[%s3 + $0x1a0] sm:$0xf]
  %v830 = vld [vmem:[%s3 + $0x1a4] sm:$0xf]
  %v831 = vld [vmem:[%s3 + $0x1a8] sm:$0xf]
  %v832 = vld [vmem:[%s3 + $0x1ac] sm:$0xf]
  %v833 = vld [vmem:[%s3 + $0x1b0] sm:$0xf]
  %v834 = vld [vmem:[%s3 + $0x1b4] sm:$0xf]
  %v835 = vld [vmem:[%s3 + $0x1b8] sm:$0xf]
  %v836 = vld [vmem:[%s3 + $0x1bc] sm:$0xf]
  %v837 = vld [vmem:[%s3 + $0x1c0] sm:$0xf]
  %v838 = vld [vmem:[%s3 + $0x1c4] sm:$0xf]
  %v839 = vld [vmem:[%s3 + $0x1c8] sm:$0xf]
  %v840 = vld [vmem:[%s3 + $0x1cc] sm:$0xf]
  %v841 = vld [vmem:[%s3 + $0x1d0] sm:$0xf]
  %v842 = vld [vmem:[%s3 + $0x1d4] sm:$0xf]
  %v843 = vld [vmem:[%s3 + $0x1d8] sm:$0xf]
  %v844 = vld [vmem:[%s3 + $0x1dc] sm:$0xf]
  %v845 = vld [vmem:[%s3 + $0x1e0] sm:$0xf]
  %v846 = vld [vmem:[%s3 + $0x1e4] sm:$0xf]
  %v847 = vld [vmem:[%s3 + $0x1e8] sm:$0xf]
  %v848 = vld [vmem:[%s3 + $0x1ec] sm:$0xf]
  %v849 = vld [vmem:[%s3 + $0x1f0] sm:$0xf]
  %v850 = vld [vmem:[%s3 + $0x1f4] sm:$0xf]
  %v851 = vld [vmem:[%s3 + $0x1f8] sm:$0xf]
  %v852 = vld [vmem:[%s3 + $0x1fc] sm:$0xf]
  %v853 = vld [vmem:[%s3 + $0x200] sm:$0xf]
  %v854 = vld [vmem:[%s3 + $0x204] sm:$0xf]
  %v855 = vld [vmem:[%s3 + $0x208] sm:$0xf]
  %v856 = vld [vmem:[%s3 + $0x20c] sm:$0xf]
  %v857 = vld [vmem:[%s3 + $0x210] sm:$0xf]
  %v858 = vld [vmem:[%s3 + $0x214] sm:$0xf]
  %v859 = vld [vmem:[%s3 + $0x218] sm:$0xf]
  %v860 = vld [vmem:[%s3 + $0x21c] sm:$0xf]
  %v861 = vld [vmem:[%s3 + $0x220] sm:$0xf]
  %v862 = vld [vmem:[%s3 + $0x224] sm:$0xf]
  %v863 = vld [vmem:[%s3 + $0x228] sm:$0xf]
  %v864 = vld [vmem:[%s3 + $0x22c] sm:$0xf]
  %v865 = vld [vmem:[%s3 + $0x230] sm:$0xf]
  %v866 = vld [vmem:[%s3 + $0x234] sm:$0xf]
  %v867 = vld [vmem:[%s3 + $0x238] sm:$0xf]
  %v868 = vld [vmem:[%s3 + $0x23c] sm:$0xf]
  %v869 = vld [vmem:[%s4] sm:$0x1]
  %v871 = vlaneseq
  %v872 = vshrl.u32 %v871, 7
  %v873 = vsub.s32 0, %v872
  %v874 = vrot.slane %v869, %v873
  %v1020 = vunpack.c.l.b16 %v725
  %v1021 = vunpack.c.l.b16 %v726
  %v1022 = vunpack.c.l.b16 %v727
  %v1023 = vunpack.c.l.b16 %v728
  %v1024 = vunpack.c.l.b16 %v729
  %v1025 = vunpack.c.l.b16 %v730
  %v1026 = vunpack.c.l.b16 %v731
  %v1027 = vunpack.c.l.b16 %v732
  %v1028 = vunpack.c.l.b16 %v733
  %v1029 = vunpack.c.l.b16 %v734
  %v1030 = vunpack.c.l.b16 %v735
  %v1031 = vunpack.c.l.b16 %v736
  %v1032 = vunpack.c.l.b16 %v737
  %v1033 = vunpack.c.l.b16 %v738
  %v1034 = vunpack.c.l.b16 %v739
  %v1035 = vunpack.c.l.b16 %v740
  %v1036 = vunpack.c.l.b16 %v741
  %v1037 = vunpack.c.l.b16 %v742
  %v1038 = vunpack.c.l.b16 %v743
  %v1039 = vunpack.c.l.b16 %v744
  %v1040 = vunpack.c.l.b16 %v745
  %v1041 = vunpack.c.l.b16 %v746
  %v1042 = vunpack.c.l.b16 %v747
  %v1043 = vunpack.c.l.b16 %v748
  %v1044 = vunpack.c.l.b16 %v749
  %v1045 = vunpack.c.l.b16 %v750
  %v1046 = vunpack.c.l.b16 %v751
  %v1047 = vunpack.c.l.b16 %v752
  %v1048 = vunpack.c.l.b16 %v753
  %v1049 = vunpack.c.l.b16 %v754
  %v1050 = vunpack.c.l.b16 %v755
  %v1051 = vunpack.c.l.b16 %v756
  %v1052 = vunpack.c.l.b16 %v757
  %v1053 = vunpack.c.l.b16 %v758
  %v1054 = vunpack.c.l.b16 %v759
  %v1055 = vunpack.c.l.b16 %v760
  %v1056 = vunpack.c.l.b16 %v761
  %v1057 = vunpack.c.l.b16 %v762
  %v1058 = vunpack.c.l.b16 %v763
  %v1059 = vunpack.c.l.b16 %v764
  %v1060 = vunpack.c.l.b16 %v765
  %v1061 = vunpack.c.l.b16 %v766
  %v1062 = vunpack.c.l.b16 %v767
  %v1063 = vunpack.c.l.b16 %v768
  %v1064 = vunpack.c.l.b16 %v769
  %v1065 = vunpack.c.l.b16 %v770
  %v1066 = vunpack.c.l.b16 %v771
  %v1067 = vunpack.c.l.b16 %v772
  %v1068 = vunpack.c.l.b16 %v773
  %v1069 = vunpack.c.l.b16 %v774
  %v1070 = vunpack.c.l.b16 %v775
  %v1071 = vunpack.c.l.b16 %v776
  %v1072 = vunpack.c.l.b16 %v777
  %v1073 = vunpack.c.l.b16 %v778
  %v1074 = vunpack.c.l.b16 %v779
  %v1075 = vunpack.c.l.b16 %v780
  %v1076 = vunpack.c.l.b16 %v781
  %v1077 = vunpack.c.l.b16 %v782
  %v1078 = vunpack.c.l.b16 %v783
  %v1079 = vunpack.c.l.b16 %v784
  %v1080 = vunpack.c.l.b16 %v785
  %v1081 = vunpack.c.l.b16 %v786
  %v1082 = vunpack.c.l.b16 %v787
  %v1083 = vunpack.c.l.b16 %v788
  %v1084 = vunpack.c.l.b16 %v789
  %v1085 = vunpack.c.l.b16 %v790
  %v1086 = vunpack.c.l.b16 %v791
  %v1087 = vunpack.c.l.b16 %v792
  %v1088 = vunpack.c.l.b16 %v793
  %v1089 = vunpack.c.l.b16 %v794
  %v1090 = vunpack.c.l.b16 %v795
  %v1091 = vunpack.c.l.b16 %v796
  %v1092 = vunpack.c.l.b16 %v797
  %v1093 = vunpack.c.l.b16 %v798
  %v1094 = vunpack.c.l.b16 %v799
  %v1095 = vunpack.c.l.b16 %v800
  %v1096 = vunpack.c.l.b16 %v801
  %v1097 = vunpack.c.l.b16 %v802
  %v1098 = vunpack.c.l.b16 %v803
  %v1099 = vunpack.c.l.b16 %v804
  %v1100 = vunpack.c.l.b16 %v805
  %v1101 = vunpack.c.l.b16 %v806
  %v1102 = vunpack.c.l.b16 %v807
  %v1103 = vunpack.c.l.b16 %v808
  %v1104 = vunpack.c.l.b16 %v809
  %v1105 = vunpack.c.l.b16 %v810
  %v1106 = vunpack.c.l.b16 %v811
  %v1107 = vunpack.c.l.b16 %v812
  %v1108 = vunpack.c.l.b16 %v813
  %v1109 = vunpack.c.l.b16 %v814
  %v1110 = vunpack.c.l.b16 %v815
  %v1111 = vunpack.c.l.b16 %v816
  %v1112 = vunpack.c.l.b16 %v817
  %v1113 = vunpack.c.l.b16 %v818
  %v1114 = vunpack.c.l.b16 %v819
  %v1115 = vunpack.c.l.b16 %v820
  %v1116 = vunpack.c.l.b16 %v821
  %v1117 = vunpack.c.l.b16 %v822
  %v1118 = vunpack.c.l.b16 %v823
  %v1119 = vunpack.c.l.b16 %v824
  %v1120 = vunpack.c.l.b16 %v825
  %v1121 = vunpack.c.l.b16 %v826
  %v1122 = vunpack.c.l.b16 %v827
  %v1123 = vunpack.c.l.b16 %v828
  %v1124 = vunpack.c.l.b16 %v829
  %v1125 = vunpack.c.l.b16 %v830
  %v1126 = vunpack.c.l.b16 %v831
  %v1127 = vunpack.c.l.b16 %v832
  %v1128 = vunpack.c.l.b16 %v833
  %v1129 = vunpack.c.l.b16 %v834
  %v1130 = vunpack.c.l.b16 %v835
  %v1131 = vunpack.c.l.b16 %v836
  %v1132 = vunpack.c.l.b16 %v837
  %v1133 = vunpack.c.l.b16 %v838
  %v1134 = vunpack.c.l.b16 %v839
  %v1135 = vunpack.c.l.b16 %v840
  %v1136 = vunpack.c.l.b16 %v841
  %v1137 = vunpack.c.l.b16 %v842
  %v1138 = vunpack.c.l.b16 %v843
  %v1139 = vunpack.c.l.b16 %v844
  %v1140 = vunpack.c.l.b16 %v845
  %v1141 = vunpack.c.l.b16 %v846
  %v1142 = vunpack.c.l.b16 %v847
  %v1143 = vunpack.c.l.b16 %v848
  %v1144 = vunpack.c.l.b16 %v849
  %v1145 = vunpack.c.l.b16 %v850
  %v1146 = vunpack.c.l.b16 %v851
  %v1147 = vunpack.c.l.b16 %v852
  %v1148 = vunpack.c.l.b16 %v853
  %v1149 = vunpack.c.l.b16 %v854
  %v1150 = vunpack.c.l.b16 %v855
  %v1151 = vunpack.c.l.b16 %v856
  %v1152 = vunpack.c.l.b16 %v857
  %v1153 = vunpack.c.l.b16 %v858
  %v1154 = vunpack.c.l.b16 %v859
  %v1155 = vunpack.c.l.b16 %v860
  %v1156 = vunpack.c.l.b16 %v861
  %v1157 = vunpack.c.l.b16 %v862
  %v1158 = vunpack.c.l.b16 %v863
  %v1159 = vunpack.c.l.b16 %v864
  %v1160 = vunpack.c.l.b16 %v865
  %v1161 = vunpack.c.l.b16 %v866
  %v1162 = vunpack.c.l.b16 %v867
  %v1163 = vunpack.c.l.b16 %v868
  %v1164 = vpack.c.b16 %v1021, %v1020
  %v1165 = vpack.c.b16 %v1023, %v1022
  %v1166 = vpack.c.b16 %v1025, %v1024
  %v1167 = vpack.c.b16 %v1027, %v1026
  %v1168 = vpack.c.b16 %v1029, %v1028
  %v1169 = vpack.c.b16 %v1031, %v1030
  %v1170 = vpack.c.b16 %v1033, %v1032
  %v1171 = vpack.c.b16 %v1035, %v1034
  %v1172 = vpack.c.b16 %v1037, %v1036
  %v1173 = vpack.c.b16 %v1039, %v1038
  %v1174 = vpack.c.b16 %v1041, %v1040
  %v1175 = vpack.c.b16 %v1043, %v1042
  %v1176 = vpack.c.b16 %v1045, %v1044
  %v1177 = vpack.c.b16 %v1047, %v1046
  %v1178 = vpack.c.b16 %v1049, %v1048
  %v1179 = vpack.c.b16 %v1051, %v1050
  %v1180 = vpack.c.b16 %v1053, %v1052
  %v1181 = vpack.c.b16 %v1055, %v1054
  %v1182 = vpack.c.b16 %v1057, %v1056
  %v1183 = vpack.c.b16 %v1059, %v1058
  %v1184 = vpack.c.b16 %v1061, %v1060
  %v1185 = vpack.c.b16 %v1063, %v1062
  %v1186 = vpack.c.b16 %v1065, %v1064
  %v1187 = vpack.c.b16 %v1067, %v1066
  %v1188 = vpack.c.b16 %v1069, %v1068
  %v1189 = vpack.c.b16 %v1071, %v1070
  %v1190 = vpack.c.b16 %v1073, %v1072
  %v1191 = vpack.c.b16 %v1075, %v1074
  %v1192 = vpack.c.b16 %v1077, %v1076
  %v1193 = vpack.c.b16 %v1079, %v1078
  %v1194 = vpack.c.b16 %v1081, %v1080
  %v1195 = vpack.c.b16 %v1083, %v1082
  %v1196 = vpack.c.b16 %v1085, %v1084
  %v1197 = vpack.c.b16 %v1087, %v1086
  %v1198 = vpack.c.b16 %v1089, %v1088
  %v1199 = vpack.c.b16 %v1091, %v1090
  %v1200 = vpack.c.b16 %v1093, %v1092
  %v1201 = vpack.c.b16 %v1095, %v1094
  %v1202 = vpack.c.b16 %v1097, %v1096
  %v1203 = vpack.c.b16 %v1099, %v1098
  %v1204 = vpack.c.b16 %v1101, %v1100
  %v1205 = vpack.c.b16 %v1103, %v1102
  %v1206 = vpack.c.b16 %v1105, %v1104
  %v1207 = vpack.c.b16 %v1107, %v1106
  %v1208 = vpack.c.b16 %v1109, %v1108
  %v1209 = vpack.c.b16 %v1111, %v1110
  %v1210 = vpack.c.b16 %v1113, %v1112
  %v1211 = vpack.c.b16 %v1115, %v1114
  %v1212 = vpack.c.b16 %v1117, %v1116
  %v1213 = vpack.c.b16 %v1119, %v1118
  %v1214 = vpack.c.b16 %v1121, %v1120
  %v1215 = vpack.c.b16 %v1123, %v1122
  %v1216 = vpack.c.b16 %v1125, %v1124
  %v1217 = vpack.c.b16 %v1127, %v1126
  %v1218 = vpack.c.b16 %v1129, %v1128
  %v1219 = vpack.c.b16 %v1131, %v1130
  %v1220 = vpack.c.b16 %v1133, %v1132
  %v1221 = vpack.c.b16 %v1135, %v1134
  %v1222 = vpack.c.b16 %v1137, %v1136
  %v1223 = vpack.c.b16 %v1139, %v1138
  %v1224 = vpack.c.b16 %v1141, %v1140
  %v1225 = vpack.c.b16 %v1143, %v1142
  %v1226 = vpack.c.b16 %v1145, %v1144
  %v1227 = vpack.c.b16 %v1147, %v1146
  %v1228 = vpack.c.b16 %v1149, %v1148
  %v1229 = vpack.c.b16 %v1151, %v1150
  %v1230 = vpack.c.b16 %v1153, %v1152
  %v1231 = vpack.c.b16 %v1155, %v1154
  %v1232 = vpack.c.b16 %v1157, %v1156
  %v1233 = vpack.c.b16 %v1159, %v1158
  %v1234 = vpack.c.b16 %v1161, %v1160
  %v1235 = vpack.c.b16 %v1163, %v1162
  %1308 = vmatprep.subr.bf16.mxu0 0
  %1309 = vmatpush1.bf16.msra.mxu0 %v1164
  %1310 = vmatprep.subr.bf16.mxu0 0
  %1311 = vmatpush1.bf16.msra.mxu0 %v1165
  %1312 = vmatprep.subr.bf16.mxu0 0
  %1313 = vmatpush1.bf16.msra.mxu0 %v1166
  %1314 = vmatprep.subr.bf16.mxu0 0
  %1315 = vmatpush1.bf16.msra.mxu0 %v1167
  %1316 = vmatprep.subr.bf16.mxu0 0
  %1317 = vmatpush1.bf16.msra.mxu0 %v1168
  %1318 = vmatprep.subr.bf16.mxu0 0
  %1319 = vmatpush1.bf16.msra.mxu0 %v1169
  %1320 = vmatprep.subr.bf16.mxu0 0
  %1321 = vmatpush1.bf16.msra.mxu0 %v1170
  %1322 = vmatprep.subr.bf16.mxu0 0
  %1323 = vmatpush1.bf16.msra.mxu0 %v1171
  %1324 = vmatprep.subr.bf16.mxu0 0
  %1325 = vmatpush1.bf16.msra.mxu0 %v1172
  %1326 = vmatprep.subr.bf16.mxu0 0
  %1327 = vmatpush1.bf16.msra.mxu0 %v1173
  %1328 = vmatprep.subr.bf16.mxu0 0
  %1329 = vmatpush1.bf16.msra.mxu0 %v1174
  %1330 = vmatprep.subr.bf16.mxu0 0
  %1331 = vmatpush1.bf16.msra.mxu0 %v1175
  %1332 = vmatprep.subr.bf16.mxu0 0
  %1333 = vmatpush1.bf16.msra.mxu0 %v1176
  %1334 = vmatprep.subr.bf16.mxu0 0
  %1335 = vmatpush1.bf16.msra.mxu0 %v1177
  %1336 = vmatprep.subr.bf16.mxu0 0
  %1337 = vmatpush1.bf16.msra.mxu0 %v1178
  %1338 = vmatprep.subr.bf16.mxu0 0
  %1339 = vmatpush1.bf16.msra.mxu0 %v1179
  %1340 = vmatprep.mubr.bf16.mxu0 %v708
  %1341 = vmatmul.mubr.bf16.gmra.mrb[0].mxu0 %v707
  %v1342 = vpop.f32.mrb[0].mxu0
  %v1343 = vadd.f32 %v874, %v1342
  %v1344 = vpop.f32.mrb[0].mxu0
  %v1345 = vpop.f32.mrb[0].mxu0
  %v1346 = vadd.f32 %v874, %v1345
  %v1347 = vpop.f32.mrb[0].mxu0
  %1348 = vmatprep.mubr.bf16.mxu0 %v717
  %1349 = vmatmul.mubr.bf16.gmra.mrb[0].mxu0 %v716
  %v1350 = vpop.f32.mrb[0].mxu0
  %v1351 = vadd.f32 %v874, %v1350
  %v1352 = vpop.f32.mrb[0].mxu0
  %v1353 = vpop.f32.mrb[0].mxu0
  %v1354 = vadd.f32 %v874, %v1353
  %v1355 = vpop.f32.mrb[0].mxu0
  %1356 = vdwg.mxu0
  %1357 = vmatprep.subr.bf16.mxu0 0
  %1358 = vmatpush1.bf16.msra.mxu0 %v1180
  %1359 = vmatprep.subr.bf16.mxu0 0
  %1360 = vmatpush1.bf16.msra.mxu0 %v1181
  %1361 = vmatprep.subr.bf16.mxu0 0
  %1362 = vmatpush1.bf16.msra.mxu0 %v1182
  %1363 = vmatprep.subr.bf16.mxu0 0
  %1364 = vmatpush1.bf16.msra.mxu0 %v1183
  %1365 = vmatprep.subr.bf16.mxu0 0
  %1366 = vmatpush1.bf16.msra.mxu0 %v1184
  %1367 = vmatprep.subr.bf16.mxu0 0
  %1368 = vmatpush1.bf16.msra.mxu0 %v1185
  %1369 = vmatprep.subr.bf16.mxu0 0
  %1370 = vmatpush1.bf16.msra.mxu0 %v1186
  %1371 = vmatprep.subr.bf16.mxu0 0
  %1372 = vmatpush1.bf16.msra.mxu0 %v1187
  %1373 = vmatprep.subr.bf16.mxu0 0
  %1374 = vmatpush1.bf16.msra.mxu0 %v1188
  %1375 = vmatprep.subr.bf16.mxu0 0
  %1376 = vmatpush1.bf16.msra.mxu0 %v1189
  %1377 = vmatprep.subr.bf16.mxu0 0
  %1378 = vmatpush1.bf16.msra.mxu0 %v1190
  %1379 = vmatprep.subr.bf16.mxu0 0
  %1380 = vmatpush1.bf16.msra.mxu0 %v1191
  %1381 = vmatprep.subr.bf16.mxu0 0
  %1382 = vmatpush1.bf16.msra.mxu0 %v1192
  %1383 = vmatprep.subr.bf16.mxu0 0
  %1384 = vmatpush1.bf16.msra.mxu0 %v1193
  %1385 = vmatprep.subr.bf16.mxu0 0
  %1386 = vmatpush1.bf16.msra.mxu0 %v1194
  %1387 = vmatprep.subr.bf16.mxu0 0
  %1388 = vmatpush1.bf16.msra.mxu0 %v1195
  %1389 = vmatprep.mubr.bf16.mxu0 %v710
  %1390 = vmatmul.mubr.bf16.gmra.mrb[0].mxu0 %v709
  %v1391 = vpop.f32.mrb[0].mxu0
  %v1392 = vadd.f32 %v1343, %v1391
  %v1393 = vpop.f32.mrb[0].mxu0
  %v1394 = vpop.f32.mrb[0].mxu0
  %v1395 = vadd.f32 %v1346, %v1394
  %v1396 = vpop.f32.mrb[0].mxu0
  %1397 = vmatprep.mubr.bf16.mxu0 %v719
  %1398 = vmatmul.mubr.bf16.gmra.mrb[0].mxu0 %v718
  %v1399 = vpop.f32.mrb[0].mxu0
  %v1400 = vadd.f32 %v1351, %v1399
  %v1401 = vpop.f32.mrb[0].mxu0
  %v1402 = vpop.f32.mrb[0].mxu0
  %v1403 = vadd.f32 %v1354, %v1402
  %v1404 = vpop.f32.mrb[0].mxu0
  %1405 = vdwg.mxu0
  %1406 = vmatprep.subr.bf16.mxu0 0
  %1407 = vmatpush1.bf16.msra.mxu0 %v1196
  %1408 = vmatprep.subr.bf16.mxu0 0
  %1409 = vmatpush1.bf16.msra.mxu0 %v1197
  %1410 = vmatprep.subr.bf16.mxu0 0
  %1411 = vmatpush1.bf16.msra.mxu0 %v1198
  %1412 = vmatprep.subr.bf16.mxu0 0
  %1413 = vmatpush1.bf16.msra.mxu0 %v1199
  %1414 = vmatprep.subr.bf16.mxu0 0
  %1415 = vmatpush1.bf16.msra.mxu0 %v1200
  %1416 = vmatprep.subr.bf16.mxu0 0
  %1417 = vmatpush1.bf16.msra.mxu0 %v1201
  %1418 = vmatprep.subr.bf16.mxu0 0
  %1419 = vmatpush1.bf16.msra.mxu0 %v1202
  %1420 = vmatprep.subr.bf16.mxu0 0
  %1421 = vmatpush1.bf16.msra.mxu0 %v1203
  %1422 = vmatprep.subr.bf16.mxu0 0
  %1423 = vmatpush1.bf16.msra.mxu0 %v1204
  %1424 = vmatprep.subr.bf16.mxu0 0
  %1425 = vmatpush1.bf16.msra.mxu0 %v1205
  %1426 = vmatprep.subr.bf16.mxu0 0
  %1427 = vmatpush1.bf16.msra.mxu0 %v1206
  %1428 = vmatprep.subr.bf16.mxu0 0
  %1429 = vmatpush1.bf16.msra.mxu0 %v1207
  %1430 = vmatprep.subr.bf16.mxu0 0
  %1431 = vmatpush1.bf16.msra.mxu0 %v1208
  %1432 = vmatprep.subr.bf16.mxu0 0
  %1433 = vmatpush1.bf16.msra.mxu0 %v1209
  %1434 = vmatprep.subr.bf16.mxu0 0
  %1435 = vmatpush1.bf16.msra.mxu0 %v1210
  %1436 = vmatprep.subr.bf16.mxu0 0
  %1437 = vmatpush1.bf16.msra.mxu0 %v1211
  %1438 = vmatprep.mubr.bf16.mxu0 %v712
  %1439 = vmatmul.mubr.bf16.gmra.mrb[0].mxu0 %v711
  %v1440 = vpop.f32.mrb[0].mxu0
  %v1441 = vadd.f32 %v1392, %v1440
  %v1442 = vpop.f32.mrb[0].mxu0
  %v1443 = vpop.f32.mrb[0].mxu0
  %v1444 = vadd.f32 %v1395, %v1443
  %v1445 = vpop.f32.mrb[0].mxu0
  %1446 = vmatprep.mubr.bf16.mxu0 %v721
  %1447 = vmatmul.mubr.bf16.gmra.mrb[0].mxu0 %v720
  %v1448 = vpop.f32.mrb[0].mxu0
  %v1449 = vadd.f32 %v1400, %v1448
  %v1450 = vpop.f32.mrb[0].mxu0
  %v1451 = vpop.f32.mrb[0].mxu0
  %v1452 = vadd.f32 %v1403, %v1451
  %v1453 = vpop.f32.mrb[0].mxu0
  %1454 = vdwg.mxu0
  %1455 = vmatprep.subr.bf16.mxu0 0
  %1456 = vmatpush1.bf16.msra.mxu0 %v1212
  %1457 = vmatprep.subr.bf16.mxu0 0
  %1458 = vmatpush1.bf16.msra.mxu0 %v1213
  %1459 = vmatprep.subr.bf16.mxu0 0
  %1460 = vmatpush1.bf16.msra.mxu0 %v1214
  %1461 = vmatprep.subr.bf16.mxu0 0
  %1462 = vmatpush1.bf16.msra.mxu0 %v1215
  %1463 = vmatprep.subr.bf16.mxu0 0
  %1464 = vmatpush1.bf16.msra.mxu0 %v1216
  %1465 = vmatprep.subr.bf16.mxu0 0
  %1466 = vmatpush1.bf16.msra.mxu0 %v1217
  %1467 = vmatprep.subr.bf16.mxu0 0
  %1468 = vmatpush1.bf16.msra.mxu0 %v1218
  %1469 = vmatprep.subr.bf16.mxu0 0
  %1470 = vmatpush1.bf16.msra.mxu0 %v1219
  %1471 = vmatprep.subr.bf16.mxu0 0
  %1472 = vmatpush1.bf16.msra.mxu0 %v1220
  %1473 = vmatprep.subr.bf16.mxu0 0
  %1474 = vmatpush1.bf16.msra.mxu0 %v1221
  %1475 = vmatprep.subr.bf16.mxu0 0
  %1476 = vmatpush1.bf16.msra.mxu0 %v1222
  %1477 = vmatprep.subr.bf16.mxu0 0
  %1478 = vmatpush1.bf16.msra.mxu0 %v1223
  %1479 = vmatprep.subr.bf16.mxu0 0
  %1480 = vmatpush1.bf16.msra.mxu0 %v1224
  %1481 = vmatprep.subr.bf16.mxu0 0
  %1482 = vmatpush1.bf16.msra.mxu0 %v1225
  %1483 = vmatprep.subr.bf16.mxu0 0
  %1484 = vmatpush1.bf16.msra.mxu0 %v1226
  %1485 = vmatprep.subr.bf16.mxu0 0
  %1486 = vmatpush1.bf16.msra.mxu0 %v1227
  %1487 = vmatprep.mubr.bf16.mxu0 %v714
  %1488 = vmatmul.mubr.bf16.gmra.mrb[0].mxu0 %v713
  %v1489 = vpop.f32.mrb[0].mxu0
  %v1490 = vadd.f32 %v1441, %v1489
  %v1491 = vpop.f32.mrb[0].mxu0
  %v1492 = vpop.f32.mrb[0].mxu0
  %v1493 = vadd.f32 %v1444, %v1492
  %v1494 = vpop.f32.mrb[0].mxu0
  %1495 = vmatprep.mubr.bf16.mxu0 %v723
  %1496 = vmatmul.mubr.bf16.gmra.mrb[0].mxu0 %v722
  %v1497 = vpop.f32.mrb[0].mxu0
  %v1498 = vadd.f32 %v1449, %v1497
  %v1499 = vpop.f32.mrb[0].mxu0
  %v1500 = vpop.f32.mrb[0].mxu0
  %v1501 = vadd.f32 %v1452, %v1500
  %v1502 = vpop.f32.mrb[0].mxu0
  %1503 = vdwg.mxu0
  %1504 = vmatprep.subr.bf16.mxu0 0
  %1505 = vmatpush1.bf16.msra.mxu0 %v1228
  %1506 = vmatprep.subr.bf16.mxu0 0
  %1507 = vmatpush1.bf16.msra.mxu0 %v1229
  %1508 = vmatprep.subr.bf16.mxu0 0
  %1509 = vmatpush1.bf16.msra.mxu0 %v1230
  %1510 = vmatprep.subr.bf16.mxu0 0
  %1511 = vmatpush1.bf16.msra.mxu0 %v1231
  %1512 = vmatprep.subr.bf16.mxu0 0
  %1513 = vmatpush1.bf16.msra.mxu0 %v1232
  %1514 = vmatprep.subr.bf16.mxu0 0
  %1515 = vmatpush1.bf16.msra.mxu0 %v1233
  %1516 = vmatprep.subr.bf16.mxu0 0
  %1517 = vmatpush1.bf16.msra.mxu0 %v1234
  %1518 = vmatprep.subr.bf16.mxu0 0
  %1519 = vmatpush1.bf16.msra.mxu0 %v1235
  %1520 = vmatprep.subr.bf16.mxu0 0
  %1521 = vmatpush1.bf16.msra.mxu0 0
  %1522 = vmatprep.subr.bf16.mxu0 0
  %1523 = vmatpush1.bf16.msra.mxu0 0
  %1524 = vmatprep.subr.bf16.mxu0 0
  %1525 = vmatpush1.bf16.msra.mxu0 0
  %1526 = vmatprep.subr.bf16.mxu0 0
  %1527 = vmatpush1.bf16.msra.mxu0 0
  %1528 = vmatprep.subr.bf16.mxu0 0
  %1529 = vmatpush1.bf16.msra.mxu0 0
  %1530 = vmatprep.subr.bf16.mxu0 0
  %1531 = vmatpush1.bf16.msra.mxu0 0
  %1532 = vmatprep.subr.bf16.mxu0 0
  %1533 = vmatpush1.bf16.msra.mxu0 0
  %1534 = vmatprep.subr.bf16.mxu0 0
  %1535 = vmatpush1.bf16.msra.mxu0 0
  %1536 = vmatprep.mubr.bf16.mxu0 0
  %1537 = vmatmul.mubr.bf16.gmra.mrb[0].mxu0 %v715
  %v1538 = vpop.f32.mrb[0].mxu0
  %v1539 = vadd.f32 %v1490, %v1538
  %v1540 = vpop.f32.mrb[0].mxu0
  %v1541 = vpop.f32.mrb[0].mxu0
  %v1542 = vadd.f32 %v1493, %v1541
  %v1543 = vpop.f32.mrb[0].mxu0
  %1544 = vmatprep.mubr.bf16.mxu0 0
  %1545 = vmatmul.mubr.bf16.gmra.mrb[0].mxu0 %v724
  %v1546 = vpop.f32.mrb[0].mxu0
  %v1547 = vadd.f32 %v1498, %v1546
  %v1548 = vpop.f32.mrb[0].mxu0
  %v1549 = vpop.f32.mrb[0].mxu0
  %v1550 = vadd.f32 %v1501, %v1549
  %v1551 = vpop.f32.mrb[0].mxu0
  %1552 = vdwg.mxu0
  %vm1553 = vcmp.ge.f32.partialorder %v1539, 0.0
  %vm1554 = vcmp.ge.f32.partialorder %v1542, 0.0
  %vm1555 = vcmp.ge.f32.partialorder %v1547, 0.0
  %vm1556 = vcmp.ge.f32.partialorder %v1550, 0.0
  %v1557 = vmul.f32 %v1539, 0.01
  %v1558 = vmul.f32 %v1542, 0.01
  %v1559 = vmul.f32 %v1547, 0.01
  %v1560 = vmul.f32 %v1550, 0.01
  %v1561 = vsel %vm1553, %v1539, %v1557
  %v1562 = vsel %vm1554, %v1542, %v1558
  %v1563 = vsel %vm1555, %v1547, %v1559
  %v1564 = vsel %vm1556, %v1550, %v1560
  %v1565 = vadd.f32 %v1561, %v1562
  %v1566 = vadd.f32 %v1565, %v1563
  %v1567 = vadd.f32 %v1566, %v1564
  %v1568 = vrot.slane %v1567, 4
  %v1569 = vadd.f32 %v1567, %v1568
  %v1570 = vrot.slane %v1569, 2
  %v1571 = vadd.f32 %v1569, %v1570
  %v1572 = vrot.slane %v1571, 1
  %v1573 = vadd.f32 %v1571, %v1572
  %v1574 = vrcp.pop 32.0
  %v1575 = vmul.f32 %v1573, %v1574
  %v1576 = vsub.f32 %v1561, %v1575
  %v1577 = vsub.f32 %v1562, %v1575
  %v1578 = vsub.f32 %v1563, %v1575
  %v1579 = vsub.f32 %v1564, %v1575
  %v1580 = vmul.f32 %v1576, %v1576
  %v1581 = vmul.f32 %v1577, %v1577
  %v1582 = vmul.f32 %v1578, %v1578
  %v1583 = vmul.f32 %v1579, %v1579
  %v1584 = vadd.f32 %v1580, %v1581
  %v1585 = vadd.f32 %v1584, %v1582
  %v1586 = vadd.f32 %v1585, %v1583
  %v1587 = vrot.slane %v1586, 4
  %v1588 = vadd.f32 %v1586, %v1587
  %v1589 = vrot.slane %v1588, 2
  %v1590 = vadd.f32 %v1588, %v1589
  %v1591 = vrot.slane %v1590, 1
  %v1592 = vadd.f32 %v1590, %v1591
  %v1593 = vmul.f32 %v1592, %v1574
  %v1594 = vadd.f32 %v1593, 1e-05
  %v1595 = vrsqrt.pop %v1594
  %v1596 = vmul.f32 %v1576, %v1595
  %v1597 = vmul.f32 %v1577, %v1595
  %v1598 = vmul.f32 %v1578, %v1595
  %v1599 = vmul.f32 %v1579, %v1595
  %vm1600 = vcmask 1041408
  %v1601 = vsel %vm1600, %v1596, 0.0
  %v1602 = vrot.slane %v1601, 4
  %v1603 = vadd.f32 %v1601, %v1602
  %v1604 = vrot.slane %v1603, 2
  %v1605 = vadd.f32 %v1603, %v1604
  %v1606 = vrot.slane %v1605, 1
  %v1607 = vadd.f32 %v1605, %v1606
  %v1609 = vrot.slane %v1596, 4
  %v1611 = vsel %vm1600, %v1609, 0.0
  %v1612 = vrot.slane %v1611, 4
  %v1613 = vadd.f32 %v1611, %v1612
  %v1614 = vrot.slane %v1613, 2
  %v1615 = vadd.f32 %v1613, %v1614
  %v1616 = vrot.slane %v1615, 1
  %v1617 = vadd.f32 %v1615, %v1616
  %v1618 = vadd.f32 %v1607, %v1617
  %v1619 = vrot.slane %v1596, 1
  %vm1621 = vcmask 1042432
  %v1622 = vsel %vm1621, %v1619, 0.0
  %v1623 = vrot.slane %v1622, 4
  %v1624 = vadd.f32 %v1622, %v1623
  %v1625 = vrot.slane %v1624, 2
  %v1626 = vadd.f32 %v1624, %v1625
  %v1627 = vrot.slane %v1626, 1
  %v1628 = vadd.f32 %v1626, %v1627
  %v1629 = vrot.slane %v1596, 5
  %v1631 = vsel %vm1621, %v1629, 0.0
  %v1632 = vrot.slane %v1631, 4
  %v1633 = vadd.f32 %v1631, %v1632
  %v1634 = vrot.slane %v1633, 2
  %v1635 = vadd.f32 %v1633, %v1634
  %v1636 = vrot.slane %v1635, 1
  %v1637 = vadd.f32 %v1635, %v1636
  %v1638 = vadd.f32 %v1628, %v1637
  %v1639 = vsel %vm1600, %v1597, 0.0
  %v1640 = vrot.slane %v1639, 4
  %v1641 = vadd.f32 %v1639, %v1640
  %v1642 = vrot.slane %v1641, 2
  %v1643 = vadd.f32 %v1641, %v1642
  %v1644 = vrot.slane %v1643, 1
  %v1645 = vadd.f32 %v1643, %v1644
  %v1646 = vadd.f32 %v1617, %v1645
  %v1648 = vrot.slane %v1597, 4
  %v1650 = vsel %vm1600, %v1648, 0.0
  %v1651 = vrot.slane %v1650, 4
  %v1652 = vadd.f32 %v1650, %v1651
  %v1653 = vrot.slane %v1652, 2
  %v1654 = vadd.f32 %v1652, %v1653
  %v1655 = vrot.slane %v1654, 1
  %v1656 = vadd.f32 %v1654, %v1655
  %v1657 = vadd.f32 %v1646, %v1656
  %v1658 = vrot.slane %v1597, 1
  %v1660 = vsel %vm1621, %v1658, 0.0
  %v1661 = vrot.slane %v1660, 4
  %v1662 = vadd.f32 %v1660, %v1661
  %v1663 = vrot.slane %v1662, 2
  %v1664 = vadd.f32 %v1662, %v1663
  %v1665 = vrot.slane %v1664, 1
  %v1666 = vadd.f32 %v1664, %v1665
  %v1667 = vadd.f32 %v1637, %v1666
  %v1668 = vrot.slane %v1597, 5
  %v1670 = vsel %vm1621, %v1668, 0.0
  %v1671 = vrot.slane %v1670, 4
  %v1672 = vadd.f32 %v1670, %v1671
  %v1673 = vrot.slane %v1672, 2
  %v1674 = vadd.f32 %v1672, %v1673
  %v1675 = vrot.slane %v1674, 1
  %v1676 = vadd.f32 %v1674, %v1675
  %v1677 = vadd.f32 %v1667, %v1676
  %v1678 = vsel %vm1600, %v1598, 0.0
  %v1679 = vrot.slane %v1678, 4
  %v1680 = vadd.f32 %v1678, %v1679
  %v1681 = vrot.slane %v1680, 2
  %v1682 = vadd.f32 %v1680, %v1681
  %v1683 = vrot.slane %v1682, 1
  %v1684 = vadd.f32 %v1682, %v1683
  %v1686 = vrot.slane %v1598, 4
  %v1688 = vsel %vm1600, %v1686, 0.0
  %v1689 = vrot.slane %v1688, 4
  %v1690 = vadd.f32 %v1688, %v1689
  %v1691 = vrot.slane %v1690, 2
  %v1692 = vadd.f32 %v1690, %v1691
  %v1693 = vrot.slane %v1692, 1
  %v1694 = vadd.f32 %v1692, %v1693
  %v1695 = vadd.f32 %v1684, %v1694
  %v1696 = vrot.slane %v1598, 1
  %v1698 = vsel %vm1621, %v1696, 0.0
  %v1699 = vrot.slane %v1698, 4
  %v1700 = vadd.f32 %v1698, %v1699
  %v1701 = vrot.slane %v1700, 2
  %v1702 = vadd.f32 %v1700, %v1701
  %v1703 = vrot.slane %v1702, 1
  %v1704 = vadd.f32 %v1702, %v1703
  %v1705 = vrot.slane %v1598, 5
  %v1707 = vsel %vm1621, %v1705, 0.0
  %v1708 = vrot.slane %v1707, 4
  %v1709 = vadd.f32 %v1707, %v1708
  %v1710 = vrot.slane %v1709, 2
  %v1711 = vadd.f32 %v1709, %v1710
  %v1712 = vrot.slane %v1711, 1
  %v1713 = vadd.f32 %v1711, %v1712
  %v1714 = vadd.f32 %v1704, %v1713
  %v1715 = vsel %vm1600, %v1599, 0.0
  %v1716 = vrot.slane %v1715, 4
  %v1717 = vadd.f32 %v1715, %v1716
  %v1718 = vrot.slane %v1717, 2
  %v1719 = vadd.f32 %v1717, %v1718
  %v1720 = vrot.slane %v1719, 1
  %v1721 = vadd.f32 %v1719, %v1720
  %v1722 = vadd.f32 %v1694, %v1721
  %v1724 = vrot.slane %v1599, 4
  %v1726 = vsel %vm1600, %v1724, 0.0
  %v1727 = vrot.slane %v1726, 4
  %v1728 = vadd.f32 %v1726, %v1727
  %v1729 = vrot.slane %v1728, 2
  %v1730 = vadd.f32 %v1728, %v1729
  %v1731 = vrot.slane %v1730, 1
  %v1732 = vadd.f32 %v1730, %v1731
  %v1733 = vadd.f32 %v1722, %v1732
  %v1734 = vrot.slane %v1599, 1
  %v1736 = vsel %vm1621, %v1734, 0.0
  %v1737 = vrot.slane %v1736, 4
  %v1738 = vadd.f32 %v1736, %v1737
  %v1739 = vrot.slane %v1738, 2
  %v1740 = vadd.f32 %v1738, %v1739
  %v1741 = vrot.slane %v1740, 1
  %v1742 = vadd.f32 %v1740, %v1741
  %v1743 = vadd.f32 %v1713, %v1742
  %v1744 = vrot.slane %v1599, 5
  %v1746 = vsel %vm1621, %v1744, 0.0
  %v1747 = vrot.slane %v1746, 4
  %v1748 = vadd.f32 %v1746, %v1747
  %v1749 = vrot.slane %v1748, 2
  %v1750 = vadd.f32 %v1748, %v1749
  %v1751 = vrot.slane %v1750, 1
  %v1752 = vadd.f32 %v1750, %v1751
  %v1753 = vadd.f32 %v1743, %v1752
  %vm1754 = vcmask 1040384
  %v1755 = vsel %vm1754, %v1618, %v1638
  %v1756 = vsel %vm1600, %v1755, %v1657
  %v1757 = vsel %vm1621, %v1756, %v1677
  %v1758 = vsel %vm482, %v1757, %v1695
  %vm1759 = vcmask 1044480
  %v1760 = vsel %vm1759, %v1758, %v1714
  %vm1761 = vcmask 1045504
  %v1762 = vsel %vm1761, %v1760, %v1733
  %vm1763 = vcmask 1046528
  %v1764 = vsel %vm1763, %v1762, %v1753
  %v1765 = vmul.f32 %v1764, 0.11111111
  %1766 = vst [vmem:[#allocation3] sm:$0xff] 0.0
  %1767 = vst [vmem:[#allocation3 + $0x8] sm:$0xff] 0.0
  %1768 = vst [vmem:[#allocation3 + $0x10] sm:$0xff] 0.0
  %1769 = vst [vmem:[#allocation3 + $0x18] sm:$0xff] 0.0
  %1770 = vst [vmem:[#allocation3 + $0x5] sm:$0x3] %v1765
  %1771 = vst [vmem:[#allocation3 + $0x7] sm:$0xc] %v1765
  %1772 = vst [vmem:[#allocation3 + $0x11] sm:$0x30] %v1765
  %1773 = vst [vmem:[#allocation3 + $0x13] sm:$0xc0] %v1765
  %v1774 = vld [vmem:[#allocation3] sm:$0x3]
  %v1775 = vld [vmem:[#allocation3 + $0x4] sm:$0x3]
  %v1776 = vld [vmem:[#allocation3 + $0x10] sm:$0x3]
  %v1777 = vld [vmem:[#allocation3 + $0x14] sm:$0x3]
  %v1779 = vrot.slane %v1775, 6
  %v1782 = vrot.slane %v1776, 4
  %v1785 = vrot.slane %v1777, 2
  %v1787 = vsel %vm1600, %v1774, %v1779
  %v1788 = vsel %vm482, %v1787, %v1782
  %v1789 = vsel %vm1761, %v1788, %v1785
  %v1790 = vld [vmem:[#allocation3 + $0x1] sm:$0x3]
  %v1791 = vld [vmem:[#allocation3 + $0x5] sm:$0x3]
  %v1792 = vld [vmem:[#allocation3 + $0x11] sm:$0x3]
  %v1793 = vld [vmem:[#allocation3 + $0x15] sm:$0x3]
  %v1795 = vrot.slane %v1791, 6
  %v1798 = vrot.slane %v1792, 4
  %v1801 = vrot.slane %v1793, 2
  %v1803 = vsel %vm1600, %v1790, %v1795
  %v1804 = vsel %vm482, %v1803, %v1798
  %v1805 = vsel %vm1761, %v1804, %v1801
  %v1806 = vld [vmem:[#allocation3 + $0x2] sm:$0x3]
  %v1807 = vld [vmem:[#allocation3 + $0x6] sm:$0x3]
  %v1808 = vld [vmem:[#allocation3 + $0x12] sm:$0x3]
  %v1809 = vld [vmem:[#allocation3 + $0x16] sm:$0x3]
  %v1811 = vrot.slane %v1807, 6
  %v1814 = vrot.slane %v1808, 4
  %v1817 = vrot.slane %v1809, 2
  %v1819 = vsel %vm1600, %v1806, %v1811
  %v1820 = vsel %vm482, %v1819, %v1814
  %v1821 = vsel %vm1761, %v1820, %v1817
  %v1822 = vld [vmem:[#allocation3 + $0x8] sm:$0x3]
  %v1823 = vld [vmem:[#allocation3 + $0x18] sm:$0x3]
  %v1825 = vrot.slane %v1822, 6
  %v1827 = vrot.slane %v1777, 4
  %v1830 = vrot.slane %v1823, 2
  %v1832 = vsel %vm1600, %v1775, %v1825
  %v1833 = vsel %vm482, %v1832, %v1827
  %v1834 = vsel %vm1761, %v1833, %v1830
  %v1835 = vld [vmem:[#allocation3 + $0x9] sm:$0x3]
  %v1836 = vld [vmem:[#allocation3 + $0x19] sm:$0x3]
  %v1838 = vrot.slane %v1835, 6
  %v1840 = vrot.slane %v1793, 4
  %v1843 = vrot.slane %v1836, 2
  %v1845 = vsel %vm1600, %v1791, %v1838
  %v1846 = vsel %vm482, %v1845, %v1840
  %v1847 = vsel %vm1761, %v1846, %v1843
  %v1848 = vld [vmem:[#allocation3 + $0xa] sm:$0x3]
  %v1849 = vld [vmem:[#allocation3 + $0x1a] sm:$0x3]
  %v1851 = vrot.slane %v1848, 6
  %v1853 = vrot.slane %v1809, 4
  %v1856 = vrot.slane %v1849, 2
  %v1858 = vsel %vm1600, %v1807, %v1851
  %v1859 = vsel %vm482, %v1858, %v1853
  %v1860 = vsel %vm1761, %v1859, %v1856
  %v1861 = vld [vmem:[#allocation3 + $0xc] sm:$0x3]
  %v1862 = vld [vmem:[#allocation3 + $0x1c] sm:$0x3]
  %v1864 = vrot.slane %v1861, 6
  %v1866 = vrot.slane %v1823, 4
  %v1869 = vrot.slane %v1862, 2
  %v1871 = vsel %vm1600, %v1822, %v1864
  %v1872 = vsel %vm482, %v1871, %v1866
  %v1873 = vsel %vm1761, %v1872, %v1869
  %v1874 = vld [vmem:[#allocation3 + $0xd] sm:$0x3]
  %v1875 = vld [vmem:[#allocation3 + $0x1d] sm:$0x3]
  %v1877 = vrot.slane %v1874, 6
  %v1879 = vrot.slane %v1836, 4
  %v1882 = vrot.slane %v1875, 2
  %v1884 = vsel %vm1600, %v1835, %v1877
  %v1885 = vsel %vm482, %v1884, %v1879
  %v1886 = vsel %vm1761, %v1885, %v1882
  %v1887 = vld [vmem:[#allocation3 + $0xe] sm:$0x3]
  %v1888 = vld [vmem:[#allocation3 + $0x1e] sm:$0x3]
  %v1890 = vrot.slane %v1887, 6
  %v1892 = vrot.slane %v1849, 4
  %v1895 = vrot.slane %v1888, 2
  %v1897 = vsel %vm1600, %v1848, %v1890
  %v1898 = vsel %vm482, %v1897, %v1892
  %v1899 = vsel %vm1761, %v1898, %v1895
  %v1900 = vpack.c.bf16 %v1789, %v1789
  %v1901 = vpack.c.bf16 %v1805, %v1805
  %v1902 = vpack.c.bf16 %v1821, %v1821
  %v1903 = vpack.c.bf16 %v1834, %v1834
  %v1904 = vpack.c.bf16 %v1847, %v1847
  %v1905 = vpack.c.bf16 %v1860, %v1860
  %v1906 = vpack.c.bf16 %v1873, %v1873
  %v1907 = vpack.c.bf16 %v1886, %v1886
  %v1908 = vpack.c.bf16 %v1899, %v1899
  %v1909 = vld [vmem:[%s5] sm:$0xf]
  %v1910 = vld [vmem:[%s5 + $0x4] sm:$0xf]
  %v1911 = vld [vmem:[%s5 + $0x8] sm:$0xf]
  %v1912 = vld [vmem:[%s5 + $0xc] sm:$0xf]
  %v1913 = vld [vmem:[%s5 + $0x10] sm:$0xf]
  %v1914 = vld [vmem:[%s5 + $0x14] sm:$0xf]
  %v1915 = vld [vmem:[%s5 + $0x18] sm:$0xf]
  %v1916 = vld [vmem:[%s5 + $0x1c] sm:$0xf]
  %v1917 = vld [vmem:[%s5 + $0x20] sm:$0xf]
  %v1918 = vld [vmem:[%s5 + $0x24] sm:$0xf]
  %v1919 = vld [vmem:[%s5 + $0x28] sm:$0xf]
  %v1920 = vld [vmem:[%s5 + $0x2c] sm:$0xf]
  %v1921 = vld [vmem:[%s5 + $0x30] sm:$0xf]
  %v1922 = vld [vmem:[%s5 + $0x34] sm:$0xf]
  %v1923 = vld [vmem:[%s5 + $0x38] sm:$0xf]
  %v1924 = vld [vmem:[%s5 + $0x3c] sm:$0xf]
  %v1925 = vld [vmem:[%s5 + $0x40] sm:$0xf]
  %v1926 = vld [vmem:[%s5 + $0x44] sm:$0xf]
  %v1927 = vld [vmem:[%s5 + $0x48] sm:$0xf]
  %v1928 = vld [vmem:[%s5 + $0x4c] sm:$0xf]
  %v1929 = vld [vmem:[%s5 + $0x50] sm:$0xf]
  %v1930 = vld [vmem:[%s5 + $0x54] sm:$0xf]
  %v1931 = vld [vmem:[%s5 + $0x58] sm:$0xf]
  %v1932 = vld [vmem:[%s5 + $0x5c] sm:$0xf]
  %v1933 = vld [vmem:[%s5 + $0x60] sm:$0xf]
  %v1934 = vld [vmem:[%s5 + $0x64] sm:$0xf]
  %v1935 = vld [vmem:[%s5 + $0x68] sm:$0xf]
  %v1936 = vld [vmem:[%s5 + $0x6c] sm:$0xf]
  %v1937 = vld [vmem:[%s5 + $0x70] sm:$0xf]
  %v1938 = vld [vmem:[%s5 + $0x74] sm:$0xf]
  %v1939 = vld [vmem:[%s5 + $0x78] sm:$0xf]
  %v1940 = vld [vmem:[%s5 + $0x7c] sm:$0xf]
  %v1941 = vld [vmem:[%s5 + $0x80] sm:$0xf]
  %v1942 = vld [vmem:[%s5 + $0x84] sm:$0xf]
  %v1943 = vld [vmem:[%s5 + $0x88] sm:$0xf]
  %v1944 = vld [vmem:[%s5 + $0x8c] sm:$0xf]
  %v1945 = vld [vmem:[%s5 + $0x90] sm:$0xf]
  %v1946 = vld [vmem:[%s5 + $0x94] sm:$0xf]
  %v1947 = vld [vmem:[%s5 + $0x98] sm:$0xf]
  %v1948 = vld [vmem:[%s5 + $0x9c] sm:$0xf]
  %v1949 = vld [vmem:[%s5 + $0xa0] sm:$0xf]
  %v1950 = vld [vmem:[%s5 + $0xa4] sm:$0xf]
  %v1951 = vld [vmem:[%s5 + $0xa8] sm:$0xf]
  %v1952 = vld [vmem:[%s5 + $0xac] sm:$0xf]
  %v1953 = vld [vmem:[%s5 + $0xb0] sm:$0xf]
  %v1954 = vld [vmem:[%s5 + $0xb4] sm:$0xf]
  %v1955 = vld [vmem:[%s5 + $0xb8] sm:$0xf]
  %v1956 = vld [vmem:[%s5 + $0xbc] sm:$0xf]
  %v1957 = vld [vmem:[%s5 + $0xc0] sm:$0xf]
  %v1958 = vld [vmem:[%s5 + $0xc4] sm:$0xf]
  %v1959 = vld [vmem:[%s5 + $0xc8] sm:$0xf]
  %v1960 = vld [vmem:[%s5 + $0xcc] sm:$0xf]
  %v1961 = vld [vmem:[%s5 + $0xd0] sm:$0xf]
  %v1962 = vld [vmem:[%s5 + $0xd4] sm:$0xf]
  %v1963 = vld [vmem:[%s5 + $0xd8] sm:$0xf]
  %v1964 = vld [vmem:[%s5 + $0xdc] sm:$0xf]
  %v1965 = vld [vmem:[%s5 + $0xe0] sm:$0xf]
  %v1966 = vld [vmem:[%s5 + $0xe4] sm:$0xf]
  %v1967 = vld [vmem:[%s5 + $0xe8] sm:$0xf]
  %v1968 = vld [vmem:[%s5 + $0xec] sm:$0xf]
  %v1969 = vld [vmem:[%s5 + $0xf0] sm:$0xf]
  %v1970 = vld [vmem:[%s5 + $0xf4] sm:$0xf]
  %v1971 = vld [vmem:[%s5 + $0xf8] sm:$0xf]
  %v1972 = vld [vmem:[%s5 + $0xfc] sm:$0xf]
  %v1973 = vld [vmem:[%s5 + $0x100] sm:$0xf]
  %v1974 = vld [vmem:[%s5 + $0x104] sm:$0xf]
  %v1975 = vld [vmem:[%s5 + $0x108] sm:$0xf]
  %v1976 = vld [vmem:[%s5 + $0x10c] sm:$0xf]
  %v1977 = vld [vmem:[%s5 + $0x110] sm:$0xf]
  %v1978 = vld [vmem:[%s5 + $0x114] sm:$0xf]
  %v1979 = vld [vmem:[%s5 + $0x118] sm:$0xf]
  %v1980 = vld [vmem:[%s5 + $0x11c] sm:$0xf]
  %v1981 = vld [vmem:[%s5 + $0x120] sm:$0xf]
  %v1982 = vld [vmem:[%s5 + $0x124] sm:$0xf]
  %v1983 = vld [vmem:[%s5 + $0x128] sm:$0xf]
  %v1984 = vld [vmem:[%s5 + $0x12c] sm:$0xf]
  %v1985 = vld [vmem:[%s5 + $0x130] sm:$0xf]
  %v1986 = vld [vmem:[%s5 + $0x134] sm:$0xf]
  %v1987 = vld [vmem:[%s5 + $0x138] sm:$0xf]
  %v1988 = vld [vmem:[%s5 + $0x13c] sm:$0xf]
  %v1989 = vld [vmem:[%s5 + $0x140] sm:$0xf]
  %v1990 = vld [vmem:[%s5 + $0x144] sm:$0xf]
  %v1991 = vld [vmem:[%s5 + $0x148] sm:$0xf]
  %v1992 = vld [vmem:[%s5 + $0x14c] sm:$0xf]
  %v1993 = vld [vmem:[%s5 + $0x150] sm:$0xf]
  %v1994 = vld [vmem:[%s5 + $0x154] sm:$0xf]
  %v1995 = vld [vmem:[%s5 + $0x158] sm:$0xf]
  %v1996 = vld [vmem:[%s5 + $0x15c] sm:$0xf]
  %v1997 = vld [vmem:[%s5 + $0x160] sm:$0xf]
  %v1998 = vld [vmem:[%s5 + $0x164] sm:$0xf]
  %v1999 = vld [vmem:[%s5 + $0x168] sm:$0xf]
  %v2000 = vld [vmem:[%s5 + $0x16c] sm:$0xf]
  %v2001 = vld [vmem:[%s5 + $0x170] sm:$0xf]
  %v2002 = vld [vmem:[%s5 + $0x174] sm:$0xf]
  %v2003 = vld [vmem:[%s5 + $0x178] sm:$0xf]
  %v2004 = vld [vmem:[%s5 + $0x17c] sm:$0xf]
  %v2005 = vld [vmem:[%s5 + $0x180] sm:$0xf]
  %v2006 = vld [vmem:[%s5 + $0x184] sm:$0xf]
  %v2007 = vld [vmem:[%s5 + $0x188] sm:$0xf]
  %v2008 = vld [vmem:[%s5 + $0x18c] sm:$0xf]
  %v2009 = vld [vmem:[%s5 + $0x190] sm:$0xf]
  %v2010 = vld [vmem:[%s5 + $0x194] sm:$0xf]
  %v2011 = vld [vmem:[%s5 + $0x198] sm:$0xf]
  %v2012 = vld [vmem:[%s5 + $0x19c] sm:$0xf]
  %v2013 = vld [vmem:[%s5 + $0x1a0] sm:$0xf]
  %v2014 = vld [vmem:[%s5 + $0x1a4] sm:$0xf]
  %v2015 = vld [vmem:[%s5 + $0x1a8] sm:$0xf]
  %v2016 = vld [vmem:[%s5 + $0x1ac] sm:$0xf]
  %v2017 = vld [vmem:[%s5 + $0x1b0] sm:$0xf]
  %v2018 = vld [vmem:[%s5 + $0x1b4] sm:$0xf]
  %v2019 = vld [vmem:[%s5 + $0x1b8] sm:$0xf]
  %v2020 = vld [vmem:[%s5 + $0x1bc] sm:$0xf]
  %v2021 = vld [vmem:[%s5 + $0x1c0] sm:$0xf]
  %v2022 = vld [vmem:[%s5 + $0x1c4] sm:$0xf]
  %v2023 = vld [vmem:[%s5 + $0x1c8] sm:$0xf]
  %v2024 = vld [vmem:[%s5 + $0x1cc] sm:$0xf]
  %v2025 = vld [vmem:[%s5 + $0x1d0] sm:$0xf]
  %v2026 = vld [vmem:[%s5 + $0x1d4] sm:$0xf]
  %v2027 = vld [vmem:[%s5 + $0x1d8] sm:$0xf]
  %v2028 = vld [vmem:[%s5 + $0x1dc] sm:$0xf]
  %v2029 = vld [vmem:[%s5 + $0x1e0] sm:$0xf]
  %v2030 = vld [vmem:[%s5 + $0x1e4] sm:$0xf]
  %v2031 = vld [vmem:[%s5 + $0x1e8] sm:$0xf]
  %v2032 = vld [vmem:[%s5 + $0x1ec] sm:$0xf]
  %v2033 = vld [vmem:[%s5 + $0x1f0] sm:$0xf]
  %v2034 = vld [vmem:[%s5 + $0x1f4] sm:$0xf]
  %v2035 = vld [vmem:[%s5 + $0x1f8] sm:$0xf]
  %v2036 = vld [vmem:[%s5 + $0x1fc] sm:$0xf]
  %v2037 = vld [vmem:[%s5 + $0x200] sm:$0xf]
  %v2038 = vld [vmem:[%s5 + $0x204] sm:$0xf]
  %v2039 = vld [vmem:[%s5 + $0x208] sm:$0xf]
  %v2040 = vld [vmem:[%s5 + $0x20c] sm:$0xf]
  %v2041 = vld [vmem:[%s5 + $0x210] sm:$0xf]
  %v2042 = vld [vmem:[%s5 + $0x214] sm:$0xf]
  %v2043 = vld [vmem:[%s5 + $0x218] sm:$0xf]
  %v2044 = vld [vmem:[%s5 + $0x21c] sm:$0xf]
  %v2045 = vld [vmem:[%s5 + $0x220] sm:$0xf]
  %v2046 = vld [vmem:[%s5 + $0x224] sm:$0xf]
  %v2047 = vld [vmem:[%s5 + $0x228] sm:$0xf]
  %v2048 = vld [vmem:[%s5 + $0x22c] sm:$0xf]
  %v2049 = vld [vmem:[%s5 + $0x230] sm:$0xf]
  %v2050 = vld [vmem:[%s5 + $0x234] sm:$0xf]
  %v2051 = vld [vmem:[%s5 + $0x238] sm:$0xf]
  %v2052 = vld [vmem:[%s5 + $0x23c] sm:$0xf]
  %v2053 = vld [vmem:[%s6] sm:$0x1]
  %v2055 = vlaneseq
  %v2056 = vshrl.u32 %v2055, 7
  %v2057 = vsub.s32 0, %v2056
  %v2058 = vrot.slane %v2053, %v2057
  %v2204 = vunpack.c.l.b16 %v1909
  %v2205 = vunpack.c.l.b16 %v1910
  %v2206 = vunpack.c.l.b16 %v1911
  %v2207 = vunpack.c.l.b16 %v1912
  %v2208 = vunpack.c.l.b16 %v1913
  %v2209 = vunpack.c.l.b16 %v1914
  %v2210 = vunpack.c.l.b16 %v1915
  %v2211 = vunpack.c.l.b16 %v1916
  %v2212 = vunpack.c.l.b16 %v1917
  %v2213 = vunpack.c.l.b16 %v1918
  %v2214 = vunpack.c.l.b16 %v1919
  %v2215 = vunpack.c.l.b16 %v1920
  %v2216 = vunpack.c.l.b16 %v1921
  %v2217 = vunpack.c.l.b16 %v1922
  %v2218 = vunpack.c.l.b16 %v1923
  %v2219 = vunpack.c.l.b16 %v1924
  %v2220 = vunpack.c.l.b16 %v1925
  %v2221 = vunpack.c.l.b16 %v1926
  %v2222 = vunpack.c.l.b16 %v1927
  %v2223 = vunpack.c.l.b16 %v1928
  %v2224 = vunpack.c.l.b16 %v1929
  %v2225 = vunpack.c.l.b16 %v1930
  %v2226 = vunpack.c.l.b16 %v1931
  %v2227 = vunpack.c.l.b16 %v1932
  %v2228 = vunpack.c.l.b16 %v1933
  %v2229 = vunpack.c.l.b16 %v1934
  %v2230 = vunpack.c.l.b16 %v1935
  %v2231 = vunpack.c.l.b16 %v1936
  %v2232 = vunpack.c.l.b16 %v1937
  %v2233 = vunpack.c.l.b16 %v1938
  %v2234 = vunpack.c.l.b16 %v1939
  %v2235 = vunpack.c.l.b16 %v1940
  %v2236 = vunpack.c.l.b16 %v1941
  %v2237 = vunpack.c.l.b16 %v1942
  %v2238 = vunpack.c.l.b16 %v1943
  %v2239 = vunpack.c.l.b16 %v1944
  %v2240 = vunpack.c.l.b16 %v1945
  %v2241 = vunpack.c.l.b16 %v1946
  %v2242 = vunpack.c.l.b16 %v1947
  %v2243 = vunpack.c.l.b16 %v1948
  %v2244 = vunpack.c.l.b16 %v1949
  %v2245 = vunpack.c.l.b16 %v1950
  %v2246 = vunpack.c.l.b16 %v1951
  %v2247 = vunpack.c.l.b16 %v1952
  %v2248 = vunpack.c.l.b16 %v1953
  %v2249 = vunpack.c.l.b16 %v1954
  %v2250 = vunpack.c.l.b16 %v1955
  %v2251 = vunpack.c.l.b16 %v1956
  %v2252 = vunpack.c.l.b16 %v1957
  %v2253 = vunpack.c.l.b16 %v1958
  %v2254 = vunpack.c.l.b16 %v1959
  %v2255 = vunpack.c.l.b16 %v1960
  %v2256 = vunpack.c.l.b16 %v1961
  %v2257 = vunpack.c.l.b16 %v1962
  %v2258 = vunpack.c.l.b16 %v1963
  %v2259 = vunpack.c.l.b16 %v1964
  %v2260 = vunpack.c.l.b16 %v1965
  %v2261 = vunpack.c.l.b16 %v1966
  %v2262 = vunpack.c.l.b16 %v1967
  %v2263 = vunpack.c.l.b16 %v1968
  %v2264 = vunpack.c.l.b16 %v1969
  %v2265 = vunpack.c.l.b16 %v1970
  %v2266 = vunpack.c.l.b16 %v1971
  %v2267 = vunpack.c.l.b16 %v1972
  %v2268 = vunpack.c.l.b16 %v1973
  %v2269 = vunpack.c.l.b16 %v1974
  %v2270 = vunpack.c.l.b16 %v1975
  %v2271 = vunpack.c.l.b16 %v1976
  %v2272 = vunpack.c.l.b16 %v1977
  %v2273 = vunpack.c.l.b16 %v1978
  %v2274 = vunpack.c.l.b16 %v1979
  %v2275 = vunpack.c.l.b16 %v1980
  %v2276 = vunpack.c.l.b16 %v1981
  %v2277 = vunpack.c.l.b16 %v1982
  %v2278 = vunpack.c.l.b16 %v1983
  %v2279 = vunpack.c.l.b16 %v1984
  %v2280 = vunpack.c.l.b16 %v1985
  %v2281 = vunpack.c.l.b16 %v1986
  %v2282 = vunpack.c.l.b16 %v1987
  %v2283 = vunpack.c.l.b16 %v1988
  %v2284 = vunpack.c.l.b16 %v1989
  %v2285 = vunpack.c.l.b16 %v1990
  %v2286 = vunpack.c.l.b16 %v1991
  %v2287 = vunpack.c.l.b16 %v1992
  %v2288 = vunpack.c.l.b16 %v1993
  %v2289 = vunpack.c.l.b16 %v1994
  %v2290 = vunpack.c.l.b16 %v1995
  %v2291 = vunpack.c.l.b16 %v1996
  %v2292 = vunpack.c.l.b16 %v1997
  %v2293 = vunpack.c.l.b16 %v1998
  %v2294 = vunpack.c.l.b16 %v1999
  %v2295 = vunpack.c.l.b16 %v2000
  %v2296 = vunpack.c.l.b16 %v2001
  %v2297 = vunpack.c.l.b16 %v2002
  %v2298 = vunpack.c.l.b16 %v2003
  %v2299 = vunpack.c.l.b16 %v2004
  %v2300 = vunpack.c.l.b16 %v2005
  %v2301 = vunpack.c.l.b16 %v2006
  %v2302 = vunpack.c.l.b16 %v2007
  %v2303 = vunpack.c.l.b16 %v2008
  %v2304 = vunpack.c.l.b16 %v2009
  %v2305 = vunpack.c.l.b16 %v2010
  %v2306 = vunpack.c.l.b16 %v2011
  %v2307 = vunpack.c.l.b16 %v2012
  %v2308 = vunpack.c.l.b16 %v2013
  %v2309 = vunpack.c.l.b16 %v2014
  %v2310 = vunpack.c.l.b16 %v2015
  %v2311 = vunpack.c.l.b16 %v2016
  %v2312 = vunpack.c.l.b16 %v2017
  %v2313 = vunpack.c.l.b16 %v2018
  %v2314 = vunpack.c.l.b16 %v2019
  %v2315 = vunpack.c.l.b16 %v2020
  %v2316 = vunpack.c.l.b16 %v2021
  %v2317 = vunpack.c.l.b16 %v2022
  %v2318 = vunpack.c.l.b16 %v2023
  %v2319 = vunpack.c.l.b16 %v2024
  %v2320 = vunpack.c.l.b16 %v2025
  %v2321 = vunpack.c.l.b16 %v2026
  %v2322 = vunpack.c.l.b16 %v2027
  %v2323 = vunpack.c.l.b16 %v2028
  %v2324 = vunpack.c.l.b16 %v2029
  %v2325 = vunpack.c.l.b16 %v2030
  %v2326 = vunpack.c.l.b16 %v2031
  %v2327 = vunpack.c.l.b16 %v2032
  %v2328 = vunpack.c.l.b16 %v2033
  %v2329 = vunpack.c.l.b16 %v2034
  %v2330 = vunpack.c.l.b16 %v2035
  %v2331 = vunpack.c.l.b16 %v2036
  %v2332 = vunpack.c.l.b16 %v2037
  %v2333 = vunpack.c.l.b16 %v2038
  %v2334 = vunpack.c.l.b16 %v2039
  %v2335 = vunpack.c.l.b16 %v2040
  %v2336 = vunpack.c.l.b16 %v2041
  %v2337 = vunpack.c.l.b16 %v2042
  %v2338 = vunpack.c.l.b16 %v2043
  %v2339 = vunpack.c.l.b16 %v2044
  %v2340 = vunpack.c.l.b16 %v2045
  %v2341 = vunpack.c.l.b16 %v2046
  %v2342 = vunpack.c.l.b16 %v2047
  %v2343 = vunpack.c.l.b16 %v2048
  %v2344 = vunpack.c.l.b16 %v2049
  %v2345 = vunpack.c.l.b16 %v2050
  %v2346 = vunpack.c.l.b16 %v2051
  %v2347 = vunpack.c.l.b16 %v2052
  %v2348 = vpack.c.b16 %v2205, %v2204
  %v2349 = vpack.c.b16 %v2207, %v2206
  %v2350 = vpack.c.b16 %v2209, %v2208
  %v2351 = vpack.c.b16 %v2211, %v2210
  %v2352 = vpack.c.b16 %v2213, %v2212
  %v2353 = vpack.c.b16 %v2215, %v2214
  %v2354 = vpack.c.b16 %v2217, %v2216
  %v2355 = vpack.c.b16 %v2219, %v2218
  %v2356 = vpack.c.b16 %v2221, %v2220
  %v2357 = vpack.c.b16 %v2223, %v2222
  %v2358 = vpack.c.b16 %v2225, %v2224
  %v2359 = vpack.c.b16 %v2227, %v2226
  %v2360 = vpack.c.b16 %v2229, %v2228
  %v2361 = vpack.c.b16 %v2231, %v2230
  %v2362 = vpack.c.b16 %v2233, %v2232
  %v2363 = vpack.c.b16 %v2235, %v2234
  %v2364 = vpack.c.b16 %v2237, %v2236
  %v2365 = vpack.c.b16 %v2239, %v2238
  %v2366 = vpack.c.b16 %v2241, %v2240
  %v2367 = vpack.c.b16 %v2243, %v2242
  %v2368 = vpack.c.b16 %v2245, %v2244
  %v2369 = vpack.c.b16 %v2247, %v2246
  %v2370 = vpack.c.b16 %v2249, %v2248
  %v2371 = vpack.c.b16 %v2251, %v2250
  %v2372 = vpack.c.b16 %v2253, %v2252
  %v2373 = vpack.c.b16 %v2255, %v2254
  %v2374 = vpack.c.b16 %v2257, %v2256
  %v2375 = vpack.c.b16 %v2259, %v2258
  %v2376 = vpack.c.b16 %v2261, %v2260
  %v2377 = vpack.c.b16 %v2263, %v2262
  %v2378 = vpack.c.b16 %v2265, %v2264
  %v2379 = vpack.c.b16 %v2267, %v2266
  %v2380 = vpack.c.b16 %v2269, %v2268
  %v2381 = vpack.c.b16 %v2271, %v2270
  %v2382 = vpack.c.b16 %v2273, %v2272
  %v2383 = vpack.c.b16 %v2275, %v2274
  %v2384 = vpack.c.b16 %v2277, %v2276
  %v2385 = vpack.c.b16 %v2279, %v2278
  %v2386 = vpack.c.b16 %v2281, %v2280
  %v2387 = vpack.c.b16 %v2283, %v2282
  %v2388 = vpack.c.b16 %v2285, %v2284
  %v2389 = vpack.c.b16 %v2287, %v2286
  %v2390 = vpack.c.b16 %v2289, %v2288
  %v2391 = vpack.c.b16 %v2291, %v2290
  %v2392 = vpack.c.b16 %v2293, %v2292
  %v2393 = vpack.c.b16 %v2295, %v2294
  %v2394 = vpack.c.b16 %v2297, %v2296
  %v2395 = vpack.c.b16 %v2299, %v2298
  %v2396 = vpack.c.b16 %v2301, %v2300
  %v2397 = vpack.c.b16 %v2303, %v2302
  %v2398 = vpack.c.b16 %v2305, %v2304
  %v2399 = vpack.c.b16 %v2307, %v2306
  %v2400 = vpack.c.b16 %v2309, %v2308
  %v2401 = vpack.c.b16 %v2311, %v2310
  %v2402 = vpack.c.b16 %v2313, %v2312
  %v2403 = vpack.c.b16 %v2315, %v2314
  %v2404 = vpack.c.b16 %v2317, %v2316
  %v2405 = vpack.c.b16 %v2319, %v2318
  %v2406 = vpack.c.b16 %v2321, %v2320
  %v2407 = vpack.c.b16 %v2323, %v2322
  %v2408 = vpack.c.b16 %v2325, %v2324
  %v2409 = vpack.c.b16 %v2327, %v2326
  %v2410 = vpack.c.b16 %v2329, %v2328
  %v2411 = vpack.c.b16 %v2331, %v2330
  %v2412 = vpack.c.b16 %v2333, %v2332
  %v2413 = vpack.c.b16 %v2335, %v2334
  %v2414 = vpack.c.b16 %v2337, %v2336
  %v2415 = vpack.c.b16 %v2339, %v2338
  %v2416 = vpack.c.b16 %v2341, %v2340
  %v2417 = vpack.c.b16 %v2343, %v2342
  %v2418 = vpack.c.b16 %v2345, %v2344
  %v2419 = vpack.c.b16 %v2347, %v2346
  %2492 = vmatprep.subr.bf16.mxu0 0
  %2493 = vmatpush1.bf16.msra.mxu0 %v2348
  %2494 = vmatprep.subr.bf16.mxu0 0
  %2495 = vmatpush1.bf16.msra.mxu0 %v2349
  %2496 = vmatprep.subr.bf16.mxu0 0
  %2497 = vmatpush1.bf16.msra.mxu0 %v2350
  %2498 = vmatprep.subr.bf16.mxu0 0
  %2499 = vmatpush1.bf16.msra.mxu0 %v2351
  %2500 = vmatprep.subr.bf16.mxu0 0
  %2501 = vmatpush1.bf16.msra.mxu0 %v2352
  %2502 = vmatprep.subr.bf16.mxu0 0
  %2503 = vmatpush1.bf16.msra.mxu0 %v2353
  %2504 = vmatprep.subr.bf16.mxu0 0
  %2505 = vmatpush1.bf16.msra.mxu0 %v2354
  %2506 = vmatprep.subr.bf16.mxu0 0
  %2507 = vmatpush1.bf16.msra.mxu0 %v2355
  %2508 = vmatprep.subr.bf16.mxu0 0
  %2509 = vmatpush1.bf16.msra.mxu0 %v2356
  %2510 = vmatprep.subr.bf16.mxu0 0
  %2511 = vmatpush1.bf16.msra.mxu0 %v2357
  %2512 = vmatprep.subr.bf16.mxu0 0
  %2513 = vmatpush1.bf16.msra.mxu0 %v2358
  %2514 = vmatprep.subr.bf16.mxu0 0
  %2515 = vmatpush1.bf16.msra.mxu0 %v2359
  %2516 = vmatprep.subr.bf16.mxu0 0
  %2517 = vmatpush1.bf16.msra.mxu0 %v2360
  %2518 = vmatprep.subr.bf16.mxu0 0
  %2519 = vmatpush1.bf16.msra.mxu0 %v2361
  %2520 = vmatprep.subr.bf16.mxu0 0
  %2521 = vmatpush1.bf16.msra.mxu0 %v2362
  %2522 = vmatprep.subr.bf16.mxu0 0
  %2523 = vmatpush1.bf16.msra.mxu0 %v2363
  %2524 = vmatprep.mubr.bf16.mxu0 %v1901
  %2525 = vmatmul.mubr.bf16.gmra.mrb[0].mxu0 %v1900
  %v2526 = vpop.f32.mrb[0].mxu0
  %v2527 = vadd.f32 %v2058, %v2526
  %v2528 = vpop.f32.mrb[0].mxu0
  %v2529 = vpop.f32.mrb[0].mxu0
  %v2530 = vpop.f32.mrb[0].mxu0
  %2531 = vdwg.mxu0
  %2532 = vmatprep.subr.bf16.mxu0 0
  %2533 = vmatpush1.bf16.msra.mxu0 %v2364
  %2534 = vmatprep.subr.bf16.mxu0 0
  %2535 = vmatpush1.bf16.msra.mxu0 %v2365
  %2536 = vmatprep.subr.bf16.mxu0 0
  %2537 = vmatpush1.bf16.msra.mxu0 %v2366
  %2538 = vmatprep.subr.bf16.mxu0 0
  %2539 = vmatpush1.bf16.msra.mxu0 %v2367
  %2540 = vmatprep.subr.bf16.mxu0 0
  %2541 = vmatpush1.bf16.msra.mxu0 %v2368
  %2542 = vmatprep.subr.bf16.mxu0 0
  %2543 = vmatpush1.bf16.msra.mxu0 %v2369
  %2544 = vmatprep.subr.bf16.mxu0 0
  %2545 = vmatpush1.bf16.msra.mxu0 %v2370
  %2546 = vmatprep.subr.bf16.mxu0 0
  %2547 = vmatpush1.bf16.msra.mxu0 %v2371
  %2548 = vmatprep.subr.bf16.mxu0 0
  %2549 = vmatpush1.bf16.msra.mxu0 %v2372
  %2550 = vmatprep.subr.bf16.mxu0 0
  %2551 = vmatpush1.bf16.msra.mxu0 %v2373
  %2552 = vmatprep.subr.bf16.mxu0 0
  %2553 = vmatpush1.bf16.msra.mxu0 %v2374
  %2554 = vmatprep.subr.bf16.mxu0 0
  %2555 = vmatpush1.bf16.msra.mxu0 %v2375
  %2556 = vmatprep.subr.bf16.mxu0 0
  %2557 = vmatpush1.bf16.msra.mxu0 %v2376
  %2558 = vmatprep.subr.bf16.mxu0 0
  %2559 = vmatpush1.bf16.msra.mxu0 %v2377
  %2560 = vmatprep.subr.bf16.mxu0 0
  %2561 = vmatpush1.bf16.msra.mxu0 %v2378
  %2562 = vmatprep.subr.bf16.mxu0 0
  %2563 = vmatpush1.bf16.msra.mxu0 %v2379
  %2564 = vmatprep.mubr.bf16.mxu0 %v1903
  %2565 = vmatmul.mubr.bf16.gmra.mrb[0].mxu0 %v1902
  %v2566 = vpop.f32.mrb[0].mxu0
  %v2567 = vadd.f32 %v2527, %v2566
  %v2568 = vpop.f32.mrb[0].mxu0
  %v2569 = vpop.f32.mrb[0].mxu0
  %v2570 = vpop.f32.mrb[0].mxu0
  %2571 = vdwg.mxu0
  %2572 = vmatprep.subr.bf16.mxu0 0
  %2573 = vmatpush1.bf16.msra.mxu0 %v2380
  %2574 = vmatprep.subr.bf16.mxu0 0
  %2575 = vmatpush1.bf16.msra.mxu0 %v2381
  %2576 = vmatprep.subr.bf16.mxu0 0
  %2577 = vmatpush1.bf16.msra.mxu0 %v2382
  %2578 = vmatprep.subr.bf16.mxu0 0
  %2579 = vmatpush1.bf16.msra.mxu0 %v2383
  %2580 = vmatprep.subr.bf16.mxu0 0
  %2581 = vmatpush1.bf16.msra.mxu0 %v2384
  %2582 = vmatprep.subr.bf16.mxu0 0
  %2583 = vmatpush1.bf16.msra.mxu0 %v2385
  %2584 = vmatprep.subr.bf16.mxu0 0
  %2585 = vmatpush1.bf16.msra.mxu0 %v2386
  %2586 = vmatprep.subr.bf16.mxu0 0
  %2587 = vmatpush1.bf16.msra.mxu0 %v2387
  %2588 = vmatprep.subr.bf16.mxu0 0
  %2589 = vmatpush1.bf16.msra.mxu0 %v2388
  %2590 = vmatprep.subr.bf16.mxu0 0
  %2591 = vmatpush1.bf16.msra.mxu0 %v2389
  %2592 = vmatprep.subr.bf16.mxu0 0
  %2593 = vmatpush1.bf16.msra.mxu0 %v2390
  %2594 = vmatprep.subr.bf16.mxu0 0
  %2595 = vmatpush1.bf16.msra.mxu0 %v2391
  %2596 = vmatprep.subr.bf16.mxu0 0
  %2597 = vmatpush1.bf16.msra.mxu0 %v2392
  %2598 = vmatprep.subr.bf16.mxu0 0
  %2599 = vmatpush1.bf16.msra.mxu0 %v2393
  %2600 = vmatprep.subr.bf16.mxu0 0
  %2601 = vmatpush1.bf16.msra.mxu0 %v2394
  %2602 = vmatprep.subr.bf16.mxu0 0
  %2603 = vmatpush1.bf16.msra.mxu0 %v2395
  %2604 = vmatprep.mubr.bf16.mxu0 %v1905
  %2605 = vmatmul.mubr.bf16.gmra.mrb[0].mxu0 %v1904
  %v2606 = vpop.f32.mrb[0].mxu0
  %v2607 = vadd.f32 %v2567, %v2606
  %v2608 = vpop.f32.mrb[0].mxu0
  %v2609 = vpop.f32.mrb[0].mxu0
  %v2610 = vpop.f32.mrb[0].mxu0
  %2611 = vdwg.mxu0
  %2612 = vmatprep.subr.bf16.mxu0 0
  %2613 = vmatpush1.bf16.msra.mxu0 %v2396
  %2614 = vmatprep.subr.bf16.mxu0 0
  %2615 = vmatpush1.bf16.msra.mxu0 %v2397
  %2616 = vmatprep.subr.bf16.mxu0 0
  %2617 = vmatpush1.bf16.msra.mxu0 %v2398
  %2618 = vmatprep.subr.bf16.mxu0 0
  %2619 = vmatpush1.bf16.msra.mxu0 %v2399
  %2620 = vmatprep.subr.bf16.mxu0 0
  %2621 = vmatpush1.bf16.msra.mxu0 %v2400
  %2622 = vmatprep.subr.bf16.mxu0 0
  %2623 = vmatpush1.bf16.msra.mxu0 %v2401
  %2624 = vmatprep.subr.bf16.mxu0 0
  %2625 = vmatpush1.bf16.msra.mxu0 %v2402
  %2626 = vmatprep.subr.bf16.mxu0 0
  %2627 = vmatpush1.bf16.msra.mxu0 %v2403
  %2628 = vmatprep.subr.bf16.mxu0 0
  %2629 = vmatpush1.bf16.msra.mxu0 %v2404
  %2630 = vmatprep.subr.bf16.mxu0 0
  %2631 = vmatpush1.bf16.msra.mxu0 %v2405
  %2632 = vmatprep.subr.bf16.mxu0 0
  %2633 = vmatpush1.bf16.msra.mxu0 %v2406
  %2634 = vmatprep.subr.bf16.mxu0 0
  %2635 = vmatpush1.bf16.msra.mxu0 %v2407
  %2636 = vmatprep.subr.bf16.mxu0 0
  %2637 = vmatpush1.bf16.msra.mxu0 %v2408
  %2638 = vmatprep.subr.bf16.mxu0 0
  %2639 = vmatpush1.bf16.msra.mxu0 %v2409
  %2640 = vmatprep.subr.bf16.mxu0 0
  %2641 = vmatpush1.bf16.msra.mxu0 %v2410
  %2642 = vmatprep.subr.bf16.mxu0 0
  %2643 = vmatpush1.bf16.msra.mxu0 %v2411
  %2644 = vmatprep.mubr.bf16.mxu0 %v1907
  %2645 = vmatmul.mubr.bf16.gmra.mrb[0].mxu0 %v1906
  %v2646 = vpop.f32.mrb[0].mxu0
  %v2647 = vadd.f32 %v2607, %v2646
  %v2648 = vpop.f32.mrb[0].mxu0
  %v2649 = vpop.f32.mrb[0].mxu0
  %v2650 = vpop.f32.mrb[0].mxu0
  %2651 = vdwg.mxu0
  %2652 = vmatprep.subr.bf16.mxu0 0
  %2653 = vmatpush1.bf16.msra.mxu0 %v2412
  %2654 = vmatprep.subr.bf16.mxu0 0
  %2655 = vmatpush1.bf16.msra.mxu0 %v2413
  %2656 = vmatprep.subr.bf16.mxu0 0
  %2657 = vmatpush1.bf16.msra.mxu0 %v2414
  %2658 = vmatprep.subr.bf16.mxu0 0
  %2659 = vmatpush1.bf16.msra.mxu0 %v2415
  %2660 = vmatprep.subr.bf16.mxu0 0
  %2661 = vmatpush1.bf16.msra.mxu0 %v2416
  %2662 = vmatprep.subr.bf16.mxu0 0
  %2663 = vmatpush1.bf16.msra.mxu0 %v2417
  %2664 = vmatprep.subr.bf16.mxu0 0
  %2665 = vmatpush1.bf16.msra.mxu0 %v2418
  %2666 = vmatprep.subr.bf16.mxu0 0
  %2667 = vmatpush1.bf16.msra.mxu0 %v2419
  %2668 = vmatprep.subr.bf16.mxu0 0
  %2669 = vmatpush1.bf16.msra.mxu0 0
  %2670 = vmatprep.subr.bf16.mxu0 0
  %2671 = vmatpush1.bf16.msra.mxu0 0
  %2672 = vmatprep.subr.bf16.mxu0 0
  %2673 = vmatpush1.bf16.msra.mxu0 0
  %2674 = vmatprep.subr.bf16.mxu0 0
  %2675 = vmatpush1.bf16.msra.mxu0 0
  %2676 = vmatprep.subr.bf16.mxu0 0
  %2677 = vmatpush1.bf16.msra.mxu0 0
  %2678 = vmatprep.subr.bf16.mxu0 0
  %2679 = vmatpush1.bf16.msra.mxu0 0
  %2680 = vmatprep.subr.bf16.mxu0 0
  %2681 = vmatpush1.bf16.msra.mxu0 0
  %2682 = vmatprep.subr.bf16.mxu0 0
  %2683 = vmatpush1.bf16.msra.mxu0 0
  %2684 = vmatprep.mubr.bf16.mxu0 0
  %2685 = vmatmul.mubr.bf16.gmra.mrb[0].mxu0 %v1908
  %v2686 = vpop.f32.mrb[0].mxu0
  %v2687 = vadd.f32 %v2647, %v2686
  %v2688 = vpop.f32.mrb[0].mxu0
  %v2689 = vpop.f32.mrb[0].mxu0
  %v2690 = vpop.f32.mrb[0].mxu0
  %2691 = vdwg.mxu0
  %vm2692 = vcmp.ge.f32.partialorder %v2687, 0.0
  %v2693 = vmul.f32 %v2687, 0.01
  %v2694 = vsel %vm2692, %v2687, %v2693
  %v2695 = vrot.slane %v2694, 4
  %v2696 = vadd.f32 %v2694, %v2695
  %v2697 = vrot.slane %v2696, 2
  %v2698 = vadd.f32 %v2696, %v2697
  %v2699 = vrot.slane %v2698, 1
  %v2700 = vadd.f32 %v2698, %v2699
  %v2701 = vrcp.pop 8.0
  %v2702 = vmul.f32 %v2700, %v2701
  %v2703 = vsub.f32 %v2694, %v2702
  %v2704 = vmul.f32 %v2703, %v2703
  %v2705 = vrot.slane %v2704, 4
  %v2706 = vadd.f32 %v2704, %v2705
  %v2707 = vrot.slane %v2706, 2
  %v2708 = vadd.f32 %v2706, %v2707
  %v2709 = vrot.slane %v2708, 1
  %v2710 = vadd.f32 %v2708, %v2709
  %v2711 = vmul.f32 %v2710, %v2701
  %v2712 = vadd.f32 %v2711, 1e-05
  %v2713 = vrsqrt.pop %v2712
  %v2714 = vmul.f32 %v2703, %v2713
  %v2715 = vpack.c.bf16 %v2714, %v2714
  %v2716 = vld [vmem:[%s7] sm:$0xf]
  %v2717 = vld [vmem:[%s7 + $0x4] sm:$0xf]
  %v2718 = vld [vmem:[%s7 + $0x8] sm:$0xf]
  %v2719 = vld [vmem:[%s7 + $0xc] sm:$0xf]
  %v2720 = vld [vmem:[%s7 + $0x10] sm:$0xf]
  %v2721 = vld [vmem:[%s7 + $0x14] sm:$0xf]
  %v2722 = vld [vmem:[%s7 + $0x18] sm:$0xf]
  %v2723 = vld [vmem:[%s7 + $0x1c] sm:$0xf]
  %v2724 = vld [vmem:[%s7 + $0x20] sm:$0xf]
  %v2725 = vld [vmem:[%s7 + $0x24] sm:$0xf]
  %v2726 = vld [vmem:[%s7 + $0x28] sm:$0xf]
  %v2727 = vld [vmem:[%s7 + $0x2c] sm:$0xf]
  %v2728 = vld [vmem:[%s7 + $0x30] sm:$0xf]
  %v2729 = vld [vmem:[%s7 + $0x34] sm:$0xf]
  %v2730 = vld [vmem:[%s7 + $0x38] sm:$0xf]
  %v2731 = vld [vmem:[%s7 + $0x3c] sm:$0xf]
  %v2732 = vld [vmem:[%s8] sm:$0x1]
  %v2734 = vlaneseq
  %v2735 = vshrl.u32 %v2734, 7
  %v2736 = vsub.s32 0, %v2735
  %v2737 = vrot.slane %v2732, %v2736
  %v2755 = vunpack.c.l.b16 %v2716
  %v2756 = vunpack.c.l.b16 %v2717
  %v2757 = vunpack.c.l.b16 %v2718
  %v2758 = vunpack.c.l.b16 %v2719
  %v2759 = vunpack.c.l.b16 %v2720
  %v2760 = vunpack.c.l.b16 %v2721
  %v2761 = vunpack.c.l.b16 %v2722
  %v2762 = vunpack.c.l.b16 %v2723
  %v2763 = vunpack.c.l.b16 %v2724
  %v2764 = vunpack.c.l.b16 %v2725
  %v2765 = vunpack.c.l.b16 %v2726
  %v2766 = vunpack.c.l.b16 %v2727
  %v2767 = vunpack.c.l.b16 %v2728
  %v2768 = vunpack.c.l.b16 %v2729
  %v2769 = vunpack.c.l.b16 %v2730
  %v2770 = vunpack.c.l.b16 %v2731
  %v2771 = vpack.c.b16 %v2756, %v2755
  %v2772 = vpack.c.b16 %v2758, %v2757
  %v2773 = vpack.c.b16 %v2760, %v2759
  %v2774 = vpack.c.b16 %v2762, %v2761
  %v2775 = vpack.c.b16 %v2764, %v2763
  %v2776 = vpack.c.b16 %v2766, %v2765
  %v2777 = vpack.c.b16 %v2768, %v2767
  %v2778 = vpack.c.b16 %v2770, %v2769
  %2787 = vmatprep.subr.bf16.mxu0 0
  %2788 = vmatpush1.bf16.msra.mxu0 %v2771
  %2789 = vmatprep.subr.bf16.mxu0 0
  %2790 = vmatpush1.bf16.msra.mxu0 %v2772
  %2791 = vmatprep.subr.bf16.mxu0 0
  %2792 = vmatpush1.bf16.msra.mxu0 %v2773
  %2793 = vmatprep.subr.bf16.mxu0 0
  %2794 = vmatpush1.bf16.msra.mxu0 %v2774
  %2795 = vmatprep.subr.bf16.mxu0 0
  %2796 = vmatpush1.bf16.msra.mxu0 %v2775
  %2797 = vmatprep.subr.bf16.mxu0 0
  %2798 = vmatpush1.bf16.msra.mxu0 %v2776
  %2799 = vmatprep.subr.bf16.mxu0 0
  %2800 = vmatpush1.bf16.msra.mxu0 %v2777
  %2801 = vmatprep.subr.bf16.mxu0 0
  %2802 = vmatpush1.bf16.msra.mxu0 %v2778
  %2803 = vmatprep.subr.bf16.mxu0 0
  %2804 = vmatpush1.bf16.msra.mxu0 0
  %2805 = vmatprep.subr.bf16.mxu0 0
  %2806 = vmatpush1.bf16.msra.mxu0 0
  %2807 = vmatprep.subr.bf16.mxu0 0
  %2808 = vmatpush1.bf16.msra.mxu0 0
  %2809 = vmatprep.subr.bf16.mxu0 0
  %2810 = vmatpush1.bf16.msra.mxu0 0
  %2811 = vmatprep.subr.bf16.mxu0 0
  %2812 = vmatpush1.bf16.msra.mxu0 0
  %2813 = vmatprep.subr.bf16.mxu0 0
  %2814 = vmatpush1.bf16.msra.mxu0 0
  %2815 = vmatprep.subr.bf16.mxu0 0
  %2816 = vmatpush1.bf16.msra.mxu0 0
  %2817 = vmatprep.subr.bf16.mxu0 0
  %2818 = vmatpush1.bf16.msra.mxu0 0
  %2819 = vmatprep.mubr.bf16.mxu0 0
  %2820 = vmatmul.mubr.bf16.gmra.mrb[0].mxu0 %v2715
  %v2821 = vpop.f32.mrb[0].mxu0
  %v2822 = vadd.f32 %v2737, %v2821
  %v2823 = vpop.f32.mrb[0].mxu0
  %v2824 = vpop.f32.mrb[0].mxu0
  %v2825 = vpop.f32.mrb[0].mxu0
  %2826 = vdwg.mxu0
  %vm2827 = vcmp.ge.f32.partialorder %v2822, 0.0
  %v2828 = vmul.f32 %v2822, 0.01
  %v2829 = vsel %vm2827, %v2822, %v2828
  %v2830 = vrot.slane %v2829, 4
  %v2831 = vadd.f32 %v2829, %v2830
  %v2832 = vrot.slane %v2831, 2
  %v2833 = vadd.f32 %v2831, %v2832
  %v2834 = vrot.slane %v2833, 1
  %v2835 = vadd.f32 %v2833, %v2834
  %v2836 = vmul.f32 %v2835, %v2701
  %v2837 = vsub.f32 %v2829, %v2836
  %v2838 = vmul.f32 %v2837, %v2837
  %v2839 = vrot.slane %v2838, 4
  %v2840 = vadd.f32 %v2838, %v2839
  %v2841 = vrot.slane %v2840, 2
  %v2842 = vadd.f32 %v2840, %v2841
  %v2843 = vrot.slane %v2842, 1
  %v2844 = vadd.f32 %v2842, %v2843
  %v2845 = vmul.f32 %v2844, %v2701
  %v2846 = vadd.f32 %v2845, 1e-05
  %v2847 = vrsqrt.pop %v2846
  %v2848 = vmul.f32 %v2837, %v2847
  %v2849 = vsel %vm1600, %v2848, 0.0
  %v2850 = vrot.slane %v2849, 4
  %v2851 = vadd.f32 %v2849, %v2850
  %v2852 = vrot.slane %v2851, 2
  %v2853 = vadd.f32 %v2851, %v2852
  %v2854 = vrot.slane %v2853, 1
  %v2855 = vadd.f32 %v2853, %v2854
  %v2857 = vrot.slane %v2848, 2
  %v2859 = vsel %vm1600, %v2857, 0.0
  %v2860 = vrot.slane %v2859, 4
  %v2861 = vadd.f32 %v2859, %v2860
  %v2862 = vrot.slane %v2861, 2
  %v2863 = vadd.f32 %v2861, %v2862
  %v2864 = vrot.slane %v2863, 1
  %v2865 = vadd.f32 %v2863, %v2864
  %v2866 = vadd.f32 %v2855, %v2865
  %v2867 = vrot.slane %v2848, 4
  %v2869 = vsel %vm1600, %v2867, 0.0
  %v2870 = vrot.slane %v2869, 4
  %v2871 = vadd.f32 %v2869, %v2870
  %v2872 = vrot.slane %v2871, 2
  %v2873 = vadd.f32 %v2871, %v2872
  %v2874 = vrot.slane %v2873, 1
  %v2875 = vadd.f32 %v2873, %v2874
  %v2876 = vrot.slane %v2848, 6
  %v2878 = vsel %vm1600, %v2876, 0.0
  %v2879 = vrot.slane %v2878, 4
  %v2880 = vadd.f32 %v2878, %v2879
  %v2881 = vrot.slane %v2880, 2
  %v2882 = vadd.f32 %v2880, %v2881
  %v2883 = vrot.slane %v2882, 1
  %v2884 = vadd.f32 %v2882, %v2883
  %v2885 = vadd.f32 %v2875, %v2884
  %v2886 = vsel %vm1754, %v2866, %v2885
  %v2887 = vmul.f32 %v2886, 0.11111111
  %v2888 = vpack.c.bf16 %v2887, %v2887
  %v2889 = vld [vmem:[%s9] sm:$0xf]
  %v2890 = vld [vmem:[%s9 + $0x4] sm:$0xf]
  %v2891 = vld [vmem:[%s9 + $0x8] sm:$0xf]
  %v2892 = vld [vmem:[%s9 + $0xc] sm:$0xf]
  %v2893 = vld [vmem:[%s9 + $0x10] sm:$0xf]
  %v2894 = vld [vmem:[%s9 + $0x14] sm:$0xf]
  %v2895 = vld [vmem:[%s9 + $0x18] sm:$0xf]
  %v2896 = vld [vmem:[%s9 + $0x1c] sm:$0xf]
  %v2897 = vld [vmem:[%s9 + $0x20] sm:$0xf]
  %v2898 = vld [vmem:[%s9 + $0x24] sm:$0xf]
  %v2899 = vld [vmem:[%s9 + $0x28] sm:$0xf]
  %v2900 = vld [vmem:[%s9 + $0x2c] sm:$0xf]
  %v2901 = vld [vmem:[%s9 + $0x30] sm:$0xf]
  %v2902 = vld [vmem:[%s9 + $0x34] sm:$0xf]
  %v2903 = vld [vmem:[%s9 + $0x38] sm:$0xf]
  %v2904 = vld [vmem:[%s9 + $0x3c] sm:$0xf]
  %v2905 = vld [vmem:[%s10] sm:$0x1]
  %v2907 = vlaneseq
  %v2908 = vshrl.u32 %v2907, 7
  %v2909 = vsub.s32 0, %v2908
  %v2910 = vrot.slane %v2905, %v2909
  %v2928 = vunpack.c.l.b16 %v2889
  %v2929 = vunpack.c.l.b16 %v2890
  %v2930 = vunpack.c.l.b16 %v2891
  %v2931 = vunpack.c.l.b16 %v2892
  %v2932 = vunpack.c.l.b16 %v2893
  %v2933 = vunpack.c.l.b16 %v2894
  %v2934 = vunpack.c.l.b16 %v2895
  %v2935 = vunpack.c.l.b16 %v2896
  %v2936 = vunpack.c.l.b16 %v2897
  %v2937 = vunpack.c.l.b16 %v2898
  %v2938 = vunpack.c.l.b16 %v2899
  %v2939 = vunpack.c.l.b16 %v2900
  %v2940 = vunpack.c.l.b16 %v2901
  %v2941 = vunpack.c.l.b16 %v2902
  %v2942 = vunpack.c.l.b16 %v2903
  %v2943 = vunpack.c.l.b16 %v2904
  %v2944 = vpack.c.b16 %v2929, %v2928
  %v2945 = vpack.c.b16 %v2931, %v2930
  %v2946 = vpack.c.b16 %v2933, %v2932
  %v2947 = vpack.c.b16 %v2935, %v2934
  %v2948 = vpack.c.b16 %v2937, %v2936
  %v2949 = vpack.c.b16 %v2939, %v2938
  %v2950 = vpack.c.b16 %v2941, %v2940
  %v2951 = vpack.c.b16 %v2943, %v2942
  %2960 = vmatprep.subr.bf16.mxu0 0
  %2961 = vmatpush1.bf16.msra.mxu0 %v2944
  %2962 = vmatprep.subr.bf16.mxu0 0
  %2963 = vmatpush1.bf16.msra.mxu0 %v2945
  %2964 = vmatprep.subr.bf16.mxu0 0
  %2965 = vmatpush1.bf16.msra.mxu0 %v2946
  %2966 = vmatprep.subr.bf16.mxu0 0
  %2967 = vmatpush1.bf16.msra.mxu0 %v2947
  %2968 = vmatprep.subr.bf16.mxu0 0
  %2969 = vmatpush1.bf16.msra.mxu0 %v2948
  %2970 = vmatprep.subr.bf16.mxu0 0
  %2971 = vmatpush1.bf16.msra.mxu0 %v2949
  %2972 = vmatprep.subr.bf16.mxu0 0
  %2973 = vmatpush1.bf16.msra.mxu0 %v2950
  %2974 = vmatprep.subr.bf16.mxu0 0
  %2975 = vmatpush1.bf16.msra.mxu0 %v2951
  %2976 = vmatprep.subr.bf16.mxu0 0
  %2977 = vmatpush1.bf16.msra.mxu0 0
  %2978 = vmatprep.subr.bf16.mxu0 0
  %2979 = vmatpush1.bf16.msra.mxu0 0
  %2980 = vmatprep.subr.bf16.mxu0 0
  %2981 = vmatpush1.bf16.msra.mxu0 0
  %2982 = vmatprep.subr.bf16.mxu0 0
  %2983 = vmatpush1.bf16.msra.mxu0 0
  %2984 = vmatprep.subr.bf16.mxu0 0
  %2985 = vmatpush1.bf16.msra.mxu0 0
  %2986 = vmatprep.subr.bf16.mxu0 0
  %2987 = vmatpush1.bf16.msra.mxu0 0
  %2988 = vmatprep.subr.bf16.mxu0 0
  %2989 = vmatpush1.bf16.msra.mxu0 0
  %2990 = vmatprep.subr.bf16.mxu0 0
  %2991 = vmatpush1.bf16.msra.mxu0 0
  %2992 = vmatprep.mubr.bf16.mxu0 0
  %2993 = vmatmul.mubr.bf16.gmra.mrb[0].mxu0 %v2888
  %v2994 = vpop.f32.mrb[0].mxu0
  %v2995 = vadd.f32 %v2910, %v2994
  %v2996 = vpop.f32.mrb[0].mxu0
  %v2997 = vpop.f32.mrb[0].mxu0
  %v2998 = vpop.f32.mrb[0].mxu0
  %2999 = vdwg.mxu0
  %vm3000 = vcmp.ge.f32.partialorder %v2995, 0.0
  %v3001 = vmul.f32 %v2995, 0.01
  %v3002 = vsel %vm3000, %v2995, %v3001
  %3003 = vst [vmem:[%s11] sm:$0x3] %v3002
  // Predicated region
  $region46: #{discriminator_forward.1} parent=0 // pred_check
    _
  $region47: #{discriminator_forward.1} parent=0 // pred_check_branch
    %3005 = sbr.rel (0) target = $region49
  $region48: #{discriminator_forward.1} parent=0 // pred_region
    _
  $region49: #{discriminator_forward.1} parent=0 // pred_fallthru
    _
  // Predicated region
  $region50: #{discriminator_forward.1} parent=0 // pred_check
    _
  $region51: #{discriminator_forward.1} parent=0 // pred_check_branch
    %3007 = sbr.rel (0) target = $region53
  $region52: #{discriminator_forward.1} parent=0 // pred_region
    _
  $region53: #{discriminator_forward.1} parent=0 // pred_fallthru
    _

</llo_original>
